<compile_context>
chip_gen: v5e
topology: v5e:2x2
jax: 0.10.0
libtpu: 0.0.40
codegen_flags: <defaults>
</compile_context>

<pallas_src>
import math
import functools

import jax
import jax.numpy as jnp
from jax.experimental import pallas as pl
from jax.experimental.pallas import tpu as pltpu


# --------------------------------------------------------------------------
# Fused kernel: native 1x1 conv+BN+ReLU -> grouped dilated 3x3 conv+BN+ReLU -> concat
# --------------------------------------------------------------------------
def _msdconv_kernel(x_ref, w1_ref, s1_ref, b1_ref, w2_ref, s2_ref, b2_ref,
                    o_ref, xpad_ref, *, H, W, Wp, wpad, dil, pad, KH, KW):
    HW = H * W
    Cn = w1_ref.shape[1]          # native channels
    Ca = w2_ref.shape[2]          # aux channels
    Hbuf = xpad_ref.shape[0]
    ctr = (KH - 1) // 2

    # ---------------- native branch: 1x1 conv (MXU matmul) + folded BN + ReLU ----------------
    xm = x_ref[0]                                                    # (HW, Cin) bf16
    y1 = jnp.dot(xm, w1_ref[...], preferred_element_type=jnp.float32)
    x1 = jnp.maximum(y1 * s1_ref[...] + b1_ref[...], 0.0)           # (HW, Cn) f32
    x1_c = x1.astype(o_ref.dtype)                                    # single bf16 cast, reused

    # fused concat, part 1: native channels go straight into the output block
    o_ref[0, :, 0:Cn] = x1_c

    # ------------- stage x1 into a zero-halo buffer (bf16) for the dilated conv -------------
    # Only the thin halo strips are rewritten each step. A one-shot pl.when(program_id==0)
    # zeroing is avoided on purpose: with megacore 'parallel' sharding each TensorCore has a
    # private scratch and only one core would ever see grid index 0.
    zdt = xpad_ref.dtype
    xpad_ref[0:pad, :, :] = jnp.zeros((pad, Wp, Cn), zdt)                          # top rows
    xpad_ref[pad + H:Hbuf, :, :] = jnp.zeros((Hbuf - pad - H, Wp, Cn), zdt)        # bottom rows
    xpad_ref[pad:pad + H, 0:wpad, :] = jnp.zeros((H, wpad, Cn), zdt)               # left cols
    xpad_ref[pad:pad + H, wpad + W:Wp, :] = jnp.zeros((H, Wp - wpad - W, Cn), zdt)  # right cols
    # interior store: sublane offset wpad is a multiple of 16 (bf16 tile is (16, 128))
    xpad_ref[pad:pad + H, wpad:wpad + W, :] = x1_c.reshape(H, W, Cn)

    # --------------- aux branch: grouped dilated KHxKW conv + folded BN + ReLU ---------------
    # Each tap is ONE full-width matmul over the padded rows: (H*Wp, Cn) @ (Cn, Ca). The
    # per-tap weights are dense but block-diagonal per group (built at init), so K = Cn <= 128
    # costs the same MXU passes as the grouped K = cig variant while removing per-group lane
    # slicing and per-tap window relayouts. Row taps are aligned outer-dim ref slices; column
    # taps are folded into three static shifted interior extractions at the end; the zero halo
    # supplies the "same" padding. Accumulation lives in registers/compiler temporaries (f32),
    # never as VMEM read-modify-write.
    accs = [None] * KW
    for kh in range(KH):
        r0 = pad + (kh - ctr) * dil                               # 0, dil, 2*dil (outer dim)
        flat = xpad_ref[r0:r0 + H, :, :].reshape(H * Wp, Cn)      # free retiling (Wp % 16 == 0)
        for kw in range(KW):
            t = jnp.dot(flat, w2_ref[kh * KW + kw],
                        preferred_element_type=jnp.float32)       # (H*Wp, Ca) f32
            accs[kw] = t if accs[kw] is None else accs[kw] + t

    x2 = None
    for kw in range(KW):
        c0 = wpad + (kw - ctr) * dil                              # shifted interior column window
        part = accs[kw].reshape(H, Wp, Ca)[:, c0:c0 + W, :]       # (H, W, Ca)
        x2 = part if x2 is None else x2 + part

    x2 = jnp.maximum(x2.reshape(HW, Ca) * s2_ref[...] + b2_ref[...], 0.0)

    # fused concat, part 2: aux channels
    o_ref[0, :, Cn:Cn + Ca] = x2.astype(o_ref.dtype)


# --------------------------------------------------------------------------
# Parameter setup (plain JAX)
# --------------------------------------------------------------------------
def _fold_bn(gamma, beta, mean, var, eps=1e-5):
    scale = gamma / jnp.sqrt(var + eps)
    bias = beta - mean * scale
    return scale, bias


def init_msdconv_params(key, in_ch, out_ch, kernel_size=1, ratio=2, aux_k=3,
                        dilation=3, compute_dtype=jnp.bfloat16):
    assert kernel_size == 1, "native branch implemented for kernel_size=1 (module default)"
    assert aux_k % 2 == 1
    native_ch = math.ceil(out_ch / ratio)
    aux_ch = native_ch * (ratio - 1)
    # TODO(synk): PyTorch would error for native_ch < 4 (groups=0); clamp to 1 here.
    groups = max(int(native_ch / 4), 1)
    assert native_ch % groups == 0 and aux_ch % groups == 0
    cig = native_ch // groups
    cog = aux_ch // groups

    k1, k2 = jax.random.split(key, 2)
    # TODO(synk): ad-hoc 0.1*normal init (not PyTorch Kaiming-uniform); load real weights to match.
    # native 1x1 conv weight: PyTorch (native_ch, in_ch, 1, 1) -> (in_ch, native_ch)
    w1 = (0.1 * jax.random.normal(k1, (in_ch, native_ch), jnp.float32)).astype(compute_dtype)

    # grouped dilated conv weight: PyTorch (aux_ch, native_ch // groups, k, k)
    w2_pt = 0.1 * jax.random.normal(k2, (aux_ch, cig, aux_k, aux_k), jnp.float32)
    # -> dense block-diagonal per-tap matmul weights (KH*KW, native_ch, aux_ch): the zero
    #    padding between group blocks is baked in at init, so the kernel needs no group loop or
    #    lane slicing and K = native_ch <= 128 costs no extra MXU passes.
    wg = jnp.transpose(w2_pt.reshape(groups, cog, cig, aux_k, aux_k), (3, 4, 0, 2, 1))
    wg = wg.reshape(aux_k * aux_k, groups, cig, cog)
    w2 = jnp.zeros((aux_k * aux_k, native_ch, aux_ch), jnp.float32)
    for g in range(groups):
        w2 = w2.at[:, g * cig:(g + 1) * cig, g * cog:(g + 1) * cog].set(wg[:, g])
    w2 = w2.astype(compute_dtype)

    # BatchNorm init: gamma=1, beta=0, running_mean=0, running_var=1 (folded)
    s1, b1 = _fold_bn(jnp.ones(native_ch), jnp.zeros(native_ch),
                      jnp.zeros(native_ch), jnp.ones(native_ch))
    s2, b2 = _fold_bn(jnp.ones(aux_ch), jnp.zeros(aux_ch),
                      jnp.zeros(aux_ch), jnp.ones(aux_ch))

    return dict(out_ch=out_ch, dilation=dilation, aux_k=aux_k,
                w1=w1, s1=s1.reshape(1, native_ch), b1=b1.reshape(1, native_ch),
                w2=w2, s2=s2.reshape(1, aux_ch), b2=b2.reshape(1, aux_ch))


# --------------------------------------------------------------------------
# Forward wrapper
# --------------------------------------------------------------------------
def msdconv_forward(params, x_nchw):
    w1, s1, b1 = params["w1"], params["s1"], params["b1"]
    w2, s2, b2 = params["w2"], params["s2"], params["b2"]
    out_ch, dil, KH = params["out_ch"], params["dilation"], params["aux_k"]
    KW = KH

    N, Cin, H, W = x_nchw.shape
    Cn = w1.shape[1]
    Ca = w2.shape[2]
    Ctot = Cn + Ca
    HW = H * W
    dtype = w1.dtype
    itemsize = jnp.dtype(dtype).itemsize

    # Zero-halo staging geometry for the dilated "same" conv.
    pad = dil * (KH - 1) // 2
    wpad = 16                                       # left halo: >= pad, multiple of 16 (bf16 tile)
    assert wpad >= pad, "dilation too large for the fixed 16-column left halo"
    Wp = wpad + ((W + pad + 15) // 16) * 16         # right halo >= pad, Wp % 16 == 0
    Hbuf = H + 2 * pad                              # vertical halo trimmed to exactly `pad` rows

    # NCHW -> (N, H*W, Cin) in compute dtype; XLA fuses transpose+reshape+cast into one pass.
    x = jnp.transpose(x_nchw, (0, 2, 3, 1)).reshape(N, HW, Cin).astype(dtype)

    kern = functools.partial(_msdconv_kernel, H=H, W=W, Wp=Wp, wpad=wpad,
                             dil=dil, pad=pad, KH=KH, KW=KW)

    flops = int(2 * N * (HW * Cin * Cn + H * Wp * KH * KW * Cn * Ca))
    bytes_accessed = int(N * HW * (Cin + Ctot) * itemsize
                         + (w1.size + w2.size) * itemsize + 2 * (Cn + Ca) * 4)

    # VMEM: double-buffered in/out blocks + persistent staging scratch + (double-buffered) params.
    vmem_need = (2 * HW * Cin * itemsize + 2 * HW * Ctot * itemsize
                 + Hbuf * Wp * Cn * itemsize
                 + 2 * ((w1.size + w2.size) * itemsize + 2 * (Cn + Ca) * 4)
                 + (2 << 20))                                   # headroom
    try:   # size the scoped-VMEM request from the actual chip (v7x: 64 MiB, v5e/v6e: 128 MiB)
        phys_vmem = int(pltpu.get_tpu_info().vmem_capacity_bytes)
    except Exception:
        phys_vmem = 64 * 1024 * 1024
    vmem_limit = int(min(int(phys_vmem * 0.85), max(32 * 1024 * 1024, vmem_need)))

    out = pl.pallas_call(
        kern,
        out_shape=jax.ShapeDtypeStruct((N, HW, Ctot), dtype),   # bf16 output halves writeback
        grid=(N,),
        in_specs=[
            pl.BlockSpec((1, HW, Cin), lambda n: (n, 0, 0)),
            pl.BlockSpec((Cin, Cn), lambda n: (0, 0)),
            pl.BlockSpec((1, Cn), lambda n: (0, 0)),
            pl.BlockSpec((1, Cn), lambda n: (0, 0)),
            pl.BlockSpec((KH * KW, Cn, Ca), lambda n: (0, 0, 0)),
            pl.BlockSpec((1, Ca), lambda n: (0, 0)),
            pl.BlockSpec((1, Ca), lambda n: (0, 0)),
        ],
        out_specs=pl.BlockSpec((1, HW, Ctot), lambda n: (n, 0, 0)),
        scratch_shapes=[pltpu.VMEM((Hbuf, Wp, Cn), dtype)],     # zero-halo x1 staging buffer
        compiler_params=pltpu.CompilerParams(
            dimension_semantics=("parallel",),
            vmem_limit_bytes=vmem_limit),
        cost_estimate=pl.CostEstimate(flops=flops, transcendentals=0,
                                      bytes_accessed=bytes_accessed),
    )(x, w1, s1, b1, w2, s2, b2)

    # (N, H*W, Cn+Ca) bf16 -> NCHW f32 + channel slice; one fused XLA output pass.
    out = out.reshape(N, H, W, Ctot)[..., :out_ch]
    return jnp.transpose(out, (0, 3, 1, 2)).astype(jnp.float32)


if __name__ == "__main__":
    key = jax.random.PRNGKey(0)
    kx, kp = jax.random.split(key)

    N, in_ch, H, W = 2, 4, 16, 16
    out_ch = 8                                   # native_ch=4, aux_ch=4, groups=1
    x = jax.random.normal(kx, (N, in_ch, H, W), jnp.float32)

    params = init_msdconv_params(kp, in_ch, out_ch)
    fwd = jax.jit(functools.partial(msdconv_forward, params))
    y = fwd(x)
    jax.block_until_ready(y)
    assert y.shape == (N, out_ch, H, W), y.shape
    print("KERNEL_OK")
</pallas_src>

<mosaic_0001>
module attributes {stable_mosaic.version = 11 : i64} {
  func.func @_msdconv_kernel(%arg0: i32, %arg1: memref<1x256x4xbf16, #tpu.memory_space<vmem>>, %arg2: memref<4x4xbf16, #tpu.memory_space<vmem>>, %arg3: memref<1x4xf32, #tpu.memory_space<vmem>>, %arg4: memref<1x4xf32, #tpu.memory_space<vmem>>, %arg5: memref<9x4x4xbf16, #tpu.memory_space<vmem>>, %arg6: memref<1x4xf32, #tpu.memory_space<vmem>>, %arg7: memref<1x4xf32, #tpu.memory_space<vmem>>, %arg8: memref<1x256x8xbf16, #tpu.memory_space<vmem>>, %arg9: memref<22x48x4xbf16, #tpu.memory_space<vmem>>) attributes {dimension_semantics = [#tpu.dimension_semantics<parallel>], iteration_bounds = array<i64: 2>, scalar_prefetch = 0 : i64, scratch_operands = 1 : i64, tpu.core_type = #tpu.core_type<tc>, window_params = [{transform_indices = @transform_0, window_bounds = array<i64: 1, 256, 4>}, {pipeline_mode = #tpu.pipeline_mode<synchronous>, transform_indices = @transform_1, window_bounds = array<i64: 4, 4>}, {pipeline_mode = #tpu.pipeline_mode<synchronous>, transform_indices = @transform_2, window_bounds = array<i64: 1, 4>}, {pipeline_mode = #tpu.pipeline_mode<synchronous>, transform_indices = @transform_3, window_bounds = array<i64: 1, 4>}, {pipeline_mode = #tpu.pipeline_mode<synchronous>, transform_indices = @transform_4, window_bounds = array<i64: 9, 4, 4>}, {pipeline_mode = #tpu.pipeline_mode<synchronous>, transform_indices = @transform_5, window_bounds = array<i64: 1, 4>}, {pipeline_mode = #tpu.pipeline_mode<synchronous>, transform_indices = @transform_6, window_bounds = array<i64: 1, 4>}, {transform_indices = @transform_7, window_bounds = array<i64: 1, 256, 8>}]} {
    %c0 = arith.constant 0 : index
    %c0_0 = arith.constant 0 : index
    %c0_1 = arith.constant 0 : index
    %0 = vector.load %arg1[%c0, %c0_0, %c0_1] : memref<1x256x4xbf16, #tpu.memory_space<vmem>>, vector<1x256x4xbf16>
    %1 = vector.shape_cast %0 : vector<1x256x4xbf16> to vector<256x4xbf16>
    %c0_2 = arith.constant 0 : index
    %c0_3 = arith.constant 0 : index
    %2 = vector.load %arg2[%c0_2, %c0_3] : memref<4x4xbf16, #tpu.memory_space<vmem>>, vector<4x4xbf16>
    %cst = arith.constant dense<0.000000e+00> : vector<256x4xf32>
    %3 = tpu.matmul %1, %2, %cst {dimension_numbers = #tpu.dot_dimension_numbers<[1], [0], [0], [1], [0, 0, 1, 1], [], []>} : vector<256x4xbf16>, vector<4x4xbf16>, vector<256x4xf32> -> vector<256x4xf32>
    %c0_4 = arith.constant 0 : index
    %c0_5 = arith.constant 0 : index
    %4 = vector.load %arg3[%c0_4, %c0_5] : memref<1x4xf32, #tpu.memory_space<vmem>>, vector<1x4xf32>
    %5 = vector.broadcast %4 : vector<1x4xf32> to vector<256x4xf32>
    %6 = arith.mulf %3, %5 : vector<256x4xf32>
    %c0_6 = arith.constant 0 : index
    %c0_7 = arith.constant 0 : index
    %7 = vector.load %arg4[%c0_6, %c0_7] : memref<1x4xf32, #tpu.memory_space<vmem>>, vector<1x4xf32>
    %8 = vector.broadcast %7 : vector<1x4xf32> to vector<256x4xf32>
    %9 = arith.addf %6, %8 : vector<256x4xf32>
    %cst_8 = arith.constant 0.000000e+00 : f32
    %10 = vector.broadcast %cst_8 : f32 to vector<256x4xf32>
    %11 = arith.maximumf %9, %10 : vector<256x4xf32>
    %12 = arith.truncf %11 : vector<256x4xf32> to vector<256x4xbf16>
    %c0_9 = arith.constant 0 : index
    %c0_10 = arith.constant 0 : index
    %c0_11 = arith.constant 0 : index
    %13 = vector.load %arg8[%c0_9, %c0_10, %c0_11] : memref<1x256x8xbf16, #tpu.memory_space<vmem>>, vector<1x256x4xbf16>
    %14 = vector.shape_cast %13 : vector<1x256x4xbf16> to vector<256x4xbf16>
    %15 = vector.shape_cast %12 : vector<256x4xbf16> to vector<1x256x4xbf16>
    tpu.vector_store %arg8[%c0_9, %c0_10, %c0_11], %15 {strides = array<i32>} : memref<1x256x8xbf16, #tpu.memory_space<vmem>>, vector<1x256x4xbf16>,
    %cst_12 = arith.constant 0.000000e+00 : bf16
    %16 = vector.broadcast %cst_12 : bf16 to vector<3x48x4xbf16>
    %c0_13 = arith.constant 0 : index
    %c0_14 = arith.constant 0 : index
    %c0_15 = arith.constant 0 : index
    %17 = vector.load %arg9[%c0_13, %c0_14, %c0_15] : memref<22x48x4xbf16, #tpu.memory_space<vmem>>, vector<3x48x4xbf16>
    tpu.vector_store %arg9[%c0_13, %c0_14, %c0_15], %16 {strides = array<i32>} : memref<22x48x4xbf16, #tpu.memory_space<vmem>>, vector<3x48x4xbf16>,
    %cst_16 = arith.constant 0.000000e+00 : bf16
    %18 = vector.broadcast %cst_16 : bf16 to vector<3x48x4xbf16>
    %c19 = arith.constant 19 : index
    %c0_17 = arith.constant 0 : index
    %c0_18 = arith.constant 0 : index
    %19 = vector.load %arg9[%c19, %c0_17, %c0_18] : memref<22x48x4xbf16, #tpu.memory_space<vmem>>, vector<3x48x4xbf16>
    tpu.vector_store %arg9[%c19, %c0_17, %c0_18], %18 {strides = array<i32>} : memref<22x48x4xbf16, #tpu.memory_space<vmem>>, vector<3x48x4xbf16>,
    %cst_19 = arith.constant 0.000000e+00 : bf16
    %20 = vector.broadcast %cst_19 : bf16 to vector<16x16x4xbf16>
    %c3 = arith.constant 3 : index
    %c0_20 = arith.constant 0 : index
    %c0_21 = arith.constant 0 : index
    %21 = vector.load %arg9[%c3, %c0_20, %c0_21] : memref<22x48x4xbf16, #tpu.memory_space<vmem>>, vector<16x16x4xbf16>
    tpu.vector_store %arg9[%c3, %c0_20, %c0_21], %20 {strides = array<i32>} : memref<22x48x4xbf16, #tpu.memory_space<vmem>>, vector<16x16x4xbf16>,
    %cst_22 = arith.constant 0.000000e+00 : bf16
    %22 = vector.broadcast %cst_22 : bf16 to vector<16x16x4xbf16>
    %c3_23 = arith.constant 3 : index
    %c32 = arith.constant 32 : index
    %c0_24 = arith.constant 0 : index
    %23 = vector.load %arg9[%c3_23, %c32, %c0_24] : memref<22x48x4xbf16, #tpu.memory_space<vmem>>, vector<16x16x4xbf16>
    tpu.vector_store %arg9[%c3_23, %c32, %c0_24], %22 {strides = array<i32>} : memref<22x48x4xbf16, #tpu.memory_space<vmem>>, vector<16x16x4xbf16>,
    %24 = vector.shape_cast %12 : vector<256x4xbf16> to vector<16x16x4xbf16>
    %c3_25 = arith.constant 3 : index
    %c16 = arith.constant 16 : index
    %c0_26 = arith.constant 0 : index
    %25 = vector.load %arg9[%c3_25, %c16, %c0_26] : memref<22x48x4xbf16, #tpu.memory_space<vmem>>, vector<16x16x4xbf16>
    tpu.vector_store %arg9[%c3_25, %c16, %c0_26], %24 {strides = array<i32>} : memref<22x48x4xbf16, #tpu.memory_space<vmem>>, vector<16x16x4xbf16>,
    %c0_27 = arith.constant 0 : index
    %c0_28 = arith.constant 0 : index
    %c0_29 = arith.constant 0 : index
    %26 = vector.load %arg9[%c0_27, %c0_28, %c0_29] : memref<22x48x4xbf16, #tpu.memory_space<vmem>>, vector<16x48x4xbf16>
    %27 = vector.shape_cast %26 : vector<16x48x4xbf16> to vector<768x4xbf16>
    %c0_30 = arith.constant 0 : index
    %c0_31 = arith.constant 0 : index
    %c0_32 = arith.constant 0 : index
    %28 = vector.load %arg5[%c0_30, %c0_31, %c0_32] : memref<9x4x4xbf16, #tpu.memory_space<vmem>>, vector<1x4x4xbf16>
    %29 = vector.shape_cast %28 : vector<1x4x4xbf16> to vector<4x4xbf16>
    %cst_33 = arith.constant dense<0.000000e+00> : vector<768x4xf32>
    %30 = tpu.matmul %27, %29, %cst_33 {dimension_numbers = #tpu.dot_dimension_numbers<[1], [0], [0], [1], [0, 0, 1, 1], [], []>} : vector<768x4xbf16>, vector<4x4xbf16>, vector<768x4xf32> -> vector<768x4xf32>
    %c1 = arith.constant 1 : index
    %c0_34 = arith.constant 0 : index
    %c0_35 = arith.constant 0 : index
    %31 = vector.load %arg5[%c1, %c0_34, %c0_35] : memref<9x4x4xbf16, #tpu.memory_space<vmem>>, vector<1x4x4xbf16>
    %32 = vector.shape_cast %31 : vector<1x4x4xbf16> to vector<4x4xbf16>
    %cst_36 = arith.constant dense<0.000000e+00> : vector<768x4xf32>
    %33 = tpu.matmul %27, %32, %cst_36 {dimension_numbers = #tpu.dot_dimension_numbers<[1], [0], [0], [1], [0, 0, 1, 1], [], []>} : vector<768x4xbf16>, vector<4x4xbf16>, vector<768x4xf32> -> vector<768x4xf32>
    %c2 = arith.constant 2 : index
    %c0_37 = arith.constant 0 : index
    %c0_38 = arith.constant 0 : index
    %34 = vector.load %arg5[%c2, %c0_37, %c0_38] : memref<9x4x4xbf16, #tpu.memory_space<vmem>>, vector<1x4x4xbf16>
    %35 = vector.shape_cast %34 : vector<1x4x4xbf16> to vector<4x4xbf16>
    %cst_39 = arith.constant dense<0.000000e+00> : vector<768x4xf32>
    %36 = tpu.matmul %27, %35, %cst_39 {dimension_numbers = #tpu.dot_dimension_numbers<[1], [0], [0], [1], [0, 0, 1, 1], [], []>} : vector<768x4xbf16>, vector<4x4xbf16>, vector<768x4xf32> -> vector<768x4xf32>
    %c3_40 = arith.constant 3 : index
    %c0_41 = arith.constant 0 : index
    %c0_42 = arith.constant 0 : index
    %37 = vector.load %arg9[%c3_40, %c0_41, %c0_42] : memref<22x48x4xbf16, #tpu.memory_space<vmem>>, vector<16x48x4xbf16>
    %38 = vector.shape_cast %37 : vector<16x48x4xbf16> to vector<768x4xbf16>
    %c3_43 = arith.constant 3 : index
    %c0_44 = arith.constant 0 : index
    %c0_45 = arith.constant 0 : index
    %39 = vector.load %arg5[%c3_43, %c0_44, %c0_45] : memref<9x4x4xbf16, #tpu.memory_space<vmem>>, vector<1x4x4xbf16>
    %40 = vector.shape_cast %39 : vector<1x4x4xbf16> to vector<4x4xbf16>
    %cst_46 = arith.constant dense<0.000000e+00> : vector<768x4xf32>
    %41 = tpu.matmul %38, %40, %cst_46 {dimension_numbers = #tpu.dot_dimension_numbers<[1], [0], [0], [1], [0, 0, 1, 1], [], []>} : vector<768x4xbf16>, vector<4x4xbf16>, vector<768x4xf32> -> vector<768x4xf32>
    %42 = arith.addf %30, %41 : vector<768x4xf32>
    %c4 = arith.constant 4 : index
    %c0_47 = arith.constant 0 : index
    %c0_48 = arith.constant 0 : index
    %43 = vector.load %arg5[%c4, %c0_47, %c0_48] : memref<9x4x4xbf16, #tpu.memory_space<vmem>>, vector<1x4x4xbf16>
    %44 = vector.shape_cast %43 : vector<1x4x4xbf16> to vector<4x4xbf16>
    %cst_49 = arith.constant dense<0.000000e+00> : vector<768x4xf32>
    %45 = tpu.matmul %38, %44, %cst_49 {dimension_numbers = #tpu.dot_dimension_numbers<[1], [0], [0], [1], [0, 0, 1, 1], [], []>} : vector<768x4xbf16>, vector<4x4xbf16>, vector<768x4xf32> -> vector<768x4xf32>
    %46 = arith.addf %33, %45 : vector<768x4xf32>
    %c5 = arith.constant 5 : index
    %c0_50 = arith.constant 0 : index
    %c0_51 = arith.constant 0 : index
    %47 = vector.load %arg5[%c5, %c0_50, %c0_51] : memref<9x4x4xbf16, #tpu.memory_space<vmem>>, vector<1x4x4xbf16>
    %48 = vector.shape_cast %47 : vector<1x4x4xbf16> to vector<4x4xbf16>
    %cst_52 = arith.constant dense<0.000000e+00> : vector<768x4xf32>
    %49 = tpu.matmul %38, %48, %cst_52 {dimension_numbers = #tpu.dot_dimension_numbers<[1], [0], [0], [1], [0, 0, 1, 1], [], []>} : vector<768x4xbf16>, vector<4x4xbf16>, vector<768x4xf32> -> vector<768x4xf32>
    %50 = arith.addf %36, %49 : vector<768x4xf32>
    %c6 = arith.constant 6 : index
    %c0_53 = arith.constant 0 : index
    %c0_54 = arith.constant 0 : index
    %51 = vector.load %arg9[%c6, %c0_53, %c0_54] : memref<22x48x4xbf16, #tpu.memory_space<vmem>>, vector<16x48x4xbf16>
    %52 = vector.shape_cast %51 : vector<16x48x4xbf16> to vector<768x4xbf16>
    %c6_55 = arith.constant 6 : index
    %c0_56 = arith.constant 0 : index
    %c0_57 = arith.constant 0 : index
    %53 = vector.load %arg5[%c6_55, %c0_56, %c0_57] : memref<9x4x4xbf16, #tpu.memory_space<vmem>>, vector<1x4x4xbf16>
    %54 = vector.shape_cast %53 : vector<1x4x4xbf16> to vector<4x4xbf16>
    %cst_58 = arith.constant dense<0.000000e+00> : vector<768x4xf32>
    %55 = tpu.matmul %52, %54, %cst_58 {dimension_numbers = #tpu.dot_dimension_numbers<[1], [0], [0], [1], [0, 0, 1, 1], [], []>} : vector<768x4xbf16>, vector<4x4xbf16>, vector<768x4xf32> -> vector<768x4xf32>
    %56 = arith.addf %42, %55 : vector<768x4xf32>
    %c7 = arith.constant 7 : index
    %c0_59 = arith.constant 0 : index
    %c0_60 = arith.constant 0 : index
    %57 = vector.load %arg5[%c7, %c0_59, %c0_60] : memref<9x4x4xbf16, #tpu.memory_space<vmem>>, vector<1x4x4xbf16>
    %58 = vector.shape_cast %57 : vector<1x4x4xbf16> to vector<4x4xbf16>
    %cst_61 = arith.constant dense<0.000000e+00> : vector<768x4xf32>
    %59 = tpu.matmul %52, %58, %cst_61 {dimension_numbers = #tpu.dot_dimension_numbers<[1], [0], [0], [1], [0, 0, 1, 1], [], []>} : vector<768x4xbf16>, vector<4x4xbf16>, vector<768x4xf32> -> vector<768x4xf32>
    %60 = arith.addf %46, %59 : vector<768x4xf32>
    %c8 = arith.constant 8 : index
    %c0_62 = arith.constant 0 : index
    %c0_63 = arith.constant 0 : index
    %61 = vector.load %arg5[%c8, %c0_62, %c0_63] : memref<9x4x4xbf16, #tpu.memory_space<vmem>>, vector<1x4x4xbf16>
    %62 = vector.shape_cast %61 : vector<1x4x4xbf16> to vector<4x4xbf16>
    %cst_64 = arith.constant dense<0.000000e+00> : vector<768x4xf32>
    %63 = tpu.matmul %52, %62, %cst_64 {dimension_numbers = #tpu.dot_dimension_numbers<[1], [0], [0], [1], [0, 0, 1, 1], [], []>} : vector<768x4xbf16>, vector<4x4xbf16>, vector<768x4xf32> -> vector<768x4xf32>
    %64 = arith.addf %50, %63 : vector<768x4xf32>
    %65 = vector.shape_cast %56 : vector<768x4xf32> to vector<16x48x4xf32>
    %66 = vector.extract_strided_slice %65 {offsets = [0, 13, 0], sizes = [16, 16, 4], strides = [1, 1, 1]} : vector<16x48x4xf32> to vector<16x16x4xf32>
    %67 = vector.shape_cast %60 : vector<768x4xf32> to vector<16x48x4xf32>
    %68 = vector.extract_strided_slice %67 {offsets = [0, 16, 0], sizes = [16, 16, 4], strides = [1, 1, 1]} : vector<16x48x4xf32> to vector<16x16x4xf32>
    %69 = arith.addf %66, %68 : vector<16x16x4xf32>
    %70 = vector.shape_cast %64 : vector<768x4xf32> to vector<16x48x4xf32>
    %71 = vector.extract_strided_slice %70 {offsets = [0, 19, 0], sizes = [16, 16, 4], strides = [1, 1, 1]} : vector<16x48x4xf32> to vector<16x16x4xf32>
    %72 = arith.addf %69, %71 : vector<16x16x4xf32>
    %73 = vector.shape_cast %72 : vector<16x16x4xf32> to vector<256x4xf32>
    %c0_65 = arith.constant 0 : index
    %c0_66 = arith.constant 0 : index
    %74 = vector.load %arg6[%c0_65, %c0_66] : memref<1x4xf32, #tpu.memory_space<vmem>>, vector<1x4xf32>
    %75 = vector.broadcast %74 : vector<1x4xf32> to vector<256x4xf32>
    %76 = arith.mulf %73, %75 : vector<256x4xf32>
    %c0_67 = arith.constant 0 : index
    %c0_68 = arith.constant 0 : index
    %77 = vector.load %arg7[%c0_67, %c0_68] : memref<1x4xf32, #tpu.memory_space<vmem>>, vector<1x4xf32>
    %78 = vector.broadcast %77 : vector<1x4xf32> to vector<256x4xf32>
    %79 = arith.addf %76, %78 : vector<256x4xf32>
    %cst_69 = arith.constant 0.000000e+00 : f32
    %80 = vector.broadcast %cst_69 : f32 to vector<256x4xf32>
    %81 = arith.maximumf %79, %80 : vector<256x4xf32>
    %82 = arith.truncf %81 : vector<256x4xf32> to vector<256x4xbf16>
    %c0_70 = arith.constant 0 : index
    %c0_71 = arith.constant 0 : index
    %c4_72 = arith.constant 4 : index
    %83 = vector.load %arg8[%c0_70, %c0_71, %c4_72] : memref<1x256x8xbf16, #tpu.memory_space<vmem>>, vector<1x256x4xbf16>
    %84 = vector.shape_cast %83 : vector<1x256x4xbf16> to vector<256x4xbf16>
    %85 = vector.shape_cast %82 : vector<256x4xbf16> to vector<1x256x4xbf16>
    tpu.vector_store %arg8[%c0_70, %c0_71, %c4_72], %85 {strides = array<i32>} : memref<1x256x8xbf16, #tpu.memory_space<vmem>>, vector<1x256x4xbf16>,
    return
  }
  func.func @transform_0(%arg0: i32) -> (i32, i32, i32) {
    %c0_i32 = arith.constant 0 : i32
    %c0_i32_0 = arith.constant 0 : i32
    %c0_i32_1 = arith.constant 0 : i32
    return %arg0, %c0_i32, %c0_i32_0 : i32, i32, i32
  }
  func.func @transform_1(%arg0: i32) -> (i32, i32) {
    %c0_i32 = arith.constant 0 : i32
    %c0_i32_0 = arith.constant 0 : i32
    %c0_i32_1 = arith.constant 0 : i32
    return %c0_i32, %c0_i32_0 : i32, i32
  }
  func.func @transform_2(%arg0: i32) -> (i32, i32) {
    %c0_i32 = arith.constant 0 : i32
    %c0_i32_0 = arith.constant 0 : i32
    %c0_i32_1 = arith.constant 0 : i32
    return %c0_i32, %c0_i32_0 : i32, i32
  }
  func.func @transform_3(%arg0: i32) -> (i32, i32) {
    %c0_i32 = arith.constant 0 : i32
    %c0_i32_0 = arith.constant 0 : i32
    %c0_i32_1 = arith.constant 0 : i32
    return %c0_i32, %c0_i32_0 : i32, i32
  }
  func.func @transform_4(%arg0: i32) -> (i32, i32, i32) {
    %c0_i32 = arith.constant 0 : i32
    %c0_i32_0 = arith.constant 0 : i32
    %c0_i32_1 = arith.constant 0 : i32
    %c0_i32_2 = arith.constant 0 : i32
    return %c0_i32, %c0_i32_0, %c0_i32_1 : i32, i32, i32
  }
  func.func @transform_5(%arg0: i32) -> (i32, i32) {
    %c0_i32 = arith.constant 0 : i32
    %c0_i32_0 = arith.constant 0 : i32
    %c0_i32_1 = arith.constant 0 : i32
    return %c0_i32, %c0_i32_0 : i32, i32
  }
  func.func @transform_6(%arg0: i32) -> (i32, i32) {
    %c0_i32 = arith.constant 0 : i32
    %c0_i32_0 = arith.constant 0 : i32
    %c0_i32_1 = arith.constant 0 : i32
    return %c0_i32, %c0_i32_0 : i32, i32
  }
  func.func @transform_7(%arg0: i32) -> (i32, i32, i32) {
    %c0_i32 = arith.constant 0 : i32
    %c0_i32_0 = arith.constant 0 : i32
    %c0_i32_1 = arith.constant 0 : i32
    return %arg0, %c0_i32, %c0_i32_0 : i32, i32, i32
  }
}

</mosaic_0001>

<llo_original>
// kernel: msdconv_forward.1
$region0: #{msdconv_forward.1}
  #allocation0 [shape = 'u32[]', space=smem, size = 0x4, offset = 0x4, fixed_abs, tag = 'smem constant byte address 0x4 - core index']
  #allocation1 [shape = 'u32[72,128]{1,0:T(1,128)}', space=vmem, size = 0x9000, scoped, tag = 'internal scratch']
  #allocation2 [shape = 'bf16[22,48,4]{2,1,0:T(8,128)(2,1)}', space=vmem, size = 0x42000, scoped, tag = 'scratch operand']
  %s0 = inlined_call_operand.vmem [shape: bf16[2,256,4], index: 0, kind: input, shape index: {}]
  %s1 = inlined_call_operand.vmem [shape: bf16[4,4], index: 1, kind: input, shape index: {}]
  %s2 = inlined_call_operand.vmem [shape: f32[1,4], index: 2, kind: input, shape index: {}, may-alias: {2,5}]
  %s3 = inlined_call_operand.vmem [shape: f32[1,4], index: 3, kind: input, shape index: {}, may-alias: {3,6}]
  %s4 = inlined_call_operand.vmem [shape: bf16[9,4,4], index: 4, kind: input, shape index: {}]
  %s5 = inlined_call_operand.vmem [shape: f32[1,4], index: 5, kind: input, shape index: {}, may-alias: {2,5}]
  %s6 = inlined_call_operand.vmem [shape: f32[1,4], index: 6, kind: input, shape index: {}, may-alias: {3,6}]
  %s7 = inlined_call_operand.vmem [shape: bf16[2,256,8], index: 7, kind: output, shape index: {}]
  %s8 = sld [smem:[#allocation0]]
  $region61: #{msdconv_forward.1} parent=0
    _
  %s10 = ssub.s32 1, %s8
  %s11 = scalar_select 0, %s10, %s8
  loop: start=0, step=1, limit=4
  $region2: #{msdconv_forward.1} parent=0 // loop_pre_header
    _
  $region3: #{msdconv_forward.1} parent=0 // loop_header
    %s13 = sphi 0, %s17
    %p14 = scmp.ge.s32.totalorder %s13, 4
    %s23 = sphi 0, %s25
    %s26 = sphi 0, %s23
    %s27 = sphi 0, %s26
    %s43 = sphi 0, %s27
    %s47 = sphi 0, %s47
    %s49 = sphi 0, %s47
    %s50 = sphi 0, %s49
    %s64 = sphi 0, %s50
    %s68 = sphi 0, %s68
    %s70 = sphi 0, %s68
    %s71 = sphi 0, %s70
    %s85 = sphi 0, %s71
    %s89 = sphi 0, %s89
    %s91 = sphi 0, %s89
    %s92 = sphi 0, %s91
    %s106 = sphi 0, %s92
    %s110 = sphi 0, %s110
    %s112 = sphi 0, %s110
    %s113 = sphi 0, %s112
    %s127 = sphi 0, %s113
    %s131 = sphi 0, %s131
    %s133 = sphi 0, %s131
    %s134 = sphi 0, %s133
    %s148 = sphi 0, %s134
    %s152 = sphi 0, %s152
    %s154 = sphi 0, %s152
    %s155 = sphi 0, %s154
    %s169 = sphi 0, %s155
    %s175 = sphi 0, %s177
    %s178 = sphi 0, %s175
    %s179 = sphi 0, %s178
    %s195 = sphi 0, %s179
  $region4: #{msdconv_forward.1} parent=0 // loop_header_branch
    %16 = sbr.rel (%p14) target = $region8
  $region5: #{msdconv_forward.1} parent=0 // loop_body
    %s18 = ssub.s32 %s13, 1
    %s19 = ssub.s32 %s13, 2
    %s20 = sadd.s32 %s13, 1
    %s21 = ssub.s32 %s13, %s20
    %p22 = scmp.eq.s32.totalorder %s21, 0
    %s24 = sadd.s32 %s23, 1
    %s25 = scalar_select %p22, %s23, %s24
    %p28 = pneg %p22
    %p29 = scmp.eq.s32.totalorder %s13, 1
    %p30 = por %p28, %p29
    %p31 = scmp.ne.s32.totalorder %s23, %s26
    %p32 = scmp.eq.s32.totalorder %s13, 0
    %p33 = por %p31, %p32
    %p34 = scmp.ne.s32.totalorder %s23, %s26
    %p35 = scmp.eq.s32.totalorder %s18, 1
    %p36 = por %p34, %p35
    %p37 = scmp.ne.s32.totalorder %s26, %s27
    %p38 = scmp.eq.s32.totalorder %s18, 0
    %p39 = por %p37, %p38
    %p40 = scmp.ne.s32.totalorder %s26, %s27
    %p41 = scmp.eq.s32.totalorder %s19, 1
    %p42 = por %p40, %p41
    %p44 = scmp.ne.s32.totalorder %s27, %s43
    %p45 = scmp.eq.s32.totalorder %s19, 0
    %p46 = por %p44, %p45
    %s48 = sadd.s32 %s47, 1
    %p51 = scmp.eq.s32.totalorder %s13, 1
    %p52 = scmp.ne.s32.totalorder %s47, %s49
    %p53 = scmp.eq.s32.totalorder %s13, 0
    %p54 = por %p52, %p53
    %p55 = scmp.ne.s32.totalorder %s47, %s49
    %p56 = scmp.eq.s32.totalorder %s18, 1
    %p57 = por %p55, %p56
    %p58 = scmp.ne.s32.totalorder %s49, %s50
    %p59 = scmp.eq.s32.totalorder %s18, 0
    %p60 = por %p58, %p59
    %p61 = scmp.ne.s32.totalorder %s49, %s50
    %p62 = scmp.eq.s32.totalorder %s19, 1
    %p63 = por %p61, %p62
    %p65 = scmp.ne.s32.totalorder %s50, %s64
    %p66 = scmp.eq.s32.totalorder %s19, 0
    %p67 = por %p65, %p66
    %s69 = sadd.s32 %s68, 1
    %p72 = scmp.eq.s32.totalorder %s13, 1
    %p73 = scmp.ne.s32.totalorder %s68, %s70
    %p74 = scmp.eq.s32.totalorder %s13, 0
    %p75 = por %p73, %p74
    %p76 = scmp.ne.s32.totalorder %s68, %s70
    %p77 = scmp.eq.s32.totalorder %s18, 1
    %p78 = por %p76, %p77
    %p79 = scmp.ne.s32.totalorder %s70, %s71
    %p80 = scmp.eq.s32.totalorder %s18, 0
    %p81 = por %p79, %p80
    %p82 = scmp.ne.s32.totalorder %s70, %s71
    %p83 = scmp.eq.s32.totalorder %s19, 1
    %p84 = por %p82, %p83
    %p86 = scmp.ne.s32.totalorder %s71, %s85
    %p87 = scmp.eq.s32.totalorder %s19, 0
    %p88 = por %p86, %p87
    %s90 = sadd.s32 %s89, 1
    %p93 = scmp.eq.s32.totalorder %s13, 1
    %p94 = scmp.ne.s32.totalorder %s89, %s91
    %p95 = scmp.eq.s32.totalorder %s13, 0
    %p96 = por %p94, %p95
    %p97 = scmp.ne.s32.totalorder %s89, %s91
    %p98 = scmp.eq.s32.totalorder %s18, 1
    %p99 = por %p97, %p98
    %p100 = scmp.ne.s32.totalorder %s91, %s92
    %p101 = scmp.eq.s32.totalorder %s18, 0
    %p102 = por %p100, %p101
    %p103 = scmp.ne.s32.totalorder %s91, %s92
    %p104 = scmp.eq.s32.totalorder %s19, 1
    %p105 = por %p103, %p104
    %p107 = scmp.ne.s32.totalorder %s92, %s106
    %p108 = scmp.eq.s32.totalorder %s19, 0
    %p109 = por %p107, %p108
    %s111 = sadd.s32 %s110, 1
    %p114 = scmp.eq.s32.totalorder %s13, 1
    %p115 = scmp.ne.s32.totalorder %s110, %s112
    %p116 = scmp.eq.s32.totalorder %s13, 0
    %p117 = por %p115, %p116
    %p118 = scmp.ne.s32.totalorder %s110, %s112
    %p119 = scmp.eq.s32.totalorder %s18, 1
    %p120 = por %p118, %p119
    %p121 = scmp.ne.s32.totalorder %s112, %s113
    %p122 = scmp.eq.s32.totalorder %s18, 0
    %p123 = por %p121, %p122
    %p124 = scmp.ne.s32.totalorder %s112, %s113
    %p125 = scmp.eq.s32.totalorder %s19, 1
    %p126 = por %p124, %p125
    %p128 = scmp.ne.s32.totalorder %s113, %s127
    %p129 = scmp.eq.s32.totalorder %s19, 0
    %p130 = por %p128, %p129
    %s132 = sadd.s32 %s131, 1
    %p135 = scmp.eq.s32.totalorder %s13, 1
    %p136 = scmp.ne.s32.totalorder %s131, %s133
    %p137 = scmp.eq.s32.totalorder %s13, 0
    %p138 = por %p136, %p137
    %p139 = scmp.ne.s32.totalorder %s131, %s133
    %p140 = scmp.eq.s32.totalorder %s18, 1
    %p141 = por %p139, %p140
    %p142 = scmp.ne.s32.totalorder %s133, %s134
    %p143 = scmp.eq.s32.totalorder %s18, 0
    %p144 = por %p142, %p143
    %p145 = scmp.ne.s32.totalorder %s133, %s134
    %p146 = scmp.eq.s32.totalorder %s19, 1
    %p147 = por %p145, %p146
    %p149 = scmp.ne.s32.totalorder %s134, %s148
    %p150 = scmp.eq.s32.totalorder %s19, 0
    %p151 = por %p149, %p150
    %s153 = sadd.s32 %s152, 1
    %p156 = scmp.eq.s32.totalorder %s13, 1
    %p157 = scmp.ne.s32.totalorder %s152, %s154
    %p158 = scmp.eq.s32.totalorder %s13, 0
    %p159 = por %p157, %p158
    %p160 = scmp.ne.s32.totalorder %s152, %s154
    %p161 = scmp.eq.s32.totalorder %s18, 1
    %p162 = por %p160, %p161
    %p163 = scmp.ne.s32.totalorder %s154, %s155
    %p164 = scmp.eq.s32.totalorder %s18, 0
    %p165 = por %p163, %p164
    %p166 = scmp.ne.s32.totalorder %s154, %s155
    %p167 = scmp.eq.s32.totalorder %s19, 1
    %p168 = por %p166, %p167
    %p170 = scmp.ne.s32.totalorder %s155, %s169
    %p171 = scmp.eq.s32.totalorder %s19, 0
    %p172 = por %p170, %p171
    %s173 = ssub.s32 %s13, %s20
    %p174 = scmp.eq.s32.totalorder %s173, 0
    %s176 = sadd.s32 %s175, 1
    %s177 = scalar_select %p174, %s175, %s176
    %p180 = pneg %p174
    %p181 = scmp.eq.s32.totalorder %s13, 1
    %p182 = por %p180, %p181
    %p183 = scmp.ne.s32.totalorder %s175, %s178
    %p184 = scmp.eq.s32.totalorder %s13, 0
    %p185 = por %p183, %p184
    %p186 = scmp.ne.s32.totalorder %s175, %s178
    %p187 = scmp.eq.s32.totalorder %s18, 1
    %p188 = por %p186, %p187
    %p189 = scmp.ne.s32.totalorder %s178, %s179
    %p190 = scmp.eq.s32.totalorder %s18, 0
    %p191 = por %p189, %p190
    %p192 = scmp.ne.s32.totalorder %s178, %s179
    %p193 = scmp.eq.s32.totalorder %s19, 1
    %p194 = por %p192, %p193
    %p196 = scmp.ne.s32.totalorder %s179, %s195
    %p197 = scmp.eq.s32.totalorder %s19, 0
    %p198 = por %p196, %p197
    %p199 = scmp.le.s32.totalorder 1, %s13
    %p200 = scmp.lt.s32.totalorder %s13, 3
    %p201 = pnand %p199, %p200
    %p202 = pneg %p201
    // Predicated region
    $region9: #{msdconv_forward.1} parent=5 // pred_check
      _
    $region10: #{msdconv_forward.1} parent=5 // pred_check_branch
      %204 = sbr.rel (%p201) target = $region12
    $region11: #{msdconv_forward.1} parent=5 // pred_region
      %s205 = ssub.s32 %s13, 1
      // Predicated region
      $region13: #{msdconv_forward.1} parent=11 // pred_check
        %p206 = pneg %p60
      $region14: #{msdconv_forward.1} parent=11 // pred_check_branch
        %208 = sbr.rel (%p206) target = $region16
      $region15: #{msdconv_forward.1} parent=11 // pred_region
        _
      $region16: #{msdconv_forward.1} parent=11 // pred_fallthru
        _
      // Predicated region
      $region17: #{msdconv_forward.1} parent=11 // pred_check
        %p209 = pneg %p81
      $region18: #{msdconv_forward.1} parent=11 // pred_check_branch
        %211 = sbr.rel (%p209) target = $region20
      $region19: #{msdconv_forward.1} parent=11 // pred_region
        _
      $region20: #{msdconv_forward.1} parent=11 // pred_fallthru
        _
      // Predicated region
      $region21: #{msdconv_forward.1} parent=11 // pred_check
        %p212 = pneg %p102
      $region22: #{msdconv_forward.1} parent=11 // pred_check_branch
        %214 = sbr.rel (%p212) target = $region24
      $region23: #{msdconv_forward.1} parent=11 // pred_region
        _
      $region24: #{msdconv_forward.1} parent=11 // pred_fallthru
        _
      // Predicated region
      $region25: #{msdconv_forward.1} parent=11 // pred_check
        %p215 = pneg %p123
      $region26: #{msdconv_forward.1} parent=11 // pred_check_branch
        %217 = sbr.rel (%p215) target = $region28
      $region27: #{msdconv_forward.1} parent=11 // pred_region
        _
      $region28: #{msdconv_forward.1} parent=11 // pred_fallthru
        _
      // Predicated region
      $region29: #{msdconv_forward.1} parent=11 // pred_check
        %p218 = pneg %p144
      $region30: #{msdconv_forward.1} parent=11 // pred_check_branch
        %220 = sbr.rel (%p218) target = $region32
      $region31: #{msdconv_forward.1} parent=11 // pred_region
        _
      $region32: #{msdconv_forward.1} parent=11 // pred_fallthru
        _
      // Predicated region
      $region33: #{msdconv_forward.1} parent=11 // pred_check
        %p221 = pneg %p165
      $region34: #{msdconv_forward.1} parent=11 // pred_check_branch
        %223 = sbr.rel (%p221) target = $region36
      $region35: #{msdconv_forward.1} parent=11 // pred_region
        _
      $region36: #{msdconv_forward.1} parent=11 // pred_fallthru
        _
    $region12: #{msdconv_forward.1} parent=5 // pred_fallthru
      _
    %p224 = scmp.lt.s32.totalorder %s13, 2
    // Predicated region
    $region37: #{msdconv_forward.1} parent=5 // pred_check
      %p225 = pneg %p224
    $region38: #{msdconv_forward.1} parent=5 // pred_check_branch
      %227 = sbr.rel (%p225) target = $region40
    $region39: #{msdconv_forward.1} parent=5 // pred_region
      // Predicated region
      $region41: #{msdconv_forward.1} parent=39 // pred_check
        %p228 = pneg %p33
      $region42: #{msdconv_forward.1} parent=39 // pred_check_branch
        %230 = sbr.rel (%p228) target = $region44
      $region43: #{msdconv_forward.1} parent=39 // pred_region
        %p231 = scmp.lt.s32.totalorder %s13, 1
        %s232 = scalar_select %p231, %s13, 1
        %s233 = smul.addr %s232, 32
        %s234 = smul.addr %s233, 4
        %s235 = scalar_lea.vmem %s0, %s234
      $region44: #{msdconv_forward.1} parent=39 // pred_fallthru
        _
    $region40: #{msdconv_forward.1} parent=5 // pred_fallthru
      _
    %p236 = scmp.le.s32.totalorder 1, %s13
    %p237 = scmp.lt.s32.totalorder %s13, 3
    %p238 = pnand %p236, %p237
    %p239 = pneg %p238
    // Predicated region
    $region45: #{msdconv_forward.1} parent=5 // pred_check
      _
    $region46: #{msdconv_forward.1} parent=5 // pred_check_branch
      %241 = sbr.rel (%p238) target = $region48
    $region47: #{msdconv_forward.1} parent=5 // pred_region
      %s242 = ssub.s32 %s13, 1
      %p243 = scmp.lt.s32.totalorder %s18, 1
      %s244 = scalar_select %p243, %s18, 1
      %s245 = smul.addr %s244, 32
      %s246 = smul.addr %s245, 4
      %s247 = scalar_lea.vmem %s0, %s246
      %p248 = pneg %p39
      %p249 = pneg %p36
      %p250 = pneg %p60
      %p251 = pneg %p57
      %p252 = pneg %p81
      %p253 = pneg %p78
      %p254 = pneg %p102
      %p255 = pneg %p99
      %p256 = pneg %p123
      %p257 = pneg %p120
      %p258 = pneg %p144
      %p259 = pneg %p141
      %p260 = pneg %p165
      %p261 = pneg %p162
      %p262 = pneg %p191
      %p263 = pneg %p188
      %p264 = scmp.lt.s32.totalorder %s18, 1
      %s265 = scalar_select %p264, %s18, 1
      %s266 = smul.addr %s265, 32
      %s267 = smul.addr %s266, 4
      %s268 = scalar_lea.vmem %s7, %s267
      %p269 = scmp.lt.s32.totalorder %s18, 1
      %s270 = scalar_select %p269, %s18, 1
      %s271 = smul.addr %s270, 32
      %s272 = smul.addr %s271, 4
      %s273 = scalar_lea.vmem %s0, %s272
      %p274 = scmp.lt.s32.totalorder %s18, 1
      %s275 = scalar_select %p274, %s18, 1
      %s276 = smul.addr %s275, 32
      %s277 = smul.addr %s276, 4
      %s278 = scalar_lea.vmem %s7, %s277
      %v280 = vld [vmem:[%s273] sm:$0xf]
      %v281 = vld [vmem:[%s273 + $0x4] sm:$0xf]
      %v282 = vld [vmem:[%s273 + $0x8] sm:$0xf]
      %v283 = vld [vmem:[%s273 + $0xc] sm:$0xf]
      %v284 = vld [vmem:[%s273 + $0x10] sm:$0xf]
      %v285 = vld [vmem:[%s273 + $0x14] sm:$0xf]
      %v286 = vld [vmem:[%s273 + $0x18] sm:$0xf]
      %v287 = vld [vmem:[%s273 + $0x1c] sm:$0xf]
      %v288 = vld [vmem:[%s273 + $0x20] sm:$0xf]
      %v289 = vld [vmem:[%s273 + $0x24] sm:$0xf]
      %v290 = vld [vmem:[%s273 + $0x28] sm:$0xf]
      %v291 = vld [vmem:[%s273 + $0x2c] sm:$0xf]
      %v292 = vld [vmem:[%s273 + $0x30] sm:$0xf]
      %v293 = vld [vmem:[%s273 + $0x34] sm:$0xf]
      %v294 = vld [vmem:[%s273 + $0x38] sm:$0xf]
      %v295 = vld [vmem:[%s273 + $0x3c] sm:$0xf]
      %v296 = vld [vmem:[%s273 + $0x40] sm:$0xf]
      %v297 = vld [vmem:[%s273 + $0x44] sm:$0xf]
      %v298 = vld [vmem:[%s273 + $0x48] sm:$0xf]
      %v299 = vld [vmem:[%s273 + $0x4c] sm:$0xf]
      %v300 = vld [vmem:[%s273 + $0x50] sm:$0xf]
      %v301 = vld [vmem:[%s273 + $0x54] sm:$0xf]
      %v302 = vld [vmem:[%s273 + $0x58] sm:$0xf]
      %v303 = vld [vmem:[%s273 + $0x5c] sm:$0xf]
      %v304 = vld [vmem:[%s273 + $0x60] sm:$0xf]
      %v305 = vld [vmem:[%s273 + $0x64] sm:$0xf]
      %v306 = vld [vmem:[%s273 + $0x68] sm:$0xf]
      %v307 = vld [vmem:[%s273 + $0x6c] sm:$0xf]
      %v308 = vld [vmem:[%s273 + $0x70] sm:$0xf]
      %v309 = vld [vmem:[%s273 + $0x74] sm:$0xf]
      %v310 = vld [vmem:[%s273 + $0x78] sm:$0xf]
      %v311 = vld [vmem:[%s273 + $0x7c] sm:$0xf]
      %v312 = vld [vmem:[%s1] sm:$0x3]
      %v345 = vunpack.c.l.b16 %v280
      %v346 = vunpack.c.l.b16 %v281
      %v347 = vunpack.c.l.b16 %v282
      %v348 = vunpack.c.l.b16 %v283
      %v349 = vunpack.c.l.b16 %v284
      %v350 = vunpack.c.l.b16 %v285
      %v351 = vunpack.c.l.b16 %v286
      %v352 = vunpack.c.l.b16 %v287
      %v353 = vunpack.c.l.b16 %v288
      %v354 = vunpack.c.l.b16 %v289
      %v355 = vunpack.c.l.b16 %v290
      %v356 = vunpack.c.l.b16 %v291
      %v357 = vunpack.c.l.b16 %v292
      %v358 = vunpack.c.l.b16 %v293
      %v359 = vunpack.c.l.b16 %v294
      %v360 = vunpack.c.l.b16 %v295
      %v361 = vunpack.c.l.b16 %v296
      %v362 = vunpack.c.l.b16 %v297
      %v363 = vunpack.c.l.b16 %v298
      %v364 = vunpack.c.l.b16 %v299
      %v365 = vunpack.c.l.b16 %v300
      %v366 = vunpack.c.l.b16 %v301
      %v367 = vunpack.c.l.b16 %v302
      %v368 = vunpack.c.l.b16 %v303
      %v369 = vunpack.c.l.b16 %v304
      %v370 = vunpack.c.l.b16 %v305
      %v371 = vunpack.c.l.b16 %v306
      %v372 = vunpack.c.l.b16 %v307
      %v373 = vunpack.c.l.b16 %v308
      %v374 = vunpack.c.l.b16 %v309
      %v375 = vunpack.c.l.b16 %v310
      %v376 = vunpack.c.l.b16 %v311
      %v377 = vpack.c.b16 %v346, %v345
      %v378 = vpack.c.b16 %v348, %v347
      %v379 = vpack.c.b16 %v350, %v349
      %v380 = vpack.c.b16 %v352, %v351
      %v381 = vpack.c.b16 %v354, %v353
      %v382 = vpack.c.b16 %v356, %v355
      %v383 = vpack.c.b16 %v358, %v357
      %v384 = vpack.c.b16 %v360, %v359
      %v385 = vpack.c.b16 %v362, %v361
      %v386 = vpack.c.b16 %v364, %v363
      %v387 = vpack.c.b16 %v366, %v365
      %v388 = vpack.c.b16 %v368, %v367
      %v389 = vpack.c.b16 %v370, %v369
      %v390 = vpack.c.b16 %v372, %v371
      %v391 = vpack.c.b16 %v374, %v373
      %v392 = vpack.c.b16 %v376, %v375
      %vm393 = vcmask 31744
      %v395 = vsel %vm393, %v377, 0
      %v398 = vsel %vm393, %v378, 0
      %v401 = vsel %vm393, %v379, 0
      %v404 = vsel %vm393, %v380, 0
      %v407 = vsel %vm393, %v381, 0
      %v410 = vsel %vm393, %v382, 0
      %v413 = vsel %vm393, %v383, 0
      %v416 = vsel %vm393, %v384, 0
      %v419 = vsel %vm393, %v385, 0
      %v422 = vsel %vm393, %v386, 0
      %v425 = vsel %vm393, %v387, 0
      %v428 = vsel %vm393, %v388, 0
      %v431 = vsel %vm393, %v389, 0
      %v434 = vsel %vm393, %v390, 0
      %v437 = vsel %vm393, %v391, 0
      %v440 = vsel %vm393, %v392, 0
      %vm442 = vcmask 1041408
      %v444 = vsel %vm442, %v312, 0
      %446 = vmatpush.bf16.msra.mxu0 0
      %447 = vmatpush.bf16.msra.mxu0 0
      %448 = vmatpush.bf16.msra.mxu0 0
      %449 = vmatpush.bf16.msra.mxu0 0
      %450 = vmatpush.bf16.msra.mxu0 0
      %451 = vmatpush.bf16.msra.mxu0 0
      %452 = vmatpush.bf16.msra.mxu0 0
      %453 = vmatpush.bf16.msra.mxu0 %v444
      %454 = vmatmul.bf16.gmra.mxu0 %v395
      %v455 = vpop.f32.mrf.mxu0
      %v456 = vadd.f32 0.0, %v455
      %v457 = vpop.f32.mrf.mxu0
      %v458 = vadd.f32 0.0, %v457
      %459 = vmatmul.bf16.gmra.mxu0 %v398
      %v460 = vpop.f32.mrf.mxu0
      %v461 = vadd.f32 0.0, %v460
      %v462 = vpop.f32.mrf.mxu0
      %v463 = vadd.f32 0.0, %v462
      %464 = vmatmul.bf16.gmra.mxu0 %v401
      %v465 = vpop.f32.mrf.mxu0
      %v466 = vadd.f32 0.0, %v465
      %v467 = vpop.f32.mrf.mxu0
      %v468 = vadd.f32 0.0, %v467
      %469 = vmatmul.bf16.gmra.mxu0 %v404
      %v470 = vpop.f32.mrf.mxu0
      %v471 = vadd.f32 0.0, %v470
      %v472 = vpop.f32.mrf.mxu0
      %v473 = vadd.f32 0.0, %v472
      %474 = vmatmul.bf16.gmra.mxu0 %v407
      %v475 = vpop.f32.mrf.mxu0
      %v476 = vadd.f32 0.0, %v475
      %v477 = vpop.f32.mrf.mxu0
      %v478 = vadd.f32 0.0, %v477
      %479 = vmatmul.bf16.gmra.mxu0 %v410
      %v480 = vpop.f32.mrf.mxu0
      %v481 = vadd.f32 0.0, %v480
      %v482 = vpop.f32.mrf.mxu0
      %v483 = vadd.f32 0.0, %v482
      %484 = vmatmul.bf16.gmra.mxu0 %v413
      %v485 = vpop.f32.mrf.mxu0
      %v486 = vadd.f32 0.0, %v485
      %v487 = vpop.f32.mrf.mxu0
      %v488 = vadd.f32 0.0, %v487
      %489 = vmatmul.bf16.gmra.mxu0 %v416
      %v490 = vpop.f32.mrf.mxu0
      %v491 = vadd.f32 0.0, %v490
      %v492 = vpop.f32.mrf.mxu0
      %v493 = vadd.f32 0.0, %v492
      %494 = vmatmul.bf16.gmra.mxu0 %v419
      %v495 = vpop.f32.mrf.mxu0
      %v496 = vadd.f32 0.0, %v495
      %v497 = vpop.f32.mrf.mxu0
      %v498 = vadd.f32 0.0, %v497
      %499 = vmatmul.bf16.gmra.mxu0 %v422
      %v500 = vpop.f32.mrf.mxu0
      %v501 = vadd.f32 0.0, %v500
      %v502 = vpop.f32.mrf.mxu0
      %v503 = vadd.f32 0.0, %v502
      %504 = vmatmul.bf16.gmra.mxu0 %v425
      %v505 = vpop.f32.mrf.mxu0
      %v506 = vadd.f32 0.0, %v505
      %v507 = vpop.f32.mrf.mxu0
      %v508 = vadd.f32 0.0, %v507
      %509 = vmatmul.bf16.gmra.mxu0 %v428
      %v510 = vpop.f32.mrf.mxu0
      %v511 = vadd.f32 0.0, %v510
      %v512 = vpop.f32.mrf.mxu0
      %v513 = vadd.f32 0.0, %v512
      %514 = vmatmul.bf16.gmra.mxu0 %v431
      %v515 = vpop.f32.mrf.mxu0
      %v516 = vadd.f32 0.0, %v515
      %v517 = vpop.f32.mrf.mxu0
      %v518 = vadd.f32 0.0, %v517
      %519 = vmatmul.bf16.gmra.mxu0 %v434
      %v520 = vpop.f32.mrf.mxu0
      %v521 = vadd.f32 0.0, %v520
      %v522 = vpop.f32.mrf.mxu0
      %v523 = vadd.f32 0.0, %v522
      %524 = vmatmul.bf16.gmra.mxu0 %v437
      %v525 = vpop.f32.mrf.mxu0
      %v526 = vadd.f32 0.0, %v525
      %v527 = vpop.f32.mrf.mxu0
      %v528 = vadd.f32 0.0, %v527
      %529 = vmatmul.bf16.gmra.mxu0 %v440
      %v530 = vpop.f32.mrf.mxu0
      %v531 = vadd.f32 0.0, %v530
      %v532 = vpop.f32.mrf.mxu0
      %v533 = vadd.f32 0.0, %v532
      %534 = vdwg.mxu0
      %v535 = vld [vmem:[%s2] sm:$0x1]
      %v537 = vperm.slane %v535, 0
      %v539 = vmul.f32 %v456, %v537
      %v540 = vmul.f32 %v458, %v537
      %v541 = vmul.f32 %v461, %v537
      %v542 = vmul.f32 %v463, %v537
      %v543 = vmul.f32 %v466, %v537
      %v544 = vmul.f32 %v468, %v537
      %v545 = vmul.f32 %v471, %v537
      %v546 = vmul.f32 %v473, %v537
      %v547 = vmul.f32 %v476, %v537
      %v548 = vmul.f32 %v478, %v537
      %v549 = vmul.f32 %v481, %v537
      %v550 = vmul.f32 %v483, %v537
      %v551 = vmul.f32 %v486, %v537
      %v552 = vmul.f32 %v488, %v537
      %v553 = vmul.f32 %v491, %v537
      %v554 = vmul.f32 %v493, %v537
      %v555 = vmul.f32 %v496, %v537
      %v556 = vmul.f32 %v498, %v537
      %v557 = vmul.f32 %v501, %v537
      %v558 = vmul.f32 %v503, %v537
      %v559 = vmul.f32 %v506, %v537
      %v560 = vmul.f32 %v508, %v537
      %v561 = vmul.f32 %v511, %v537
      %v562 = vmul.f32 %v513, %v537
      %v563 = vmul.f32 %v516, %v537
      %v564 = vmul.f32 %v518, %v537
      %v565 = vmul.f32 %v521, %v537
      %v566 = vmul.f32 %v523, %v537
      %v567 = vmul.f32 %v526, %v537
      %v568 = vmul.f32 %v528, %v537
      %v569 = vmul.f32 %v531, %v537
      %v570 = vmul.f32 %v533, %v537
      %v571 = vld [vmem:[%s3] sm:$0x1]
      %v573 = vperm.slane %v571, 0
      %v575 = vadd.f32 %v539, %v573
      %v576 = vadd.f32 %v540, %v573
      %v577 = vadd.f32 %v541, %v573
      %v578 = vadd.f32 %v542, %v573
      %v579 = vadd.f32 %v543, %v573
      %v580 = vadd.f32 %v544, %v573
      %v581 = vadd.f32 %v545, %v573
      %v582 = vadd.f32 %v546, %v573
      %v583 = vadd.f32 %v547, %v573
      %v584 = vadd.f32 %v548, %v573
      %v585 = vadd.f32 %v549, %v573
      %v586 = vadd.f32 %v550, %v573
      %v587 = vadd.f32 %v551, %v573
      %v588 = vadd.f32 %v552, %v573
      %v589 = vadd.f32 %v553, %v573
      %v590 = vadd.f32 %v554, %v573
      %v591 = vadd.f32 %v555, %v573
      %v592 = vadd.f32 %v556, %v573
      %v593 = vadd.f32 %v557, %v573
      %v594 = vadd.f32 %v558, %v573
      %v595 = vadd.f32 %v559, %v573
      %v596 = vadd.f32 %v560, %v573
      %v597 = vadd.f32 %v561, %v573
      %v598 = vadd.f32 %v562, %v573
      %v599 = vadd.f32 %v563, %v573
      %v600 = vadd.f32 %v564, %v573
      %v601 = vadd.f32 %v565, %v573
      %v602 = vadd.f32 %v566, %v573
      %v603 = vadd.f32 %v567, %v573
      %v604 = vadd.f32 %v568, %v573
      %v605 = vadd.f32 %v569, %v573
      %v606 = vadd.f32 %v570, %v573
      %v607 = vmax.f32 %v575, 0.0
      %v608 = vmax.f32 %v576, 0.0
      %v609 = vmax.f32 %v577, 0.0
      %v610 = vmax.f32 %v578, 0.0
      %v611 = vmax.f32 %v579, 0.0
      %v612 = vmax.f32 %v580, 0.0
      %v613 = vmax.f32 %v581, 0.0
      %v614 = vmax.f32 %v582, 0.0
      %v615 = vmax.f32 %v583, 0.0
      %v616 = vmax.f32 %v584, 0.0
      %v617 = vmax.f32 %v585, 0.0
      %v618 = vmax.f32 %v586, 0.0
      %v619 = vmax.f32 %v587, 0.0
      %v620 = vmax.f32 %v588, 0.0
      %v621 = vmax.f32 %v589, 0.0
      %v622 = vmax.f32 %v590, 0.0
      %v623 = vmax.f32 %v591, 0.0
      %v624 = vmax.f32 %v592, 0.0
      %v625 = vmax.f32 %v593, 0.0
      %v626 = vmax.f32 %v594, 0.0
      %v627 = vmax.f32 %v595, 0.0
      %v628 = vmax.f32 %v596, 0.0
      %v629 = vmax.f32 %v597, 0.0
      %v630 = vmax.f32 %v598, 0.0
      %v631 = vmax.f32 %v599, 0.0
      %v632 = vmax.f32 %v600, 0.0
      %v633 = vmax.f32 %v601, 0.0
      %v634 = vmax.f32 %v602, 0.0
      %v635 = vmax.f32 %v603, 0.0
      %v636 = vmax.f32 %v604, 0.0
      %v637 = vmax.f32 %v605, 0.0
      %v638 = vmax.f32 %v606, 0.0
      %v639 = vpack.c.bf16 %v607, %v607
      %v640 = vpack.c.bf16 %v608, %v608
      %v641 = vpack.c.bf16 %v609, %v609
      %v642 = vpack.c.bf16 %v610, %v610
      %v643 = vpack.c.bf16 %v611, %v611
      %v644 = vpack.c.bf16 %v612, %v612
      %v645 = vpack.c.bf16 %v613, %v613
      %v646 = vpack.c.bf16 %v614, %v614
      %v647 = vpack.c.bf16 %v615, %v615
      %v648 = vpack.c.bf16 %v616, %v616
      %v649 = vpack.c.bf16 %v617, %v617
      %v650 = vpack.c.bf16 %v618, %v618
      %v651 = vpack.c.bf16 %v619, %v619
      %v652 = vpack.c.bf16 %v620, %v620
      %v653 = vpack.c.bf16 %v621, %v621
      %v654 = vpack.c.bf16 %v622, %v622
      %v655 = vpack.c.bf16 %v623, %v623
      %v656 = vpack.c.bf16 %v624, %v624
      %v657 = vpack.c.bf16 %v625, %v625
      %v658 = vpack.c.bf16 %v626, %v626
      %v659 = vpack.c.bf16 %v627, %v627
      %v660 = vpack.c.bf16 %v628, %v628
      %v661 = vpack.c.bf16 %v629, %v629
      %v662 = vpack.c.bf16 %v630, %v630
      %v663 = vpack.c.bf16 %v631, %v631
      %v664 = vpack.c.bf16 %v632, %v632
      %v665 = vpack.c.bf16 %v633, %v633
      %v666 = vpack.c.bf16 %v634, %v634
      %v667 = vpack.c.bf16 %v635, %v635
      %v668 = vpack.c.bf16 %v636, %v636
      %v669 = vpack.c.bf16 %v637, %v637
      %v670 = vpack.c.bf16 %v638, %v638
      %vm671 = vcmask 27648
      %672 = vst.msk [vmem:[%s278] sm:$0xf] %vm671, %v639
      %673 = vst.msk [vmem:[%s278 + $0x4] sm:$0xf] %vm671, %v640
      %674 = vst.msk [vmem:[%s278 + $0x8] sm:$0xf] %vm671, %v641
      %675 = vst.msk [vmem:[%s278 + $0xc] sm:$0xf] %vm671, %v642
      %676 = vst.msk [vmem:[%s278 + $0x10] sm:$0xf] %vm671, %v643
      %677 = vst.msk [vmem:[%s278 + $0x14] sm:$0xf] %vm671, %v644
      %678 = vst.msk [vmem:[%s278 + $0x18] sm:$0xf] %vm671, %v645
      %679 = vst.msk [vmem:[%s278 + $0x1c] sm:$0xf] %vm671, %v646
      %680 = vst.msk [vmem:[%s278 + $0x20] sm:$0xf] %vm671, %v647
      %681 = vst.msk [vmem:[%s278 + $0x24] sm:$0xf] %vm671, %v648
      %682 = vst.msk [vmem:[%s278 + $0x28] sm:$0xf] %vm671, %v649
      %683 = vst.msk [vmem:[%s278 + $0x2c] sm:$0xf] %vm671, %v650
      %684 = vst.msk [vmem:[%s278 + $0x30] sm:$0xf] %vm671, %v651
      %685 = vst.msk [vmem:[%s278 + $0x34] sm:$0xf] %vm671, %v652
      %686 = vst.msk [vmem:[%s278 + $0x38] sm:$0xf] %vm671, %v653
      %687 = vst.msk [vmem:[%s278 + $0x3c] sm:$0xf] %vm671, %v654
      %688 = vst.msk [vmem:[%s278 + $0x40] sm:$0xf] %vm671, %v655
      %689 = vst.msk [vmem:[%s278 + $0x44] sm:$0xf] %vm671, %v656
      %690 = vst.msk [vmem:[%s278 + $0x48] sm:$0xf] %vm671, %v657
      %691 = vst.msk [vmem:[%s278 + $0x4c] sm:$0xf] %vm671, %v658
      %692 = vst.msk [vmem:[%s278 + $0x50] sm:$0xf] %vm671, %v659
      %693 = vst.msk [vmem:[%s278 + $0x54] sm:$0xf] %vm671, %v660
      %694 = vst.msk [vmem:[%s278 + $0x58] sm:$0xf] %vm671, %v661
      %695 = vst.msk [vmem:[%s278 + $0x5c] sm:$0xf] %vm671, %v662
      %696 = vst.msk [vmem:[%s278 + $0x60] sm:$0xf] %vm671, %v663
      %697 = vst.msk [vmem:[%s278 + $0x64] sm:$0xf] %vm671, %v664
      %698 = vst.msk [vmem:[%s278 + $0x68] sm:$0xf] %vm671, %v665
      %699 = vst.msk [vmem:[%s278 + $0x6c] sm:$0xf] %vm671, %v666
      %700 = vst.msk [vmem:[%s278 + $0x70] sm:$0xf] %vm671, %v667
      %701 = vst.msk [vmem:[%s278 + $0x74] sm:$0xf] %vm671, %v668
      %702 = vst.msk [vmem:[%s278 + $0x78] sm:$0xf] %vm671, %v669
      %703 = vst.msk [vmem:[%s278 + $0x7c] sm:$0xf] %vm671, %v670
      %704 = vst.msk [vmem:[#allocation2] sm:$0xf] %vm671, 0
      %705 = vst.msk [vmem:[#allocation2 + $0x4] sm:$0xf] %vm671, 0
      %706 = vst.msk [vmem:[#allocation2 + $0x8] sm:$0xf] %vm671, 0
      %707 = vst.msk [vmem:[#allocation2 + $0xc] sm:$0xf] %vm671, 0
      %708 = vst.msk [vmem:[#allocation2 + $0x10] sm:$0xf] %vm671, 0
      %709 = vst.msk [vmem:[#allocation2 + $0x14] sm:$0xf] %vm671, 0
      %710 = vst.msk [vmem:[#allocation2 + $0x18] sm:$0xf] %vm671, 0
      %711 = vst.msk [vmem:[#allocation2 + $0x1c] sm:$0xf] %vm671, 0
      %712 = vst.msk [vmem:[#allocation2 + $0x20] sm:$0xf] %vm671, 0
      %713 = vst.msk [vmem:[#allocation2 + $0x24] sm:$0xf] %vm671, 0
      %714 = vst.msk [vmem:[#allocation2 + $0x28] sm:$0xf] %vm671, 0
      %715 = vst.msk [vmem:[#allocation2 + $0x2c] sm:$0xf] %vm671, 0
      %716 = vst.msk [vmem:[#allocation2 + $0x30] sm:$0xf] %vm671, 0
      %717 = vst.msk [vmem:[#allocation2 + $0x34] sm:$0xf] %vm671, 0
      %718 = vst.msk [vmem:[#allocation2 + $0x38] sm:$0xf] %vm671, 0
      %719 = vst.msk [vmem:[#allocation2 + $0x3c] sm:$0xf] %vm671, 0
      %720 = vst.msk [vmem:[#allocation2 + $0x40] sm:$0xf] %vm671, 0
      %721 = vst.msk [vmem:[#allocation2 + $0x44] sm:$0xf] %vm671, 0
      %s722 = scalar_lea.vmem [#allocation2], 456
      %723 = vst.msk [vmem:[%s722] sm:$0xf] %vm671, 0
      %724 = vst.msk [vmem:[%s722 + $0x4] sm:$0xf] %vm671, 0
      %725 = vst.msk [vmem:[%s722 + $0x8] sm:$0xf] %vm671, 0
      %726 = vst.msk [vmem:[%s722 + $0xc] sm:$0xf] %vm671, 0
      %727 = vst.msk [vmem:[%s722 + $0x10] sm:$0xf] %vm671, 0
      %728 = vst.msk [vmem:[%s722 + $0x14] sm:$0xf] %vm671, 0
      %729 = vst.msk [vmem:[%s722 + $0x18] sm:$0xf] %vm671, 0
      %730 = vst.msk [vmem:[%s722 + $0x1c] sm:$0xf] %vm671, 0
      %731 = vst.msk [vmem:[%s722 + $0x20] sm:$0xf] %vm671, 0
      %732 = vst.msk [vmem:[%s722 + $0x24] sm:$0xf] %vm671, 0
      %733 = vst.msk [vmem:[%s722 + $0x28] sm:$0xf] %vm671, 0
      %734 = vst.msk [vmem:[%s722 + $0x2c] sm:$0xf] %vm671, 0
      %735 = vst.msk [vmem:[%s722 + $0x30] sm:$0xf] %vm671, 0
      %736 = vst.msk [vmem:[%s722 + $0x34] sm:$0xf] %vm671, 0
      %737 = vst.msk [vmem:[%s722 + $0x38] sm:$0xf] %vm671, 0
      %738 = vst.msk [vmem:[%s722 + $0x3c] sm:$0xf] %vm671, 0
      %739 = vst.msk [vmem:[%s722 + $0x40] sm:$0xf] %vm671, 0
      %740 = vst.msk [vmem:[%s722 + $0x44] sm:$0xf] %vm671, 0
      %s741 = scalar_lea.vmem [#allocation2], 72
      %742 = vst.msk [vmem:[%s741] sm:$0xf] %vm671, 0
      %743 = vst.msk [vmem:[%s741 + $0x4] sm:$0xf] %vm671, 0
      %744 = vst.msk [vmem:[%s741 + $0x18] sm:$0xf] %vm671, 0
      %745 = vst.msk [vmem:[%s741 + $0x1c] sm:$0xf] %vm671, 0
      %746 = vst.msk [vmem:[%s741 + $0x30] sm:$0xf] %vm671, 0
      %747 = vst.msk [vmem:[%s741 + $0x34] sm:$0xf] %vm671, 0
      %748 = vst.msk [vmem:[%s741 + $0x48] sm:$0xf] %vm671, 0
      %749 = vst.msk [vmem:[%s741 + $0x4c] sm:$0xf] %vm671, 0
      %750 = vst.msk [vmem:[%s741 + $0x60] sm:$0xf] %vm671, 0
      %751 = vst.msk [vmem:[%s741 + $0x64] sm:$0xf] %vm671, 0
      %752 = vst.msk [vmem:[%s741 + $0x78] sm:$0xf] %vm671, 0
      %753 = vst.msk [vmem:[%s741 + $0x7c] sm:$0xf] %vm671, 0
      %754 = vst.msk [vmem:[%s741 + $0x90] sm:$0xf] %vm671, 0
      %755 = vst.msk [vmem:[%s741 + $0x94] sm:$0xf] %vm671, 0
      %756 = vst.msk [vmem:[%s741 + $0xa8] sm:$0xf] %vm671, 0
      %757 = vst.msk [vmem:[%s741 + $0xac] sm:$0xf] %vm671, 0
      %758 = vst.msk [vmem:[%s741 + $0xc0] sm:$0xf] %vm671, 0
      %759 = vst.msk [vmem:[%s741 + $0xc4] sm:$0xf] %vm671, 0
      %760 = vst.msk [vmem:[%s741 + $0xd8] sm:$0xf] %vm671, 0
      %761 = vst.msk [vmem:[%s741 + $0xdc] sm:$0xf] %vm671, 0
      %762 = vst.msk [vmem:[%s741 + $0xf0] sm:$0xf] %vm671, 0
      %763 = vst.msk [vmem:[%s741 + $0xf4] sm:$0xf] %vm671, 0
      %764 = vst.msk [vmem:[%s741 + $0x108] sm:$0xf] %vm671, 0
      %765 = vst.msk [vmem:[%s741 + $0x10c] sm:$0xf] %vm671, 0
      %766 = vst.msk [vmem:[%s741 + $0x120] sm:$0xf] %vm671, 0
      %767 = vst.msk [vmem:[%s741 + $0x124] sm:$0xf] %vm671, 0
      %768 = vst.msk [vmem:[%s741 + $0x138] sm:$0xf] %vm671, 0
      %769 = vst.msk [vmem:[%s741 + $0x13c] sm:$0xf] %vm671, 0
      %770 = vst.msk [vmem:[%s741 + $0x150] sm:$0xf] %vm671, 0
      %771 = vst.msk [vmem:[%s741 + $0x154] sm:$0xf] %vm671, 0
      %772 = vst.msk [vmem:[%s741 + $0x168] sm:$0xf] %vm671, 0
      %773 = vst.msk [vmem:[%s741 + $0x16c] sm:$0xf] %vm671, 0
      %774 = vst.msk [vmem:[%s741 + $0x10] sm:$0xf] %vm671, 0
      %775 = vst.msk [vmem:[%s741 + $0x14] sm:$0xf] %vm671, 0
      %776 = vst.msk [vmem:[%s741 + $0x28] sm:$0xf] %vm671, 0
      %777 = vst.msk [vmem:[%s741 + $0x2c] sm:$0xf] %vm671, 0
      %778 = vst.msk [vmem:[%s741 + $0x40] sm:$0xf] %vm671, 0
      %779 = vst.msk [vmem:[%s741 + $0x44] sm:$0xf] %vm671, 0
      %780 = vst.msk [vmem:[%s741 + $0x58] sm:$0xf] %vm671, 0
      %781 = vst.msk [vmem:[%s741 + $0x5c] sm:$0xf] %vm671, 0
      %782 = vst.msk [vmem:[%s741 + $0x70] sm:$0xf] %vm671, 0
      %783 = vst.msk [vmem:[%s741 + $0x74] sm:$0xf] %vm671, 0
      %784 = vst.msk [vmem:[%s741 + $0x88] sm:$0xf] %vm671, 0
      %785 = vst.msk [vmem:[%s741 + $0x8c] sm:$0xf] %vm671, 0
      %786 = vst.msk [vmem:[%s741 + $0xa0] sm:$0xf] %vm671, 0
      %787 = vst.msk [vmem:[%s741 + $0xa4] sm:$0xf] %vm671, 0
      %788 = vst.msk [vmem:[%s741 + $0xb8] sm:$0xf] %vm671, 0
      %789 = vst.msk [vmem:[%s741 + $0xbc] sm:$0xf] %vm671, 0
      %790 = vst.msk [vmem:[%s741 + $0xd0] sm:$0xf] %vm671, 0
      %791 = vst.msk [vmem:[%s741 + $0xd4] sm:$0xf] %vm671, 0
      %792 = vst.msk [vmem:[%s741 + $0xe8] sm:$0xf] %vm671, 0
      %793 = vst.msk [vmem:[%s741 + $0xec] sm:$0xf] %vm671, 0
      %794 = vst.msk [vmem:[%s741 + $0x100] sm:$0xf] %vm671, 0
      %795 = vst.msk [vmem:[%s741 + $0x104] sm:$0xf] %vm671, 0
      %796 = vst.msk [vmem:[%s741 + $0x118] sm:$0xf] %vm671, 0
      %797 = vst.msk [vmem:[%s741 + $0x11c] sm:$0xf] %vm671, 0
      %798 = vst.msk [vmem:[%s741 + $0x130] sm:$0xf] %vm671, 0
      %799 = vst.msk [vmem:[%s741 + $0x134] sm:$0xf] %vm671, 0
      %800 = vst.msk [vmem:[%s741 + $0x148] sm:$0xf] %vm671, 0
      %801 = vst.msk [vmem:[%s741 + $0x14c] sm:$0xf] %vm671, 0
      %802 = vst.msk [vmem:[%s741 + $0x160] sm:$0xf] %vm671, 0
      %803 = vst.msk [vmem:[%s741 + $0x164] sm:$0xf] %vm671, 0
      %804 = vst.msk [vmem:[%s741 + $0x178] sm:$0xf] %vm671, 0
      %805 = vst.msk [vmem:[%s741 + $0x17c] sm:$0xf] %vm671, 0
      %806 = vst.msk [vmem:[%s741 + $0x8] sm:$0xf] %vm671, %v639
      %807 = vst.msk [vmem:[%s741 + $0xc] sm:$0xf] %vm671, %v640
      %808 = vst.msk [vmem:[%s741 + $0x20] sm:$0xf] %vm671, %v641
      %809 = vst.msk [vmem:[%s741 + $0x24] sm:$0xf] %vm671, %v642
      %810 = vst.msk [vmem:[%s741 + $0x38] sm:$0xf] %vm671, %v643
      %811 = vst.msk [vmem:[%s741 + $0x3c] sm:$0xf] %vm671, %v644
      %812 = vst.msk [vmem:[%s741 + $0x50] sm:$0xf] %vm671, %v645
      %813 = vst.msk [vmem:[%s741 + $0x54] sm:$0xf] %vm671, %v646
      %814 = vst.msk [vmem:[%s741 + $0x68] sm:$0xf] %vm671, %v647
      %815 = vst.msk [vmem:[%s741 + $0x6c] sm:$0xf] %vm671, %v648
      %816 = vst.msk [vmem:[%s741 + $0x80] sm:$0xf] %vm671, %v649
      %817 = vst.msk [vmem:[%s741 + $0x84] sm:$0xf] %vm671, %v650
      %818 = vst.msk [vmem:[%s741 + $0x98] sm:$0xf] %vm671, %v651
      %819 = vst.msk [vmem:[%s741 + $0x9c] sm:$0xf] %vm671, %v652
      %820 = vst.msk [vmem:[%s741 + $0xb0] sm:$0xf] %vm671, %v653
      %821 = vst.msk [vmem:[%s741 + $0xb4] sm:$0xf] %vm671, %v654
      %822 = vst.msk [vmem:[%s741 + $0xc8] sm:$0xf] %vm671, %v655
      %823 = vst.msk [vmem:[%s741 + $0xcc] sm:$0xf] %vm671, %v656
      %824 = vst.msk [vmem:[%s741 + $0xe0] sm:$0xf] %vm671, %v657
      %825 = vst.msk [vmem:[%s741 + $0xe4] sm:$0xf] %vm671, %v658
      %826 = vst.msk [vmem:[%s741 + $0xf8] sm:$0xf] %vm671, %v659
      %827 = vst.msk [vmem:[%s741 + $0xfc] sm:$0xf] %vm671, %v660
      %828 = vst.msk [vmem:[%s741 + $0x110] sm:$0xf] %vm671, %v661
      %829 = vst.msk [vmem:[%s741 + $0x114] sm:$0xf] %vm671, %v662
      %830 = vst.msk [vmem:[%s741 + $0x128] sm:$0xf] %vm671, %v663
      %831 = vst.msk [vmem:[%s741 + $0x12c] sm:$0xf] %vm671, %v664
      %832 = vst.msk [vmem:[%s741 + $0x140] sm:$0xf] %vm671, %v665
      %833 = vst.msk [vmem:[%s741 + $0x144] sm:$0xf] %vm671, %v666
      %834 = vst.msk [vmem:[%s741 + $0x158] sm:$0xf] %vm671, %v667
      %835 = vst.msk [vmem:[%s741 + $0x15c] sm:$0xf] %vm671, %v668
      %836 = vst.msk [vmem:[%s741 + $0x170] sm:$0xf] %vm671, %v669
      %837 = vst.msk [vmem:[%s741 + $0x174] sm:$0xf] %vm671, %v670
      %v838 = vld [vmem:[#allocation2] sm:$0xf]
      %v839 = vld [vmem:[#allocation2 + $0x4] sm:$0xf]
      %v840 = vld [vmem:[#allocation2 + $0x8] sm:$0xf]
      %v841 = vld [vmem:[#allocation2 + $0xc] sm:$0xf]
      %v842 = vld [vmem:[#allocation2 + $0x10] sm:$0xf]
      %v843 = vld [vmem:[#allocation2 + $0x14] sm:$0xf]
      %v844 = vld [vmem:[#allocation2 + $0x18] sm:$0xf]
      %v845 = vld [vmem:[#allocation2 + $0x1c] sm:$0xf]
      %v846 = vld [vmem:[#allocation2 + $0x20] sm:$0xf]
      %v847 = vld [vmem:[#allocation2 + $0x24] sm:$0xf]
      %v848 = vld [vmem:[#allocation2 + $0x28] sm:$0xf]
      %v849 = vld [vmem:[#allocation2 + $0x2c] sm:$0xf]
      %v850 = vld [vmem:[#allocation2 + $0x30] sm:$0xf]
      %v851 = vld [vmem:[#allocation2 + $0x34] sm:$0xf]
      %v852 = vld [vmem:[#allocation2 + $0x38] sm:$0xf]
      %v853 = vld [vmem:[#allocation2 + $0x3c] sm:$0xf]
      %v854 = vld [vmem:[#allocation2 + $0x40] sm:$0xf]
      %v855 = vld [vmem:[#allocation2 + $0x44] sm:$0xf]
      %v856 = vld [vmem:[#allocation2 + $0x48] sm:$0xf]
      %v857 = vld [vmem:[#allocation2 + $0x4c] sm:$0xf]
      %v858 = vld [vmem:[#allocation2 + $0x50] sm:$0xf]
      %v859 = vld [vmem:[#allocation2 + $0x54] sm:$0xf]
      %v860 = vld [vmem:[#allocation2 + $0x58] sm:$0xf]
      %v861 = vld [vmem:[#allocation2 + $0x5c] sm:$0xf]
      %v862 = vld [vmem:[#allocation2 + $0x60] sm:$0xf]
      %v863 = vld [vmem:[#allocation2 + $0x64] sm:$0xf]
      %v864 = vld [vmem:[#allocation2 + $0x68] sm:$0xf]
      %v865 = vld [vmem:[#allocation2 + $0x6c] sm:$0xf]
      %v866 = vld [vmem:[#allocation2 + $0x70] sm:$0xf]
      %v867 = vld [vmem:[#allocation2 + $0x74] sm:$0xf]
      %v868 = vld [vmem:[#allocation2 + $0x78] sm:$0xf]
      %v869 = vld [vmem:[#allocation2 + $0x7c] sm:$0xf]
      %v870 = vld [vmem:[#allocation2 + $0x80] sm:$0xf]
      %v871 = vld [vmem:[#allocation2 + $0x84] sm:$0xf]
      %v872 = vld [vmem:[#allocation2 + $0x88] sm:$0xf]
      %v873 = vld [vmem:[#allocation2 + $0x8c] sm:$0xf]
      %v874 = vld [vmem:[#allocation2 + $0x90] sm:$0xf]
      %v875 = vld [vmem:[#allocation2 + $0x94] sm:$0xf]
      %v876 = vld [vmem:[#allocation2 + $0x98] sm:$0xf]
      %v877 = vld [vmem:[#allocation2 + $0x9c] sm:$0xf]
      %v878 = vld [vmem:[#allocation2 + $0xa0] sm:$0xf]
      %v879 = vld [vmem:[#allocation2 + $0xa4] sm:$0xf]
      %v880 = vld [vmem:[#allocation2 + $0xa8] sm:$0xf]
      %v881 = vld [vmem:[#allocation2 + $0xac] sm:$0xf]
      %v882 = vld [vmem:[#allocation2 + $0xb0] sm:$0xf]
      %v883 = vld [vmem:[#allocation2 + $0xb4] sm:$0xf]
      %v884 = vld [vmem:[#allocation2 + $0xb8] sm:$0xf]
      %v885 = vld [vmem:[#allocation2 + $0xbc] sm:$0xf]
      %v886 = vld [vmem:[#allocation2 + $0xc0] sm:$0xf]
      %v887 = vld [vmem:[#allocation2 + $0xc4] sm:$0xf]
      %v888 = vld [vmem:[#allocation2 + $0xc8] sm:$0xf]
      %v889 = vld [vmem:[#allocation2 + $0xcc] sm:$0xf]
      %v890 = vld [vmem:[#allocation2 + $0xd0] sm:$0xf]
      %v891 = vld [vmem:[#allocation2 + $0xd4] sm:$0xf]
      %v892 = vld [vmem:[#allocation2 + $0xd8] sm:$0xf]
      %v893 = vld [vmem:[#allocation2 + $0xdc] sm:$0xf]
      %v894 = vld [vmem:[#allocation2 + $0xe0] sm:$0xf]
      %v895 = vld [vmem:[#allocation2 + $0xe4] sm:$0xf]
      %v896 = vld [vmem:[#allocation2 + $0xe8] sm:$0xf]
      %v897 = vld [vmem:[#allocation2 + $0xec] sm:$0xf]
      %v898 = vld [vmem:[#allocation2 + $0xf0] sm:$0xf]
      %v899 = vld [vmem:[#allocation2 + $0xf4] sm:$0xf]
      %v900 = vld [vmem:[#allocation2 + $0xf8] sm:$0xf]
      %v901 = vld [vmem:[#allocation2 + $0xfc] sm:$0xf]
      %v902 = vld [vmem:[#allocation2 + $0x100] sm:$0xf]
      %v903 = vld [vmem:[#allocation2 + $0x104] sm:$0xf]
      %v904 = vld [vmem:[#allocation2 + $0x108] sm:$0xf]
      %v905 = vld [vmem:[#allocation2 + $0x10c] sm:$0xf]
      %v906 = vld [vmem:[#allocation2 + $0x110] sm:$0xf]
      %v907 = vld [vmem:[#allocation2 + $0x114] sm:$0xf]
      %v908 = vld [vmem:[#allocation2 + $0x118] sm:$0xf]
      %v909 = vld [vmem:[#allocation2 + $0x11c] sm:$0xf]
      %v910 = vld [vmem:[#allocation2 + $0x120] sm:$0xf]
      %v911 = vld [vmem:[#allocation2 + $0x124] sm:$0xf]
      %v912 = vld [vmem:[#allocation2 + $0x128] sm:$0xf]
      %v913 = vld [vmem:[#allocation2 + $0x12c] sm:$0xf]
      %v914 = vld [vmem:[#allocation2 + $0x130] sm:$0xf]
      %v915 = vld [vmem:[#allocation2 + $0x134] sm:$0xf]
      %v916 = vld [vmem:[#allocation2 + $0x138] sm:$0xf]
      %v917 = vld [vmem:[#allocation2 + $0x13c] sm:$0xf]
      %v918 = vld [vmem:[#allocation2 + $0x140] sm:$0xf]
      %v919 = vld [vmem:[#allocation2 + $0x144] sm:$0xf]
      %v920 = vld [vmem:[#allocation2 + $0x148] sm:$0xf]
      %v921 = vld [vmem:[#allocation2 + $0x14c] sm:$0xf]
      %v922 = vld [vmem:[#allocation2 + $0x150] sm:$0xf]
      %v923 = vld [vmem:[#allocation2 + $0x154] sm:$0xf]
      %v924 = vld [vmem:[#allocation2 + $0x158] sm:$0xf]
      %v925 = vld [vmem:[#allocation2 + $0x15c] sm:$0xf]
      %v926 = vld [vmem:[#allocation2 + $0x160] sm:$0xf]
      %v927 = vld [vmem:[#allocation2 + $0x164] sm:$0xf]
      %v928 = vld [vmem:[#allocation2 + $0x168] sm:$0xf]
      %v929 = vld [vmem:[#allocation2 + $0x16c] sm:$0xf]
      %v930 = vld [vmem:[#allocation2 + $0x170] sm:$0xf]
      %v931 = vld [vmem:[#allocation2 + $0x174] sm:$0xf]
      %v932 = vld [vmem:[#allocation2 + $0x178] sm:$0xf]
      %v933 = vld [vmem:[#allocation2 + $0x17c] sm:$0xf]
      %v934 = vld [vmem:[%s4] sm:$0x3]
      %s935 = scalar_lea.vmem %s4, 2
      %v936 = vld [vmem:[%s935] sm:$0x3]
      %s937 = scalar_lea.vmem %s4, 4
      %v938 = vld [vmem:[%s937] sm:$0x3]
      %v939 = vld [vmem:[%s741] sm:$0xf]
      %v940 = vld [vmem:[%s741 + $0x4] sm:$0xf]
      %v941 = vld [vmem:[%s741 + $0x8] sm:$0xf]
      %v942 = vld [vmem:[%s741 + $0xc] sm:$0xf]
      %v943 = vld [vmem:[%s741 + $0x10] sm:$0xf]
      %v944 = vld [vmem:[%s741 + $0x14] sm:$0xf]
      %v945 = vld [vmem:[%s741 + $0x18] sm:$0xf]
      %v946 = vld [vmem:[%s741 + $0x1c] sm:$0xf]
      %v947 = vld [vmem:[%s741 + $0x20] sm:$0xf]
      %v948 = vld [vmem:[%s741 + $0x24] sm:$0xf]
      %v949 = vld [vmem:[%s741 + $0x28] sm:$0xf]
      %v950 = vld [vmem:[%s741 + $0x2c] sm:$0xf]
      %v951 = vld [vmem:[%s741 + $0x30] sm:$0xf]
      %v952 = vld [vmem:[%s741 + $0x34] sm:$0xf]
      %v953 = vld [vmem:[%s741 + $0x38] sm:$0xf]
      %v954 = vld [vmem:[%s741 + $0x3c] sm:$0xf]
      %v955 = vld [vmem:[%s741 + $0x40] sm:$0xf]
      %v956 = vld [vmem:[%s741 + $0x44] sm:$0xf]
      %v957 = vld [vmem:[%s741 + $0x48] sm:$0xf]
      %v958 = vld [vmem:[%s741 + $0x4c] sm:$0xf]
      %v959 = vld [vmem:[%s741 + $0x50] sm:$0xf]
      %v960 = vld [vmem:[%s741 + $0x54] sm:$0xf]
      %v961 = vld [vmem:[%s741 + $0x58] sm:$0xf]
      %v962 = vld [vmem:[%s741 + $0x5c] sm:$0xf]
      %v963 = vld [vmem:[%s741 + $0x60] sm:$0xf]
      %v964 = vld [vmem:[%s741 + $0x64] sm:$0xf]
      %v965 = vld [vmem:[%s741 + $0x68] sm:$0xf]
      %v966 = vld [vmem:[%s741 + $0x6c] sm:$0xf]
      %v967 = vld [vmem:[%s741 + $0x70] sm:$0xf]
      %v968 = vld [vmem:[%s741 + $0x74] sm:$0xf]
      %v969 = vld [vmem:[%s741 + $0x78] sm:$0xf]
      %v970 = vld [vmem:[%s741 + $0x7c] sm:$0xf]
      %v971 = vld [vmem:[%s741 + $0x80] sm:$0xf]
      %v972 = vld [vmem:[%s741 + $0x84] sm:$0xf]
      %v973 = vld [vmem:[%s741 + $0x88] sm:$0xf]
      %v974 = vld [vmem:[%s741 + $0x8c] sm:$0xf]
      %v975 = vld [vmem:[%s741 + $0x90] sm:$0xf]
      %v976 = vld [vmem:[%s741 + $0x94] sm:$0xf]
      %v977 = vld [vmem:[%s741 + $0x98] sm:$0xf]
      %v978 = vld [vmem:[%s741 + $0x9c] sm:$0xf]
      %v979 = vld [vmem:[%s741 + $0xa0] sm:$0xf]
      %v980 = vld [vmem:[%s741 + $0xa4] sm:$0xf]
      %v981 = vld [vmem:[%s741 + $0xa8] sm:$0xf]
      %v982 = vld [vmem:[%s741 + $0xac] sm:$0xf]
      %v983 = vld [vmem:[%s741 + $0xb0] sm:$0xf]
      %v984 = vld [vmem:[%s741 + $0xb4] sm:$0xf]
      %v985 = vld [vmem:[%s741 + $0xb8] sm:$0xf]
      %v986 = vld [vmem:[%s741 + $0xbc] sm:$0xf]
      %v987 = vld [vmem:[%s741 + $0xc0] sm:$0xf]
      %v988 = vld [vmem:[%s741 + $0xc4] sm:$0xf]
      %v989 = vld [vmem:[%s741 + $0xc8] sm:$0xf]
      %v990 = vld [vmem:[%s741 + $0xcc] sm:$0xf]
      %v991 = vld [vmem:[%s741 + $0xd0] sm:$0xf]
      %v992 = vld [vmem:[%s741 + $0xd4] sm:$0xf]
      %v993 = vld [vmem:[%s741 + $0xd8] sm:$0xf]
      %v994 = vld [vmem:[%s741 + $0xdc] sm:$0xf]
      %v995 = vld [vmem:[%s741 + $0xe0] sm:$0xf]
      %v996 = vld [vmem:[%s741 + $0xe4] sm:$0xf]
      %v997 = vld [vmem:[%s741 + $0xe8] sm:$0xf]
      %v998 = vld [vmem:[%s741 + $0xec] sm:$0xf]
      %v999 = vld [vmem:[%s741 + $0xf0] sm:$0xf]
      %v1000 = vld [vmem:[%s741 + $0xf4] sm:$0xf]
      %v1001 = vld [vmem:[%s741 + $0xf8] sm:$0xf]
      %v1002 = vld [vmem:[%s741 + $0xfc] sm:$0xf]
      %v1003 = vld [vmem:[%s741 + $0x100] sm:$0xf]
      %v1004 = vld [vmem:[%s741 + $0x104] sm:$0xf]
      %v1005 = vld [vmem:[%s741 + $0x108] sm:$0xf]
      %v1006 = vld [vmem:[%s741 + $0x10c] sm:$0xf]
      %v1007 = vld [vmem:[%s741 + $0x110] sm:$0xf]
      %v1008 = vld [vmem:[%s741 + $0x114] sm:$0xf]
      %v1009 = vld [vmem:[%s741 + $0x118] sm:$0xf]
      %v1010 = vld [vmem:[%s741 + $0x11c] sm:$0xf]
      %v1011 = vld [vmem:[%s741 + $0x120] sm:$0xf]
      %v1012 = vld [vmem:[%s741 + $0x124] sm:$0xf]
      %v1013 = vld [vmem:[%s741 + $0x128] sm:$0xf]
      %v1014 = vld [vmem:[%s741 + $0x12c] sm:$0xf]
      %v1015 = vld [vmem:[%s741 + $0x130] sm:$0xf]
      %v1016 = vld [vmem:[%s741 + $0x134] sm:$0xf]
      %v1017 = vld [vmem:[%s741 + $0x138] sm:$0xf]
      %v1018 = vld [vmem:[%s741 + $0x13c] sm:$0xf]
      %v1019 = vld [vmem:[%s741 + $0x140] sm:$0xf]
      %v1020 = vld [vmem:[%s741 + $0x144] sm:$0xf]
      %v1021 = vld [vmem:[%s741 + $0x148] sm:$0xf]
      %v1022 = vld [vmem:[%s741 + $0x14c] sm:$0xf]
      %v1023 = vld [vmem:[%s741 + $0x150] sm:$0xf]
      %v1024 = vld [vmem:[%s741 + $0x154] sm:$0xf]
      %v1025 = vld [vmem:[%s741 + $0x158] sm:$0xf]
      %v1026 = vld [vmem:[%s741 + $0x15c] sm:$0xf]
      %v1027 = vld [vmem:[%s741 + $0x160] sm:$0xf]
      %v1028 = vld [vmem:[%s741 + $0x164] sm:$0xf]
      %v1029 = vld [vmem:[%s741 + $0x168] sm:$0xf]
      %v1030 = vld [vmem:[%s741 + $0x16c] sm:$0xf]
      %v1031 = vld [vmem:[%s741 + $0x170] sm:$0xf]
      %v1032 = vld [vmem:[%s741 + $0x174] sm:$0xf]
      %v1033 = vld [vmem:[%s741 + $0x178] sm:$0xf]
      %v1034 = vld [vmem:[%s741 + $0x17c] sm:$0xf]
      %s1035 = scalar_lea.vmem %s4, 6
      %v1036 = vld [vmem:[%s1035] sm:$0x3]
      %v1133 = vunpack.c.l.b16 %v939
      %v1134 = vunpack.c.l.b16 %v940
      %v1135 = vunpack.c.l.b16 %v941
      %v1136 = vunpack.c.l.b16 %v942
      %v1137 = vunpack.c.l.b16 %v943
      %v1138 = vunpack.c.l.b16 %v944
      %v1139 = vunpack.c.l.b16 %v945
      %v1140 = vunpack.c.l.b16 %v946
      %v1141 = vunpack.c.l.b16 %v947
      %v1142 = vunpack.c.l.b16 %v948
      %v1143 = vunpack.c.l.b16 %v949
      %v1144 = vunpack.c.l.b16 %v950
      %v1145 = vunpack.c.l.b16 %v951
      %v1146 = vunpack.c.l.b16 %v952
      %v1147 = vunpack.c.l.b16 %v953
      %v1148 = vunpack.c.l.b16 %v954
      %v1149 = vunpack.c.l.b16 %v955
      %v1150 = vunpack.c.l.b16 %v956
      %v1151 = vunpack.c.l.b16 %v957
      %v1152 = vunpack.c.l.b16 %v958
      %v1153 = vunpack.c.l.b16 %v959
      %v1154 = vunpack.c.l.b16 %v960
      %v1155 = vunpack.c.l.b16 %v961
      %v1156 = vunpack.c.l.b16 %v962
      %v1157 = vunpack.c.l.b16 %v963
      %v1158 = vunpack.c.l.b16 %v964
      %v1159 = vunpack.c.l.b16 %v965
      %v1160 = vunpack.c.l.b16 %v966
      %v1161 = vunpack.c.l.b16 %v967
      %v1162 = vunpack.c.l.b16 %v968
      %v1163 = vunpack.c.l.b16 %v969
      %v1164 = vunpack.c.l.b16 %v970
      %v1165 = vunpack.c.l.b16 %v971
      %v1166 = vunpack.c.l.b16 %v972
      %v1167 = vunpack.c.l.b16 %v973
      %v1168 = vunpack.c.l.b16 %v974
      %v1169 = vunpack.c.l.b16 %v975
      %v1170 = vunpack.c.l.b16 %v976
      %v1171 = vunpack.c.l.b16 %v977
      %v1172 = vunpack.c.l.b16 %v978
      %v1173 = vunpack.c.l.b16 %v979
      %v1174 = vunpack.c.l.b16 %v980
      %v1175 = vunpack.c.l.b16 %v981
      %v1176 = vunpack.c.l.b16 %v982
      %v1177 = vunpack.c.l.b16 %v983
      %v1178 = vunpack.c.l.b16 %v984
      %v1179 = vunpack.c.l.b16 %v985
      %v1180 = vunpack.c.l.b16 %v986
      %v1181 = vunpack.c.l.b16 %v987
      %v1182 = vunpack.c.l.b16 %v988
      %v1183 = vunpack.c.l.b16 %v989
      %v1184 = vunpack.c.l.b16 %v990
      %v1185 = vunpack.c.l.b16 %v991
      %v1186 = vunpack.c.l.b16 %v992
      %v1187 = vunpack.c.l.b16 %v993
      %v1188 = vunpack.c.l.b16 %v994
      %v1189 = vunpack.c.l.b16 %v995
      %v1190 = vunpack.c.l.b16 %v996
      %v1191 = vunpack.c.l.b16 %v997
      %v1192 = vunpack.c.l.b16 %v998
      %v1193 = vunpack.c.l.b16 %v999
      %v1194 = vunpack.c.l.b16 %v1000
      %v1195 = vunpack.c.l.b16 %v1001
      %v1196 = vunpack.c.l.b16 %v1002
      %v1197 = vunpack.c.l.b16 %v1003
      %v1198 = vunpack.c.l.b16 %v1004
      %v1199 = vunpack.c.l.b16 %v1005
      %v1200 = vunpack.c.l.b16 %v1006
      %v1201 = vunpack.c.l.b16 %v1007
      %v1202 = vunpack.c.l.b16 %v1008
      %v1203 = vunpack.c.l.b16 %v1009
      %v1204 = vunpack.c.l.b16 %v1010
      %v1205 = vunpack.c.l.b16 %v1011
      %v1206 = vunpack.c.l.b16 %v1012
      %v1207 = vunpack.c.l.b16 %v1013
      %v1208 = vunpack.c.l.b16 %v1014
      %v1209 = vunpack.c.l.b16 %v1015
      %v1210 = vunpack.c.l.b16 %v1016
      %v1211 = vunpack.c.l.b16 %v1017
      %v1212 = vunpack.c.l.b16 %v1018
      %v1213 = vunpack.c.l.b16 %v1019
      %v1214 = vunpack.c.l.b16 %v1020
      %v1215 = vunpack.c.l.b16 %v1021
      %v1216 = vunpack.c.l.b16 %v1022
      %v1217 = vunpack.c.l.b16 %v1023
      %v1218 = vunpack.c.l.b16 %v1024
      %v1219 = vunpack.c.l.b16 %v1025
      %v1220 = vunpack.c.l.b16 %v1026
      %v1221 = vunpack.c.l.b16 %v1027
      %v1222 = vunpack.c.l.b16 %v1028
      %v1223 = vunpack.c.l.b16 %v1029
      %v1224 = vunpack.c.l.b16 %v1030
      %v1225 = vunpack.c.l.b16 %v1031
      %v1226 = vunpack.c.l.b16 %v1032
      %v1227 = vunpack.c.l.b16 %v1033
      %v1228 = vunpack.c.l.b16 %v1034
      %v1229 = vpack.c.b16 %v1134, %v1133
      %v1230 = vpack.c.b16 %v1136, %v1135
      %v1231 = vpack.c.b16 %v1138, %v1137
      %v1232 = vpack.c.b16 %v1140, %v1139
      %v1233 = vpack.c.b16 %v1142, %v1141
      %v1234 = vpack.c.b16 %v1144, %v1143
      %v1235 = vpack.c.b16 %v1146, %v1145
      %v1236 = vpack.c.b16 %v1148, %v1147
      %v1237 = vpack.c.b16 %v1150, %v1149
      %v1238 = vpack.c.b16 %v1152, %v1151
      %v1239 = vpack.c.b16 %v1154, %v1153
      %v1240 = vpack.c.b16 %v1156, %v1155
      %v1241 = vpack.c.b16 %v1158, %v1157
      %v1242 = vpack.c.b16 %v1160, %v1159
      %v1243 = vpack.c.b16 %v1162, %v1161
      %v1244 = vpack.c.b16 %v1164, %v1163
      %v1245 = vpack.c.b16 %v1166, %v1165
      %v1246 = vpack.c.b16 %v1168, %v1167
      %v1247 = vpack.c.b16 %v1170, %v1169
      %v1248 = vpack.c.b16 %v1172, %v1171
      %v1249 = vpack.c.b16 %v1174, %v1173
      %v1250 = vpack.c.b16 %v1176, %v1175
      %v1251 = vpack.c.b16 %v1178, %v1177
      %v1252 = vpack.c.b16 %v1180, %v1179
      %v1253 = vpack.c.b16 %v1182, %v1181
      %v1254 = vpack.c.b16 %v1184, %v1183
      %v1255 = vpack.c.b16 %v1186, %v1185
      %v1256 = vpack.c.b16 %v1188, %v1187
      %v1257 = vpack.c.b16 %v1190, %v1189
      %v1258 = vpack.c.b16 %v1192, %v1191
      %v1259 = vpack.c.b16 %v1194, %v1193
      %v1260 = vpack.c.b16 %v1196, %v1195
      %v1261 = vpack.c.b16 %v1198, %v1197
      %v1262 = vpack.c.b16 %v1200, %v1199
      %v1263 = vpack.c.b16 %v1202, %v1201
      %v1264 = vpack.c.b16 %v1204, %v1203
      %v1265 = vpack.c.b16 %v1206, %v1205
      %v1266 = vpack.c.b16 %v1208, %v1207
      %v1267 = vpack.c.b16 %v1210, %v1209
      %v1268 = vpack.c.b16 %v1212, %v1211
      %v1269 = vpack.c.b16 %v1214, %v1213
      %v1270 = vpack.c.b16 %v1216, %v1215
      %v1271 = vpack.c.b16 %v1218, %v1217
      %v1272 = vpack.c.b16 %v1220, %v1219
      %v1273 = vpack.c.b16 %v1222, %v1221
      %v1274 = vpack.c.b16 %v1224, %v1223
      %v1275 = vpack.c.b16 %v1226, %v1225
      %v1276 = vpack.c.b16 %v1228, %v1227
      %v1278 = vsel %vm393, %v1229, 0
      %v1281 = vsel %vm393, %v1230, 0
      %v1284 = vsel %vm393, %v1231, 0
      %v1287 = vsel %vm393, %v1232, 0
      %v1290 = vsel %vm393, %v1233, 0
      %v1293 = vsel %vm393, %v1234, 0
      %v1296 = vsel %vm393, %v1235, 0
      %v1299 = vsel %vm393, %v1236, 0
      %v1302 = vsel %vm393, %v1237, 0
      %v1305 = vsel %vm393, %v1238, 0
      %v1308 = vsel %vm393, %v1239, 0
      %v1311 = vsel %vm393, %v1240, 0
      %v1314 = vsel %vm393, %v1241, 0
      %v1317 = vsel %vm393, %v1242, 0
      %v1320 = vsel %vm393, %v1243, 0
      %v1323 = vsel %vm393, %v1244, 0
      %v1326 = vsel %vm393, %v1245, 0
      %v1329 = vsel %vm393, %v1246, 0
      %v1332 = vsel %vm393, %v1247, 0
      %v1335 = vsel %vm393, %v1248, 0
      %v1338 = vsel %vm393, %v1249, 0
      %v1341 = vsel %vm393, %v1250, 0
      %v1344 = vsel %vm393, %v1251, 0
      %v1347 = vsel %vm393, %v1252, 0
      %v1350 = vsel %vm393, %v1253, 0
      %v1353 = vsel %vm393, %v1254, 0
      %v1356 = vsel %vm393, %v1255, 0
      %v1359 = vsel %vm393, %v1256, 0
      %v1362 = vsel %vm393, %v1257, 0
      %v1365 = vsel %vm393, %v1258, 0
      %v1368 = vsel %vm393, %v1259, 0
      %v1371 = vsel %vm393, %v1260, 0
      %v1374 = vsel %vm393, %v1261, 0
      %v1377 = vsel %vm393, %v1262, 0
      %v1380 = vsel %vm393, %v1263, 0
      %v1383 = vsel %vm393, %v1264, 0
      %v1386 = vsel %vm393, %v1265, 0
      %v1389 = vsel %vm393, %v1266, 0
      %v1392 = vsel %vm393, %v1267, 0
      %v1395 = vsel %vm393, %v1268, 0
      %v1398 = vsel %vm393, %v1269, 0
      %v1401 = vsel %vm393, %v1270, 0
      %v1404 = vsel %vm393, %v1271, 0
      %v1407 = vsel %vm393, %v1272, 0
      %v1410 = vsel %vm393, %v1273, 0
      %v1413 = vsel %vm393, %v1274, 0
      %v1416 = vsel %vm393, %v1275, 0
      %v1419 = vsel %vm393, %v1276, 0
      %v1422 = vsel %vm442, %v1036, 0
      %1424 = vmatpush.bf16.msra.mxu0 0
      %1425 = vmatpush.bf16.msra.mxu0 0
      %1426 = vmatpush.bf16.msra.mxu0 0
      %1427 = vmatpush.bf16.msra.mxu0 0
      %1428 = vmatpush.bf16.msra.mxu0 0
      %1429 = vmatpush.bf16.msra.mxu0 0
      %1430 = vmatpush.bf16.msra.mxu0 0
      %1431 = vmatpush.bf16.msra.mxu0 %v1422
      %1432 = vmatmul.bf16.gmra.mxu0 %v1278
      %v1433 = vpop.f32.mrf.mxu0
      %v1434 = vpop.f32.mrf.mxu0
      %v1435 = vadd.f32 0.0, %v1434
      %1436 = vmatmul.bf16.gmra.mxu0 %v1281
      %v1437 = vpop.f32.mrf.mxu0
      %v1438 = vadd.f32 0.0, %v1437
      %v1439 = vpop.f32.mrf.mxu0
      %v1440 = vadd.f32 0.0, %v1439
      %1441 = vmatmul.bf16.gmra.mxu0 %v1284
      %v1442 = vpop.f32.mrf.mxu0
      %v1443 = vpop.f32.mrf.mxu0
      %1444 = vmatmul.bf16.gmra.mxu0 %v1287
      %v1445 = vpop.f32.mrf.mxu0
      %v1446 = vpop.f32.mrf.mxu0
      %v1447 = vadd.f32 0.0, %v1446
      %1448 = vmatmul.bf16.gmra.mxu0 %v1290
      %v1449 = vpop.f32.mrf.mxu0
      %v1450 = vadd.f32 0.0, %v1449
      %v1451 = vpop.f32.mrf.mxu0
      %v1452 = vadd.f32 0.0, %v1451
      %1453 = vmatmul.bf16.gmra.mxu0 %v1293
      %v1454 = vpop.f32.mrf.mxu0
      %v1455 = vpop.f32.mrf.mxu0
      %1456 = vmatmul.bf16.gmra.mxu0 %v1296
      %v1457 = vpop.f32.mrf.mxu0
      %v1458 = vpop.f32.mrf.mxu0
      %v1459 = vadd.f32 0.0, %v1458
      %1460 = vmatmul.bf16.gmra.mxu0 %v1299
      %v1461 = vpop.f32.mrf.mxu0
      %v1462 = vadd.f32 0.0, %v1461
      %v1463 = vpop.f32.mrf.mxu0
      %v1464 = vadd.f32 0.0, %v1463
      %1465 = vmatmul.bf16.gmra.mxu0 %v1302
      %v1466 = vpop.f32.mrf.mxu0
      %v1467 = vpop.f32.mrf.mxu0
      %1468 = vmatmul.bf16.gmra.mxu0 %v1305
      %v1469 = vpop.f32.mrf.mxu0
      %v1470 = vpop.f32.mrf.mxu0
      %v1471 = vadd.f32 0.0, %v1470
      %1472 = vmatmul.bf16.gmra.mxu0 %v1308
      %v1473 = vpop.f32.mrf.mxu0
      %v1474 = vadd.f32 0.0, %v1473
      %v1475 = vpop.f32.mrf.mxu0
      %v1476 = vadd.f32 0.0, %v1475
      %1477 = vmatmul.bf16.gmra.mxu0 %v1311
      %v1478 = vpop.f32.mrf.mxu0
      %v1479 = vpop.f32.mrf.mxu0
      %1480 = vmatmul.bf16.gmra.mxu0 %v1314
      %v1481 = vpop.f32.mrf.mxu0
      %v1482 = vpop.f32.mrf.mxu0
      %v1483 = vadd.f32 0.0, %v1482
      %1484 = vmatmul.bf16.gmra.mxu0 %v1317
      %v1485 = vpop.f32.mrf.mxu0
      %v1486 = vadd.f32 0.0, %v1485
      %v1487 = vpop.f32.mrf.mxu0
      %v1488 = vadd.f32 0.0, %v1487
      %1489 = vmatmul.bf16.gmra.mxu0 %v1320
      %v1490 = vpop.f32.mrf.mxu0
      %v1491 = vpop.f32.mrf.mxu0
      %1492 = vmatmul.bf16.gmra.mxu0 %v1323
      %v1493 = vpop.f32.mrf.mxu0
      %v1494 = vpop.f32.mrf.mxu0
      %v1495 = vadd.f32 0.0, %v1494
      %1496 = vmatmul.bf16.gmra.mxu0 %v1326
      %v1497 = vpop.f32.mrf.mxu0
      %v1498 = vadd.f32 0.0, %v1497
      %v1499 = vpop.f32.mrf.mxu0
      %v1500 = vadd.f32 0.0, %v1499
      %1501 = vmatmul.bf16.gmra.mxu0 %v1329
      %v1502 = vpop.f32.mrf.mxu0
      %v1503 = vpop.f32.mrf.mxu0
      %1504 = vmatmul.bf16.gmra.mxu0 %v1332
      %v1505 = vpop.f32.mrf.mxu0
      %v1506 = vpop.f32.mrf.mxu0
      %v1507 = vadd.f32 0.0, %v1506
      %1508 = vmatmul.bf16.gmra.mxu0 %v1335
      %v1509 = vpop.f32.mrf.mxu0
      %v1510 = vadd.f32 0.0, %v1509
      %v1511 = vpop.f32.mrf.mxu0
      %v1512 = vadd.f32 0.0, %v1511
      %1513 = vmatmul.bf16.gmra.mxu0 %v1338
      %v1514 = vpop.f32.mrf.mxu0
      %v1515 = vpop.f32.mrf.mxu0
      %1516 = vmatmul.bf16.gmra.mxu0 %v1341
      %v1517 = vpop.f32.mrf.mxu0
      %v1518 = vpop.f32.mrf.mxu0
      %v1519 = vadd.f32 0.0, %v1518
      %1520 = vmatmul.bf16.gmra.mxu0 %v1344
      %v1521 = vpop.f32.mrf.mxu0
      %v1522 = vadd.f32 0.0, %v1521
      %v1523 = vpop.f32.mrf.mxu0
      %v1524 = vadd.f32 0.0, %v1523
      %1525 = vmatmul.bf16.gmra.mxu0 %v1347
      %v1526 = vpop.f32.mrf.mxu0
      %v1527 = vpop.f32.mrf.mxu0
      %1528 = vmatmul.bf16.gmra.mxu0 %v1350
      %v1529 = vpop.f32.mrf.mxu0
      %v1530 = vpop.f32.mrf.mxu0
      %v1531 = vadd.f32 0.0, %v1530
      %1532 = vmatmul.bf16.gmra.mxu0 %v1353
      %v1533 = vpop.f32.mrf.mxu0
      %v1534 = vadd.f32 0.0, %v1533
      %v1535 = vpop.f32.mrf.mxu0
      %v1536 = vadd.f32 0.0, %v1535
      %1537 = vmatmul.bf16.gmra.mxu0 %v1356
      %v1538 = vpop.f32.mrf.mxu0
      %v1539 = vpop.f32.mrf.mxu0
      %1540 = vmatmul.bf16.gmra.mxu0 %v1359
      %v1541 = vpop.f32.mrf.mxu0
      %v1542 = vpop.f32.mrf.mxu0
      %v1543 = vadd.f32 0.0, %v1542
      %1544 = vmatmul.bf16.gmra.mxu0 %v1362
      %v1545 = vpop.f32.mrf.mxu0
      %v1546 = vadd.f32 0.0, %v1545
      %v1547 = vpop.f32.mrf.mxu0
      %v1548 = vadd.f32 0.0, %v1547
      %1549 = vmatmul.bf16.gmra.mxu0 %v1365
      %v1550 = vpop.f32.mrf.mxu0
      %v1551 = vpop.f32.mrf.mxu0
      %1552 = vmatmul.bf16.gmra.mxu0 %v1368
      %v1553 = vpop.f32.mrf.mxu0
      %v1554 = vpop.f32.mrf.mxu0
      %v1555 = vadd.f32 0.0, %v1554
      %1556 = vmatmul.bf16.gmra.mxu0 %v1371
      %v1557 = vpop.f32.mrf.mxu0
      %v1558 = vadd.f32 0.0, %v1557
      %v1559 = vpop.f32.mrf.mxu0
      %v1560 = vadd.f32 0.0, %v1559
      %1561 = vmatmul.bf16.gmra.mxu0 %v1374
      %v1562 = vpop.f32.mrf.mxu0
      %v1563 = vpop.f32.mrf.mxu0
      %1564 = vmatmul.bf16.gmra.mxu0 %v1377
      %v1565 = vpop.f32.mrf.mxu0
      %v1566 = vpop.f32.mrf.mxu0
      %v1567 = vadd.f32 0.0, %v1566
      %1568 = vmatmul.bf16.gmra.mxu0 %v1380
      %v1569 = vpop.f32.mrf.mxu0
      %v1570 = vadd.f32 0.0, %v1569
      %v1571 = vpop.f32.mrf.mxu0
      %v1572 = vadd.f32 0.0, %v1571
      %1573 = vmatmul.bf16.gmra.mxu0 %v1383
      %v1574 = vpop.f32.mrf.mxu0
      %v1575 = vpop.f32.mrf.mxu0
      %1576 = vmatmul.bf16.gmra.mxu0 %v1386
      %v1577 = vpop.f32.mrf.mxu0
      %v1578 = vpop.f32.mrf.mxu0
      %v1579 = vadd.f32 0.0, %v1578
      %1580 = vmatmul.bf16.gmra.mxu0 %v1389
      %v1581 = vpop.f32.mrf.mxu0
      %v1582 = vadd.f32 0.0, %v1581
      %v1583 = vpop.f32.mrf.mxu0
      %v1584 = vadd.f32 0.0, %v1583
      %1585 = vmatmul.bf16.gmra.mxu0 %v1392
      %v1586 = vpop.f32.mrf.mxu0
      %v1587 = vpop.f32.mrf.mxu0
      %1588 = vmatmul.bf16.gmra.mxu0 %v1395
      %v1589 = vpop.f32.mrf.mxu0
      %v1590 = vpop.f32.mrf.mxu0
      %v1591 = vadd.f32 0.0, %v1590
      %1592 = vmatmul.bf16.gmra.mxu0 %v1398
      %v1593 = vpop.f32.mrf.mxu0
      %v1594 = vadd.f32 0.0, %v1593
      %v1595 = vpop.f32.mrf.mxu0
      %v1596 = vadd.f32 0.0, %v1595
      %1597 = vmatmul.bf16.gmra.mxu0 %v1401
      %v1598 = vpop.f32.mrf.mxu0
      %v1599 = vpop.f32.mrf.mxu0
      %1600 = vmatmul.bf16.gmra.mxu0 %v1404
      %v1601 = vpop.f32.mrf.mxu0
      %v1602 = vpop.f32.mrf.mxu0
      %v1603 = vadd.f32 0.0, %v1602
      %1604 = vmatmul.bf16.gmra.mxu0 %v1407
      %v1605 = vpop.f32.mrf.mxu0
      %v1606 = vadd.f32 0.0, %v1605
      %v1607 = vpop.f32.mrf.mxu0
      %v1608 = vadd.f32 0.0, %v1607
      %1609 = vmatmul.bf16.gmra.mxu0 %v1410
      %v1610 = vpop.f32.mrf.mxu0
      %v1611 = vpop.f32.mrf.mxu0
      %1612 = vmatmul.bf16.gmra.mxu0 %v1413
      %v1613 = vpop.f32.mrf.mxu0
      %v1614 = vpop.f32.mrf.mxu0
      %v1615 = vadd.f32 0.0, %v1614
      %1616 = vmatmul.bf16.gmra.mxu0 %v1416
      %v1617 = vpop.f32.mrf.mxu0
      %v1618 = vadd.f32 0.0, %v1617
      %v1619 = vpop.f32.mrf.mxu0
      %v1620 = vadd.f32 0.0, %v1619
      %1621 = vmatmul.bf16.gmra.mxu0 %v1419
      %v1622 = vpop.f32.mrf.mxu0
      %v1623 = vpop.f32.mrf.mxu0
      %1624 = vdwg.mxu0
      %v1721 = vunpack.c.l.b16 %v838
      %v1722 = vunpack.c.l.b16 %v839
      %v1723 = vunpack.c.l.b16 %v840
      %v1724 = vunpack.c.l.b16 %v841
      %v1725 = vunpack.c.l.b16 %v842
      %v1726 = vunpack.c.l.b16 %v843
      %v1727 = vunpack.c.l.b16 %v844
      %v1728 = vunpack.c.l.b16 %v845
      %v1729 = vunpack.c.l.b16 %v846
      %v1730 = vunpack.c.l.b16 %v847
      %v1731 = vunpack.c.l.b16 %v848
      %v1732 = vunpack.c.l.b16 %v849
      %v1733 = vunpack.c.l.b16 %v850
      %v1734 = vunpack.c.l.b16 %v851
      %v1735 = vunpack.c.l.b16 %v852
      %v1736 = vunpack.c.l.b16 %v853
      %v1737 = vunpack.c.l.b16 %v854
      %v1738 = vunpack.c.l.b16 %v855
      %v1739 = vunpack.c.l.b16 %v856
      %v1740 = vunpack.c.l.b16 %v857
      %v1741 = vunpack.c.l.b16 %v858
      %v1742 = vunpack.c.l.b16 %v859
      %v1743 = vunpack.c.l.b16 %v860
      %v1744 = vunpack.c.l.b16 %v861
      %v1745 = vunpack.c.l.b16 %v862
      %v1746 = vunpack.c.l.b16 %v863
      %v1747 = vunpack.c.l.b16 %v864
      %v1748 = vunpack.c.l.b16 %v865
      %v1749 = vunpack.c.l.b16 %v866
      %v1750 = vunpack.c.l.b16 %v867
      %v1751 = vunpack.c.l.b16 %v868
      %v1752 = vunpack.c.l.b16 %v869
      %v1753 = vunpack.c.l.b16 %v870
      %v1754 = vunpack.c.l.b16 %v871
      %v1755 = vunpack.c.l.b16 %v872
      %v1756 = vunpack.c.l.b16 %v873
      %v1757 = vunpack.c.l.b16 %v874
      %v1758 = vunpack.c.l.b16 %v875
      %v1759 = vunpack.c.l.b16 %v876
      %v1760 = vunpack.c.l.b16 %v877
      %v1761 = vunpack.c.l.b16 %v878
      %v1762 = vunpack.c.l.b16 %v879
      %v1763 = vunpack.c.l.b16 %v880
      %v1764 = vunpack.c.l.b16 %v881
      %v1765 = vunpack.c.l.b16 %v882
      %v1766 = vunpack.c.l.b16 %v883
      %v1767 = vunpack.c.l.b16 %v884
      %v1768 = vunpack.c.l.b16 %v885
      %v1769 = vunpack.c.l.b16 %v886
      %v1770 = vunpack.c.l.b16 %v887
      %v1771 = vunpack.c.l.b16 %v888
      %v1772 = vunpack.c.l.b16 %v889
      %v1773 = vunpack.c.l.b16 %v890
      %v1774 = vunpack.c.l.b16 %v891
      %v1775 = vunpack.c.l.b16 %v892
      %v1776 = vunpack.c.l.b16 %v893
      %v1777 = vunpack.c.l.b16 %v894
      %v1778 = vunpack.c.l.b16 %v895
      %v1779 = vunpack.c.l.b16 %v896
      %v1780 = vunpack.c.l.b16 %v897
      %v1781 = vunpack.c.l.b16 %v898
      %v1782 = vunpack.c.l.b16 %v899
      %v1783 = vunpack.c.l.b16 %v900
      %v1784 = vunpack.c.l.b16 %v901
      %v1785 = vunpack.c.l.b16 %v902
      %v1786 = vunpack.c.l.b16 %v903
      %v1787 = vunpack.c.l.b16 %v904
      %v1788 = vunpack.c.l.b16 %v905
      %v1789 = vunpack.c.l.b16 %v906
      %v1790 = vunpack.c.l.b16 %v907
      %v1791 = vunpack.c.l.b16 %v908
      %v1792 = vunpack.c.l.b16 %v909
      %v1793 = vunpack.c.l.b16 %v910
      %v1794 = vunpack.c.l.b16 %v911
      %v1795 = vunpack.c.l.b16 %v912
      %v1796 = vunpack.c.l.b16 %v913
      %v1797 = vunpack.c.l.b16 %v914
      %v1798 = vunpack.c.l.b16 %v915
      %v1799 = vunpack.c.l.b16 %v916
      %v1800 = vunpack.c.l.b16 %v917
      %v1801 = vunpack.c.l.b16 %v918
      %v1802 = vunpack.c.l.b16 %v919
      %v1803 = vunpack.c.l.b16 %v920
      %v1804 = vunpack.c.l.b16 %v921
      %v1805 = vunpack.c.l.b16 %v922
      %v1806 = vunpack.c.l.b16 %v923
      %v1807 = vunpack.c.l.b16 %v924
      %v1808 = vunpack.c.l.b16 %v925
      %v1809 = vunpack.c.l.b16 %v926
      %v1810 = vunpack.c.l.b16 %v927
      %v1811 = vunpack.c.l.b16 %v928
      %v1812 = vunpack.c.l.b16 %v929
      %v1813 = vunpack.c.l.b16 %v930
      %v1814 = vunpack.c.l.b16 %v931
      %v1815 = vunpack.c.l.b16 %v932
      %v1816 = vunpack.c.l.b16 %v933
      %v1817 = vpack.c.b16 %v1722, %v1721
      %v1818 = vpack.c.b16 %v1724, %v1723
      %v1819 = vpack.c.b16 %v1726, %v1725
      %v1820 = vpack.c.b16 %v1728, %v1727
      %v1821 = vpack.c.b16 %v1730, %v1729
      %v1822 = vpack.c.b16 %v1732, %v1731
      %v1823 = vpack.c.b16 %v1734, %v1733
      %v1824 = vpack.c.b16 %v1736, %v1735
      %v1825 = vpack.c.b16 %v1738, %v1737
      %v1826 = vpack.c.b16 %v1740, %v1739
      %v1827 = vpack.c.b16 %v1742, %v1741
      %v1828 = vpack.c.b16 %v1744, %v1743
      %v1829 = vpack.c.b16 %v1746, %v1745
      %v1830 = vpack.c.b16 %v1748, %v1747
      %v1831 = vpack.c.b16 %v1750, %v1749
      %v1832 = vpack.c.b16 %v1752, %v1751
      %v1833 = vpack.c.b16 %v1754, %v1753
      %v1834 = vpack.c.b16 %v1756, %v1755
      %v1835 = vpack.c.b16 %v1758, %v1757
      %v1836 = vpack.c.b16 %v1760, %v1759
      %v1837 = vpack.c.b16 %v1762, %v1761
      %v1838 = vpack.c.b16 %v1764, %v1763
      %v1839 = vpack.c.b16 %v1766, %v1765
      %v1840 = vpack.c.b16 %v1768, %v1767
      %v1841 = vpack.c.b16 %v1770, %v1769
      %v1842 = vpack.c.b16 %v1772, %v1771
      %v1843 = vpack.c.b16 %v1774, %v1773
      %v1844 = vpack.c.b16 %v1776, %v1775
      %v1845 = vpack.c.b16 %v1778, %v1777
      %v1846 = vpack.c.b16 %v1780, %v1779
      %v1847 = vpack.c.b16 %v1782, %v1781
      %v1848 = vpack.c.b16 %v1784, %v1783
      %v1849 = vpack.c.b16 %v1786, %v1785
      %v1850 = vpack.c.b16 %v1788, %v1787
      %v1851 = vpack.c.b16 %v1790, %v1789
      %v1852 = vpack.c.b16 %v1792, %v1791
      %v1853 = vpack.c.b16 %v1794, %v1793
      %v1854 = vpack.c.b16 %v1796, %v1795
      %v1855 = vpack.c.b16 %v1798, %v1797
      %v1856 = vpack.c.b16 %v1800, %v1799
      %v1857 = vpack.c.b16 %v1802, %v1801
      %v1858 = vpack.c.b16 %v1804, %v1803
      %v1859 = vpack.c.b16 %v1806, %v1805
      %v1860 = vpack.c.b16 %v1808, %v1807
      %v1861 = vpack.c.b16 %v1810, %v1809
      %v1862 = vpack.c.b16 %v1812, %v1811
      %v1863 = vpack.c.b16 %v1814, %v1813
      %v1864 = vpack.c.b16 %v1816, %v1815
      %v1866 = vsel %vm393, %v1817, 0
      %v1869 = vsel %vm393, %v1818, 0
      %v1872 = vsel %vm393, %v1819, 0
      %v1875 = vsel %vm393, %v1820, 0
      %v1878 = vsel %vm393, %v1821, 0
      %v1881 = vsel %vm393, %v1822, 0
      %v1884 = vsel %vm393, %v1823, 0
      %v1887 = vsel %vm393, %v1824, 0
      %v1890 = vsel %vm393, %v1825, 0
      %v1893 = vsel %vm393, %v1826, 0
      %v1896 = vsel %vm393, %v1827, 0
      %v1899 = vsel %vm393, %v1828, 0
      %v1902 = vsel %vm393, %v1829, 0
      %v1905 = vsel %vm393, %v1830, 0
      %v1908 = vsel %vm393, %v1831, 0
      %v1911 = vsel %vm393, %v1832, 0
      %v1914 = vsel %vm393, %v1833, 0
      %v1917 = vsel %vm393, %v1834, 0
      %v1920 = vsel %vm393, %v1835, 0
      %v1923 = vsel %vm393, %v1836, 0
      %v1926 = vsel %vm393, %v1837, 0
      %v1929 = vsel %vm393, %v1838, 0
      %v1932 = vsel %vm393, %v1839, 0
      %v1935 = vsel %vm393, %v1840, 0
      %v1938 = vsel %vm393, %v1841, 0
      %v1941 = vsel %vm393, %v1842, 0
      %v1944 = vsel %vm393, %v1843, 0
      %v1947 = vsel %vm393, %v1844, 0
      %v1950 = vsel %vm393, %v1845, 0
      %v1953 = vsel %vm393, %v1846, 0
      %v1956 = vsel %vm393, %v1847, 0
      %v1959 = vsel %vm393, %v1848, 0
      %v1962 = vsel %vm393, %v1849, 0
      %v1965 = vsel %vm393, %v1850, 0
      %v1968 = vsel %vm393, %v1851, 0
      %v1971 = vsel %vm393, %v1852, 0
      %v1974 = vsel %vm393, %v1853, 0
      %v1977 = vsel %vm393, %v1854, 0
      %v1980 = vsel %vm393, %v1855, 0
      %v1983 = vsel %vm393, %v1856, 0
      %v1986 = vsel %vm393, %v1857, 0
      %v1989 = vsel %vm393, %v1858, 0
      %v1992 = vsel %vm393, %v1859, 0
      %v1995 = vsel %vm393, %v1860, 0
      %v1998 = vsel %vm393, %v1861, 0
      %v2001 = vsel %vm393, %v1862, 0
      %v2004 = vsel %vm393, %v1863, 0
      %v2007 = vsel %vm393, %v1864, 0
      %v2010 = vsel %vm442, %v934, 0
      %2012 = vmatpush.bf16.msra.mxu0 0
      %2013 = vmatpush.bf16.msra.mxu0 0
      %2014 = vmatpush.bf16.msra.mxu0 0
      %2015 = vmatpush.bf16.msra.mxu0 0
      %2016 = vmatpush.bf16.msra.mxu0 0
      %2017 = vmatpush.bf16.msra.mxu0 0
      %2018 = vmatpush.bf16.msra.mxu0 0
      %2019 = vmatpush.bf16.msra.mxu0 %v2010
      %2020 = vmatmul.bf16.gmra.mxu0 %v1866
      %v2021 = vpop.f32.mrf.mxu0
      %v2022 = vpop.f32.mrf.mxu0
      %v2023 = vadd.f32 %v1435, %v2022
      %2024 = vmatmul.bf16.gmra.mxu0 %v1869
      %v2025 = vpop.f32.mrf.mxu0
      %v2026 = vadd.f32 %v1438, %v2025
      %v2027 = vpop.f32.mrf.mxu0
      %v2028 = vadd.f32 %v1440, %v2027
      %2029 = vmatmul.bf16.gmra.mxu0 %v1872
      %v2030 = vpop.f32.mrf.mxu0
      %v2031 = vpop.f32.mrf.mxu0
      %2032 = vmatmul.bf16.gmra.mxu0 %v1875
      %v2033 = vpop.f32.mrf.mxu0
      %v2034 = vpop.f32.mrf.mxu0
      %v2035 = vadd.f32 %v1447, %v2034
      %2036 = vmatmul.bf16.gmra.mxu0 %v1878
      %v2037 = vpop.f32.mrf.mxu0
      %v2038 = vadd.f32 %v1450, %v2037
      %v2039 = vpop.f32.mrf.mxu0
      %v2040 = vadd.f32 %v1452, %v2039
      %2041 = vmatmul.bf16.gmra.mxu0 %v1881
      %v2042 = vpop.f32.mrf.mxu0
      %v2043 = vpop.f32.mrf.mxu0
      %2044 = vmatmul.bf16.gmra.mxu0 %v1884
      %v2045 = vpop.f32.mrf.mxu0
      %v2046 = vpop.f32.mrf.mxu0
      %v2047 = vadd.f32 %v1459, %v2046
      %2048 = vmatmul.bf16.gmra.mxu0 %v1887
      %v2049 = vpop.f32.mrf.mxu0
      %v2050 = vadd.f32 %v1462, %v2049
      %v2051 = vpop.f32.mrf.mxu0
      %v2052 = vadd.f32 %v1464, %v2051
      %2053 = vmatmul.bf16.gmra.mxu0 %v1890
      %v2054 = vpop.f32.mrf.mxu0
      %v2055 = vpop.f32.mrf.mxu0
      %2056 = vmatmul.bf16.gmra.mxu0 %v1893
      %v2057 = vpop.f32.mrf.mxu0
      %v2058 = vpop.f32.mrf.mxu0
      %v2059 = vadd.f32 %v1471, %v2058
      %2060 = vmatmul.bf16.gmra.mxu0 %v1896
      %v2061 = vpop.f32.mrf.mxu0
      %v2062 = vadd.f32 %v1474, %v2061
      %v2063 = vpop.f32.mrf.mxu0
      %v2064 = vadd.f32 %v1476, %v2063
      %2065 = vmatmul.bf16.gmra.mxu0 %v1899
      %v2066 = vpop.f32.mrf.mxu0
      %v2067 = vpop.f32.mrf.mxu0
      %2068 = vmatmul.bf16.gmra.mxu0 %v1902
      %v2069 = vpop.f32.mrf.mxu0
      %v2070 = vpop.f32.mrf.mxu0
      %v2071 = vadd.f32 %v1483, %v2070
      %2072 = vmatmul.bf16.gmra.mxu0 %v1905
      %v2073 = vpop.f32.mrf.mxu0
      %v2074 = vadd.f32 %v1486, %v2073
      %v2075 = vpop.f32.mrf.mxu0
      %v2076 = vadd.f32 %v1488, %v2075
      %2077 = vmatmul.bf16.gmra.mxu0 %v1908
      %v2078 = vpop.f32.mrf.mxu0
      %v2079 = vpop.f32.mrf.mxu0
      %2080 = vmatmul.bf16.gmra.mxu0 %v1911
      %v2081 = vpop.f32.mrf.mxu0
      %v2082 = vpop.f32.mrf.mxu0
      %v2083 = vadd.f32 %v1495, %v2082
      %2084 = vmatmul.bf16.gmra.mxu0 %v1914
      %v2085 = vpop.f32.mrf.mxu0
      %v2086 = vadd.f32 %v1498, %v2085
      %v2087 = vpop.f32.mrf.mxu0
      %v2088 = vadd.f32 %v1500, %v2087
      %2089 = vmatmul.bf16.gmra.mxu0 %v1917
      %v2090 = vpop.f32.mrf.mxu0
      %v2091 = vpop.f32.mrf.mxu0
      %2092 = vmatmul.bf16.gmra.mxu0 %v1920
      %v2093 = vpop.f32.mrf.mxu0
      %v2094 = vpop.f32.mrf.mxu0
      %v2095 = vadd.f32 %v1507, %v2094
      %2096 = vmatmul.bf16.gmra.mxu0 %v1923
      %v2097 = vpop.f32.mrf.mxu0
      %v2098 = vadd.f32 %v1510, %v2097
      %v2099 = vpop.f32.mrf.mxu0
      %v2100 = vadd.f32 %v1512, %v2099
      %2101 = vmatmul.bf16.gmra.mxu0 %v1926
      %v2102 = vpop.f32.mrf.mxu0
      %v2103 = vpop.f32.mrf.mxu0
      %2104 = vmatmul.bf16.gmra.mxu0 %v1929
      %v2105 = vpop.f32.mrf.mxu0
      %v2106 = vpop.f32.mrf.mxu0
      %v2107 = vadd.f32 %v1519, %v2106
      %2108 = vmatmul.bf16.gmra.mxu0 %v1932
      %v2109 = vpop.f32.mrf.mxu0
      %v2110 = vadd.f32 %v1522, %v2109
      %v2111 = vpop.f32.mrf.mxu0
      %v2112 = vadd.f32 %v1524, %v2111
      %2113 = vmatmul.bf16.gmra.mxu0 %v1935
      %v2114 = vpop.f32.mrf.mxu0
      %v2115 = vpop.f32.mrf.mxu0
      %2116 = vmatmul.bf16.gmra.mxu0 %v1938
      %v2117 = vpop.f32.mrf.mxu0
      %v2118 = vpop.f32.mrf.mxu0
      %v2119 = vadd.f32 %v1531, %v2118
      %2120 = vmatmul.bf16.gmra.mxu0 %v1941
      %v2121 = vpop.f32.mrf.mxu0
      %v2122 = vadd.f32 %v1534, %v2121
      %v2123 = vpop.f32.mrf.mxu0
      %v2124 = vadd.f32 %v1536, %v2123
      %2125 = vmatmul.bf16.gmra.mxu0 %v1944
      %v2126 = vpop.f32.mrf.mxu0
      %v2127 = vpop.f32.mrf.mxu0
      %2128 = vmatmul.bf16.gmra.mxu0 %v1947
      %v2129 = vpop.f32.mrf.mxu0
      %v2130 = vpop.f32.mrf.mxu0
      %v2131 = vadd.f32 %v1543, %v2130
      %2132 = vmatmul.bf16.gmra.mxu0 %v1950
      %v2133 = vpop.f32.mrf.mxu0
      %v2134 = vadd.f32 %v1546, %v2133
      %v2135 = vpop.f32.mrf.mxu0
      %v2136 = vadd.f32 %v1548, %v2135
      %2137 = vmatmul.bf16.gmra.mxu0 %v1953
      %v2138 = vpop.f32.mrf.mxu0
      %v2139 = vpop.f32.mrf.mxu0
      %2140 = vmatmul.bf16.gmra.mxu0 %v1956
      %v2141 = vpop.f32.mrf.mxu0
      %v2142 = vpop.f32.mrf.mxu0
      %v2143 = vadd.f32 %v1555, %v2142
      %2144 = vmatmul.bf16.gmra.mxu0 %v1959
      %v2145 = vpop.f32.mrf.mxu0
      %v2146 = vadd.f32 %v1558, %v2145
      %v2147 = vpop.f32.mrf.mxu0
      %v2148 = vadd.f32 %v1560, %v2147
      %2149 = vmatmul.bf16.gmra.mxu0 %v1962
      %v2150 = vpop.f32.mrf.mxu0
      %v2151 = vpop.f32.mrf.mxu0
      %2152 = vmatmul.bf16.gmra.mxu0 %v1965
      %v2153 = vpop.f32.mrf.mxu0
      %v2154 = vpop.f32.mrf.mxu0
      %v2155 = vadd.f32 %v1567, %v2154
      %2156 = vmatmul.bf16.gmra.mxu0 %v1968
      %v2157 = vpop.f32.mrf.mxu0
      %v2158 = vadd.f32 %v1570, %v2157
      %v2159 = vpop.f32.mrf.mxu0
      %v2160 = vadd.f32 %v1572, %v2159
      %2161 = vmatmul.bf16.gmra.mxu0 %v1971
      %v2162 = vpop.f32.mrf.mxu0
      %v2163 = vpop.f32.mrf.mxu0
      %2164 = vmatmul.bf16.gmra.mxu0 %v1974
      %v2165 = vpop.f32.mrf.mxu0
      %v2166 = vpop.f32.mrf.mxu0
      %v2167 = vadd.f32 %v1579, %v2166
      %2168 = vmatmul.bf16.gmra.mxu0 %v1977
      %v2169 = vpop.f32.mrf.mxu0
      %v2170 = vadd.f32 %v1582, %v2169
      %v2171 = vpop.f32.mrf.mxu0
      %v2172 = vadd.f32 %v1584, %v2171
      %2173 = vmatmul.bf16.gmra.mxu0 %v1980
      %v2174 = vpop.f32.mrf.mxu0
      %v2175 = vpop.f32.mrf.mxu0
      %2176 = vmatmul.bf16.gmra.mxu0 %v1983
      %v2177 = vpop.f32.mrf.mxu0
      %v2178 = vpop.f32.mrf.mxu0
      %v2179 = vadd.f32 %v1591, %v2178
      %2180 = vmatmul.bf16.gmra.mxu0 %v1986
      %v2181 = vpop.f32.mrf.mxu0
      %v2182 = vadd.f32 %v1594, %v2181
      %v2183 = vpop.f32.mrf.mxu0
      %v2184 = vadd.f32 %v1596, %v2183
      %2185 = vmatmul.bf16.gmra.mxu0 %v1989
      %v2186 = vpop.f32.mrf.mxu0
      %v2187 = vpop.f32.mrf.mxu0
      %2188 = vmatmul.bf16.gmra.mxu0 %v1992
      %v2189 = vpop.f32.mrf.mxu0
      %v2190 = vpop.f32.mrf.mxu0
      %v2191 = vadd.f32 %v1603, %v2190
      %2192 = vmatmul.bf16.gmra.mxu0 %v1995
      %v2193 = vpop.f32.mrf.mxu0
      %v2194 = vadd.f32 %v1606, %v2193
      %v2195 = vpop.f32.mrf.mxu0
      %v2196 = vadd.f32 %v1608, %v2195
      %2197 = vmatmul.bf16.gmra.mxu0 %v1998
      %v2198 = vpop.f32.mrf.mxu0
      %v2199 = vpop.f32.mrf.mxu0
      %2200 = vmatmul.bf16.gmra.mxu0 %v2001
      %v2201 = vpop.f32.mrf.mxu0
      %v2202 = vpop.f32.mrf.mxu0
      %v2203 = vadd.f32 %v1615, %v2202
      %2204 = vmatmul.bf16.gmra.mxu0 %v2004
      %v2205 = vpop.f32.mrf.mxu0
      %v2206 = vadd.f32 %v1618, %v2205
      %v2207 = vpop.f32.mrf.mxu0
      %v2208 = vadd.f32 %v1620, %v2207
      %2209 = vmatmul.bf16.gmra.mxu0 %v2007
      %v2210 = vpop.f32.mrf.mxu0
      %v2211 = vpop.f32.mrf.mxu0
      %2212 = vdwg.mxu0
      %s2213 = scalar_lea.vmem %s4, 8
      %v2214 = vld [vmem:[%s2213] sm:$0x3]
      %v2216 = vsel %vm442, %v2214, 0
      %2218 = vmatpush.bf16.msra.mxu0 0
      %2219 = vmatpush.bf16.msra.mxu0 0
      %2220 = vmatpush.bf16.msra.mxu0 0
      %2221 = vmatpush.bf16.msra.mxu0 0
      %2222 = vmatpush.bf16.msra.mxu0 0
      %2223 = vmatpush.bf16.msra.mxu0 0
      %2224 = vmatpush.bf16.msra.mxu0 0
      %2225 = vmatpush.bf16.msra.mxu0 %v2216
      %2226 = vmatmul.bf16.gmra.mxu0 %v1278
      %v2227 = vpop.f32.mrf.mxu0
      %v2228 = vpop.f32.mrf.mxu0
      %2229 = vmatmul.bf16.gmra.mxu0 %v1281
      %v2230 = vpop.f32.mrf.mxu0
      %v2231 = vadd.f32 0.0, %v2230
      %v2232 = vpop.f32.mrf.mxu0
      %v2233 = vadd.f32 0.0, %v2232
      %2234 = vmatmul.bf16.gmra.mxu0 %v1284
      %v2235 = vpop.f32.mrf.mxu0
      %v2236 = vpop.f32.mrf.mxu0
      %2237 = vmatmul.bf16.gmra.mxu0 %v1287
      %v2238 = vpop.f32.mrf.mxu0
      %v2239 = vpop.f32.mrf.mxu0
      %2240 = vmatmul.bf16.gmra.mxu0 %v1290
      %v2241 = vpop.f32.mrf.mxu0
      %v2242 = vadd.f32 0.0, %v2241
      %v2243 = vpop.f32.mrf.mxu0
      %v2244 = vadd.f32 0.0, %v2243
      %2245 = vmatmul.bf16.gmra.mxu0 %v1293
      %v2246 = vpop.f32.mrf.mxu0
      %v2247 = vpop.f32.mrf.mxu0
      %2248 = vmatmul.bf16.gmra.mxu0 %v1296
      %v2249 = vpop.f32.mrf.mxu0
      %v2250 = vpop.f32.mrf.mxu0
      %2251 = vmatmul.bf16.gmra.mxu0 %v1299
      %v2252 = vpop.f32.mrf.mxu0
      %v2253 = vadd.f32 0.0, %v2252
      %v2254 = vpop.f32.mrf.mxu0
      %v2255 = vadd.f32 0.0, %v2254
      %2256 = vmatmul.bf16.gmra.mxu0 %v1302
      %v2257 = vpop.f32.mrf.mxu0
      %v2258 = vpop.f32.mrf.mxu0
      %2259 = vmatmul.bf16.gmra.mxu0 %v1305
      %v2260 = vpop.f32.mrf.mxu0
      %v2261 = vpop.f32.mrf.mxu0
      %2262 = vmatmul.bf16.gmra.mxu0 %v1308
      %v2263 = vpop.f32.mrf.mxu0
      %v2264 = vadd.f32 0.0, %v2263
      %v2265 = vpop.f32.mrf.mxu0
      %v2266 = vadd.f32 0.0, %v2265
      %2267 = vmatmul.bf16.gmra.mxu0 %v1311
      %v2268 = vpop.f32.mrf.mxu0
      %v2269 = vpop.f32.mrf.mxu0
      %2270 = vmatmul.bf16.gmra.mxu0 %v1314
      %v2271 = vpop.f32.mrf.mxu0
      %v2272 = vpop.f32.mrf.mxu0
      %2273 = vmatmul.bf16.gmra.mxu0 %v1317
      %v2274 = vpop.f32.mrf.mxu0
      %v2275 = vadd.f32 0.0, %v2274
      %v2276 = vpop.f32.mrf.mxu0
      %v2277 = vadd.f32 0.0, %v2276
      %2278 = vmatmul.bf16.gmra.mxu0 %v1320
      %v2279 = vpop.f32.mrf.mxu0
      %v2280 = vpop.f32.mrf.mxu0
      %2281 = vmatmul.bf16.gmra.mxu0 %v1323
      %v2282 = vpop.f32.mrf.mxu0
      %v2283 = vpop.f32.mrf.mxu0
      %2284 = vmatmul.bf16.gmra.mxu0 %v1326
      %v2285 = vpop.f32.mrf.mxu0
      %v2286 = vadd.f32 0.0, %v2285
      %v2287 = vpop.f32.mrf.mxu0
      %v2288 = vadd.f32 0.0, %v2287
      %2289 = vmatmul.bf16.gmra.mxu0 %v1329
      %v2290 = vpop.f32.mrf.mxu0
      %v2291 = vpop.f32.mrf.mxu0
      %2292 = vmatmul.bf16.gmra.mxu0 %v1332
      %v2293 = vpop.f32.mrf.mxu0
      %v2294 = vpop.f32.mrf.mxu0
      %2295 = vmatmul.bf16.gmra.mxu0 %v1335
      %v2296 = vpop.f32.mrf.mxu0
      %v2297 = vadd.f32 0.0, %v2296
      %v2298 = vpop.f32.mrf.mxu0
      %v2299 = vadd.f32 0.0, %v2298
      %2300 = vmatmul.bf16.gmra.mxu0 %v1338
      %v2301 = vpop.f32.mrf.mxu0
      %v2302 = vpop.f32.mrf.mxu0
      %2303 = vmatmul.bf16.gmra.mxu0 %v1341
      %v2304 = vpop.f32.mrf.mxu0
      %v2305 = vpop.f32.mrf.mxu0
      %2306 = vmatmul.bf16.gmra.mxu0 %v1344
      %v2307 = vpop.f32.mrf.mxu0
      %v2308 = vadd.f32 0.0, %v2307
      %v2309 = vpop.f32.mrf.mxu0
      %v2310 = vadd.f32 0.0, %v2309
      %2311 = vmatmul.bf16.gmra.mxu0 %v1347
      %v2312 = vpop.f32.mrf.mxu0
      %v2313 = vpop.f32.mrf.mxu0
      %2314 = vmatmul.bf16.gmra.mxu0 %v1350
      %v2315 = vpop.f32.mrf.mxu0
      %v2316 = vpop.f32.mrf.mxu0
      %2317 = vmatmul.bf16.gmra.mxu0 %v1353
      %v2318 = vpop.f32.mrf.mxu0
      %v2319 = vadd.f32 0.0, %v2318
      %v2320 = vpop.f32.mrf.mxu0
      %v2321 = vadd.f32 0.0, %v2320
      %2322 = vmatmul.bf16.gmra.mxu0 %v1356
      %v2323 = vpop.f32.mrf.mxu0
      %v2324 = vpop.f32.mrf.mxu0
      %2325 = vmatmul.bf16.gmra.mxu0 %v1359
      %v2326 = vpop.f32.mrf.mxu0
      %v2327 = vpop.f32.mrf.mxu0
      %2328 = vmatmul.bf16.gmra.mxu0 %v1362
      %v2329 = vpop.f32.mrf.mxu0
      %v2330 = vadd.f32 0.0, %v2329
      %v2331 = vpop.f32.mrf.mxu0
      %v2332 = vadd.f32 0.0, %v2331
      %2333 = vmatmul.bf16.gmra.mxu0 %v1365
      %v2334 = vpop.f32.mrf.mxu0
      %v2335 = vpop.f32.mrf.mxu0
      %2336 = vmatmul.bf16.gmra.mxu0 %v1368
      %v2337 = vpop.f32.mrf.mxu0
      %v2338 = vpop.f32.mrf.mxu0
      %2339 = vmatmul.bf16.gmra.mxu0 %v1371
      %v2340 = vpop.f32.mrf.mxu0
      %v2341 = vadd.f32 0.0, %v2340
      %v2342 = vpop.f32.mrf.mxu0
      %v2343 = vadd.f32 0.0, %v2342
      %2344 = vmatmul.bf16.gmra.mxu0 %v1374
      %v2345 = vpop.f32.mrf.mxu0
      %v2346 = vpop.f32.mrf.mxu0
      %2347 = vmatmul.bf16.gmra.mxu0 %v1377
      %v2348 = vpop.f32.mrf.mxu0
      %v2349 = vpop.f32.mrf.mxu0
      %2350 = vmatmul.bf16.gmra.mxu0 %v1380
      %v2351 = vpop.f32.mrf.mxu0
      %v2352 = vadd.f32 0.0, %v2351
      %v2353 = vpop.f32.mrf.mxu0
      %v2354 = vadd.f32 0.0, %v2353
      %2355 = vmatmul.bf16.gmra.mxu0 %v1383
      %v2356 = vpop.f32.mrf.mxu0
      %v2357 = vpop.f32.mrf.mxu0
      %2358 = vmatmul.bf16.gmra.mxu0 %v1386
      %v2359 = vpop.f32.mrf.mxu0
      %v2360 = vpop.f32.mrf.mxu0
      %2361 = vmatmul.bf16.gmra.mxu0 %v1389
      %v2362 = vpop.f32.mrf.mxu0
      %v2363 = vadd.f32 0.0, %v2362
      %v2364 = vpop.f32.mrf.mxu0
      %v2365 = vadd.f32 0.0, %v2364
      %2366 = vmatmul.bf16.gmra.mxu0 %v1392
      %v2367 = vpop.f32.mrf.mxu0
      %v2368 = vpop.f32.mrf.mxu0
      %2369 = vmatmul.bf16.gmra.mxu0 %v1395
      %v2370 = vpop.f32.mrf.mxu0
      %v2371 = vpop.f32.mrf.mxu0
      %2372 = vmatmul.bf16.gmra.mxu0 %v1398
      %v2373 = vpop.f32.mrf.mxu0
      %v2374 = vadd.f32 0.0, %v2373
      %v2375 = vpop.f32.mrf.mxu0
      %v2376 = vadd.f32 0.0, %v2375
      %2377 = vmatmul.bf16.gmra.mxu0 %v1401
      %v2378 = vpop.f32.mrf.mxu0
      %v2379 = vpop.f32.mrf.mxu0
      %2380 = vmatmul.bf16.gmra.mxu0 %v1404
      %v2381 = vpop.f32.mrf.mxu0
      %v2382 = vpop.f32.mrf.mxu0
      %2383 = vmatmul.bf16.gmra.mxu0 %v1407
      %v2384 = vpop.f32.mrf.mxu0
      %v2385 = vadd.f32 0.0, %v2384
      %v2386 = vpop.f32.mrf.mxu0
      %v2387 = vadd.f32 0.0, %v2386
      %2388 = vmatmul.bf16.gmra.mxu0 %v1410
      %v2389 = vpop.f32.mrf.mxu0
      %v2390 = vpop.f32.mrf.mxu0
      %2391 = vmatmul.bf16.gmra.mxu0 %v1413
      %v2392 = vpop.f32.mrf.mxu0
      %v2393 = vpop.f32.mrf.mxu0
      %2394 = vmatmul.bf16.gmra.mxu0 %v1416
      %v2395 = vpop.f32.mrf.mxu0
      %v2396 = vadd.f32 0.0, %v2395
      %v2397 = vpop.f32.mrf.mxu0
      %v2398 = vadd.f32 0.0, %v2397
      %2399 = vmatmul.bf16.gmra.mxu0 %v1419
      %v2400 = vpop.f32.mrf.mxu0
      %v2401 = vpop.f32.mrf.mxu0
      %2402 = vdwg.mxu0
      %v2404 = vsel %vm442, %v936, 0
      %2406 = vmatpush.bf16.msra.mxu0 0
      %2407 = vmatpush.bf16.msra.mxu0 0
      %2408 = vmatpush.bf16.msra.mxu0 0
      %2409 = vmatpush.bf16.msra.mxu0 0
      %2410 = vmatpush.bf16.msra.mxu0 0
      %2411 = vmatpush.bf16.msra.mxu0 0
      %2412 = vmatpush.bf16.msra.mxu0 0
      %2413 = vmatpush.bf16.msra.mxu0 %v2404
      %2414 = vmatmul.bf16.gmra.mxu0 %v1866
      %v2415 = vpop.f32.mrf.mxu0
      %v2416 = vpop.f32.mrf.mxu0
      %2417 = vmatmul.bf16.gmra.mxu0 %v1869
      %v2418 = vpop.f32.mrf.mxu0
      %v2419 = vadd.f32 %v2231, %v2418
      %v2420 = vpop.f32.mrf.mxu0
      %v2421 = vadd.f32 %v2233, %v2420
      %2422 = vmatmul.bf16.gmra.mxu0 %v1872
      %v2423 = vpop.f32.mrf.mxu0
      %v2424 = vpop.f32.mrf.mxu0
      %2425 = vmatmul.bf16.gmra.mxu0 %v1875
      %v2426 = vpop.f32.mrf.mxu0
      %v2427 = vpop.f32.mrf.mxu0
      %2428 = vmatmul.bf16.gmra.mxu0 %v1878
      %v2429 = vpop.f32.mrf.mxu0
      %v2430 = vadd.f32 %v2242, %v2429
      %v2431 = vpop.f32.mrf.mxu0
      %v2432 = vadd.f32 %v2244, %v2431
      %2433 = vmatmul.bf16.gmra.mxu0 %v1881
      %v2434 = vpop.f32.mrf.mxu0
      %v2435 = vpop.f32.mrf.mxu0
      %2436 = vmatmul.bf16.gmra.mxu0 %v1884
      %v2437 = vpop.f32.mrf.mxu0
      %v2438 = vpop.f32.mrf.mxu0
      %2439 = vmatmul.bf16.gmra.mxu0 %v1887
      %v2440 = vpop.f32.mrf.mxu0
      %v2441 = vadd.f32 %v2253, %v2440
      %v2442 = vpop.f32.mrf.mxu0
      %v2443 = vadd.f32 %v2255, %v2442
      %2444 = vmatmul.bf16.gmra.mxu0 %v1890
      %v2445 = vpop.f32.mrf.mxu0
      %v2446 = vpop.f32.mrf.mxu0
      %2447 = vmatmul.bf16.gmra.mxu0 %v1893
      %v2448 = vpop.f32.mrf.mxu0
      %v2449 = vpop.f32.mrf.mxu0
      %2450 = vmatmul.bf16.gmra.mxu0 %v1896
      %v2451 = vpop.f32.mrf.mxu0
      %v2452 = vadd.f32 %v2264, %v2451
      %v2453 = vpop.f32.mrf.mxu0
      %v2454 = vadd.f32 %v2266, %v2453
      %2455 = vmatmul.bf16.gmra.mxu0 %v1899
      %v2456 = vpop.f32.mrf.mxu0
      %v2457 = vpop.f32.mrf.mxu0
      %2458 = vmatmul.bf16.gmra.mxu0 %v1902
      %v2459 = vpop.f32.mrf.mxu0
      %v2460 = vpop.f32.mrf.mxu0
      %2461 = vmatmul.bf16.gmra.mxu0 %v1905
      %v2462 = vpop.f32.mrf.mxu0
      %v2463 = vadd.f32 %v2275, %v2462
      %v2464 = vpop.f32.mrf.mxu0
      %v2465 = vadd.f32 %v2277, %v2464
      %2466 = vmatmul.bf16.gmra.mxu0 %v1908
      %v2467 = vpop.f32.mrf.mxu0
      %v2468 = vpop.f32.mrf.mxu0
      %2469 = vmatmul.bf16.gmra.mxu0 %v1911
      %v2470 = vpop.f32.mrf.mxu0
      %v2471 = vpop.f32.mrf.mxu0
      %2472 = vmatmul.bf16.gmra.mxu0 %v1914
      %v2473 = vpop.f32.mrf.mxu0
      %v2474 = vadd.f32 %v2286, %v2473
      %v2475 = vpop.f32.mrf.mxu0
      %v2476 = vadd.f32 %v2288, %v2475
      %2477 = vmatmul.bf16.gmra.mxu0 %v1917
      %v2478 = vpop.f32.mrf.mxu0
      %v2479 = vpop.f32.mrf.mxu0
      %2480 = vmatmul.bf16.gmra.mxu0 %v1920
      %v2481 = vpop.f32.mrf.mxu0
      %v2482 = vpop.f32.mrf.mxu0
      %2483 = vmatmul.bf16.gmra.mxu0 %v1923
      %v2484 = vpop.f32.mrf.mxu0
      %v2485 = vadd.f32 %v2297, %v2484
      %v2486 = vpop.f32.mrf.mxu0
      %v2487 = vadd.f32 %v2299, %v2486
      %2488 = vmatmul.bf16.gmra.mxu0 %v1926
      %v2489 = vpop.f32.mrf.mxu0
      %v2490 = vpop.f32.mrf.mxu0
      %2491 = vmatmul.bf16.gmra.mxu0 %v1929
      %v2492 = vpop.f32.mrf.mxu0
      %v2493 = vpop.f32.mrf.mxu0
      %2494 = vmatmul.bf16.gmra.mxu0 %v1932
      %v2495 = vpop.f32.mrf.mxu0
      %v2496 = vadd.f32 %v2308, %v2495
      %v2497 = vpop.f32.mrf.mxu0
      %v2498 = vadd.f32 %v2310, %v2497
      %2499 = vmatmul.bf16.gmra.mxu0 %v1935
      %v2500 = vpop.f32.mrf.mxu0
      %v2501 = vpop.f32.mrf.mxu0
      %2502 = vmatmul.bf16.gmra.mxu0 %v1938
      %v2503 = vpop.f32.mrf.mxu0
      %v2504 = vpop.f32.mrf.mxu0
      %2505 = vmatmul.bf16.gmra.mxu0 %v1941
      %v2506 = vpop.f32.mrf.mxu0
      %v2507 = vadd.f32 %v2319, %v2506
      %v2508 = vpop.f32.mrf.mxu0
      %v2509 = vadd.f32 %v2321, %v2508
      %2510 = vmatmul.bf16.gmra.mxu0 %v1944
      %v2511 = vpop.f32.mrf.mxu0
      %v2512 = vpop.f32.mrf.mxu0
      %2513 = vmatmul.bf16.gmra.mxu0 %v1947
      %v2514 = vpop.f32.mrf.mxu0
      %v2515 = vpop.f32.mrf.mxu0
      %2516 = vmatmul.bf16.gmra.mxu0 %v1950
      %v2517 = vpop.f32.mrf.mxu0
      %v2518 = vadd.f32 %v2330, %v2517
      %v2519 = vpop.f32.mrf.mxu0
      %v2520 = vadd.f32 %v2332, %v2519
      %2521 = vmatmul.bf16.gmra.mxu0 %v1953
      %v2522 = vpop.f32.mrf.mxu0
      %v2523 = vpop.f32.mrf.mxu0
      %2524 = vmatmul.bf16.gmra.mxu0 %v1956
      %v2525 = vpop.f32.mrf.mxu0
      %v2526 = vpop.f32.mrf.mxu0
      %2527 = vmatmul.bf16.gmra.mxu0 %v1959
      %v2528 = vpop.f32.mrf.mxu0
      %v2529 = vadd.f32 %v2341, %v2528
      %v2530 = vpop.f32.mrf.mxu0
      %v2531 = vadd.f32 %v2343, %v2530
      %2532 = vmatmul.bf16.gmra.mxu0 %v1962
      %v2533 = vpop.f32.mrf.mxu0
      %v2534 = vpop.f32.mrf.mxu0
      %2535 = vmatmul.bf16.gmra.mxu0 %v1965
      %v2536 = vpop.f32.mrf.mxu0
      %v2537 = vpop.f32.mrf.mxu0
      %2538 = vmatmul.bf16.gmra.mxu0 %v1968
      %v2539 = vpop.f32.mrf.mxu0
      %v2540 = vadd.f32 %v2352, %v2539
      %v2541 = vpop.f32.mrf.mxu0
      %v2542 = vadd.f32 %v2354, %v2541
      %2543 = vmatmul.bf16.gmra.mxu0 %v1971
      %v2544 = vpop.f32.mrf.mxu0
      %v2545 = vpop.f32.mrf.mxu0
      %2546 = vmatmul.bf16.gmra.mxu0 %v1974
      %v2547 = vpop.f32.mrf.mxu0
      %v2548 = vpop.f32.mrf.mxu0
      %2549 = vmatmul.bf16.gmra.mxu0 %v1977
      %v2550 = vpop.f32.mrf.mxu0
      %v2551 = vadd.f32 %v2363, %v2550
      %v2552 = vpop.f32.mrf.mxu0
      %v2553 = vadd.f32 %v2365, %v2552
      %2554 = vmatmul.bf16.gmra.mxu0 %v1980
      %v2555 = vpop.f32.mrf.mxu0
      %v2556 = vpop.f32.mrf.mxu0
      %2557 = vmatmul.bf16.gmra.mxu0 %v1983
      %v2558 = vpop.f32.mrf.mxu0
      %v2559 = vpop.f32.mrf.mxu0
      %2560 = vmatmul.bf16.gmra.mxu0 %v1986
      %v2561 = vpop.f32.mrf.mxu0
      %v2562 = vadd.f32 %v2374, %v2561
      %v2563 = vpop.f32.mrf.mxu0
      %v2564 = vadd.f32 %v2376, %v2563
      %2565 = vmatmul.bf16.gmra.mxu0 %v1989
      %v2566 = vpop.f32.mrf.mxu0
      %v2567 = vpop.f32.mrf.mxu0
      %2568 = vmatmul.bf16.gmra.mxu0 %v1992
      %v2569 = vpop.f32.mrf.mxu0
      %v2570 = vpop.f32.mrf.mxu0
      %2571 = vmatmul.bf16.gmra.mxu0 %v1995
      %v2572 = vpop.f32.mrf.mxu0
      %v2573 = vadd.f32 %v2385, %v2572
      %v2574 = vpop.f32.mrf.mxu0
      %v2575 = vadd.f32 %v2387, %v2574
      %2576 = vmatmul.bf16.gmra.mxu0 %v1998
      %v2577 = vpop.f32.mrf.mxu0
      %v2578 = vpop.f32.mrf.mxu0
      %2579 = vmatmul.bf16.gmra.mxu0 %v2001
      %v2580 = vpop.f32.mrf.mxu0
      %v2581 = vpop.f32.mrf.mxu0
      %2582 = vmatmul.bf16.gmra.mxu0 %v2004
      %v2583 = vpop.f32.mrf.mxu0
      %v2584 = vadd.f32 %v2396, %v2583
      %v2585 = vpop.f32.mrf.mxu0
      %v2586 = vadd.f32 %v2398, %v2585
      %2587 = vmatmul.bf16.gmra.mxu0 %v2007
      %v2588 = vpop.f32.mrf.mxu0
      %v2589 = vpop.f32.mrf.mxu0
      %2590 = vdwg.mxu0
      %s2591 = scalar_lea.vmem %s4, 10
      %v2592 = vld [vmem:[%s2591] sm:$0x3]
      %v2594 = vsel %vm442, %v2592, 0
      %2596 = vmatpush.bf16.msra.mxu0 0
      %2597 = vmatpush.bf16.msra.mxu0 0
      %2598 = vmatpush.bf16.msra.mxu0 0
      %2599 = vmatpush.bf16.msra.mxu0 0
      %2600 = vmatpush.bf16.msra.mxu0 0
      %2601 = vmatpush.bf16.msra.mxu0 0
      %2602 = vmatpush.bf16.msra.mxu0 0
      %2603 = vmatpush.bf16.msra.mxu0 %v2594
      %2604 = vmatmul.bf16.gmra.mxu0 %v1278
      %v2605 = vpop.f32.mrf.mxu0
      %v2606 = vpop.f32.mrf.mxu0
      %2607 = vmatmul.bf16.gmra.mxu0 %v1281
      %v2608 = vpop.f32.mrf.mxu0
      %v2609 = vadd.f32 0.0, %v2608
      %v2610 = vpop.f32.mrf.mxu0
      %v2611 = vadd.f32 0.0, %v2610
      %2612 = vmatmul.bf16.gmra.mxu0 %v1284
      %v2613 = vpop.f32.mrf.mxu0
      %v2614 = vadd.f32 0.0, %v2613
      %v2615 = vpop.f32.mrf.mxu0
      %2616 = vmatmul.bf16.gmra.mxu0 %v1287
      %v2617 = vpop.f32.mrf.mxu0
      %v2618 = vpop.f32.mrf.mxu0
      %2619 = vmatmul.bf16.gmra.mxu0 %v1290
      %v2620 = vpop.f32.mrf.mxu0
      %v2621 = vadd.f32 0.0, %v2620
      %v2622 = vpop.f32.mrf.mxu0
      %v2623 = vadd.f32 0.0, %v2622
      %2624 = vmatmul.bf16.gmra.mxu0 %v1293
      %v2625 = vpop.f32.mrf.mxu0
      %v2626 = vadd.f32 0.0, %v2625
      %v2627 = vpop.f32.mrf.mxu0
      %2628 = vmatmul.bf16.gmra.mxu0 %v1296
      %v2629 = vpop.f32.mrf.mxu0
      %v2630 = vpop.f32.mrf.mxu0
      %2631 = vmatmul.bf16.gmra.mxu0 %v1299
      %v2632 = vpop.f32.mrf.mxu0
      %v2633 = vadd.f32 0.0, %v2632
      %v2634 = vpop.f32.mrf.mxu0
      %v2635 = vadd.f32 0.0, %v2634
      %2636 = vmatmul.bf16.gmra.mxu0 %v1302
      %v2637 = vpop.f32.mrf.mxu0
      %v2638 = vadd.f32 0.0, %v2637
      %v2639 = vpop.f32.mrf.mxu0
      %2640 = vmatmul.bf16.gmra.mxu0 %v1305
      %v2641 = vpop.f32.mrf.mxu0
      %v2642 = vpop.f32.mrf.mxu0
      %2643 = vmatmul.bf16.gmra.mxu0 %v1308
      %v2644 = vpop.f32.mrf.mxu0
      %v2645 = vadd.f32 0.0, %v2644
      %v2646 = vpop.f32.mrf.mxu0
      %v2647 = vadd.f32 0.0, %v2646
      %2648 = vmatmul.bf16.gmra.mxu0 %v1311
      %v2649 = vpop.f32.mrf.mxu0
      %v2650 = vadd.f32 0.0, %v2649
      %v2651 = vpop.f32.mrf.mxu0
      %2652 = vmatmul.bf16.gmra.mxu0 %v1314
      %v2653 = vpop.f32.mrf.mxu0
      %v2654 = vpop.f32.mrf.mxu0
      %2655 = vmatmul.bf16.gmra.mxu0 %v1317
      %v2656 = vpop.f32.mrf.mxu0
      %v2657 = vadd.f32 0.0, %v2656
      %v2658 = vpop.f32.mrf.mxu0
      %v2659 = vadd.f32 0.0, %v2658
      %2660 = vmatmul.bf16.gmra.mxu0 %v1320
      %v2661 = vpop.f32.mrf.mxu0
      %v2662 = vadd.f32 0.0, %v2661
      %v2663 = vpop.f32.mrf.mxu0
      %2664 = vmatmul.bf16.gmra.mxu0 %v1323
      %v2665 = vpop.f32.mrf.mxu0
      %v2666 = vpop.f32.mrf.mxu0
      %2667 = vmatmul.bf16.gmra.mxu0 %v1326
      %v2668 = vpop.f32.mrf.mxu0
      %v2669 = vadd.f32 0.0, %v2668
      %v2670 = vpop.f32.mrf.mxu0
      %v2671 = vadd.f32 0.0, %v2670
      %2672 = vmatmul.bf16.gmra.mxu0 %v1329
      %v2673 = vpop.f32.mrf.mxu0
      %v2674 = vadd.f32 0.0, %v2673
      %v2675 = vpop.f32.mrf.mxu0
      %2676 = vmatmul.bf16.gmra.mxu0 %v1332
      %v2677 = vpop.f32.mrf.mxu0
      %v2678 = vpop.f32.mrf.mxu0
      %2679 = vmatmul.bf16.gmra.mxu0 %v1335
      %v2680 = vpop.f32.mrf.mxu0
      %v2681 = vadd.f32 0.0, %v2680
      %v2682 = vpop.f32.mrf.mxu0
      %v2683 = vadd.f32 0.0, %v2682
      %2684 = vmatmul.bf16.gmra.mxu0 %v1338
      %v2685 = vpop.f32.mrf.mxu0
      %v2686 = vadd.f32 0.0, %v2685
      %v2687 = vpop.f32.mrf.mxu0
      %2688 = vmatmul.bf16.gmra.mxu0 %v1341
      %v2689 = vpop.f32.mrf.mxu0
      %v2690 = vpop.f32.mrf.mxu0
      %2691 = vmatmul.bf16.gmra.mxu0 %v1344
      %v2692 = vpop.f32.mrf.mxu0
      %v2693 = vadd.f32 0.0, %v2692
      %v2694 = vpop.f32.mrf.mxu0
      %v2695 = vadd.f32 0.0, %v2694
      %2696 = vmatmul.bf16.gmra.mxu0 %v1347
      %v2697 = vpop.f32.mrf.mxu0
      %v2698 = vadd.f32 0.0, %v2697
      %v2699 = vpop.f32.mrf.mxu0
      %2700 = vmatmul.bf16.gmra.mxu0 %v1350
      %v2701 = vpop.f32.mrf.mxu0
      %v2702 = vpop.f32.mrf.mxu0
      %2703 = vmatmul.bf16.gmra.mxu0 %v1353
      %v2704 = vpop.f32.mrf.mxu0
      %v2705 = vadd.f32 0.0, %v2704
      %v2706 = vpop.f32.mrf.mxu0
      %v2707 = vadd.f32 0.0, %v2706
      %2708 = vmatmul.bf16.gmra.mxu0 %v1356
      %v2709 = vpop.f32.mrf.mxu0
      %v2710 = vadd.f32 0.0, %v2709
      %v2711 = vpop.f32.mrf.mxu0
      %2712 = vmatmul.bf16.gmra.mxu0 %v1359
      %v2713 = vpop.f32.mrf.mxu0
      %v2714 = vpop.f32.mrf.mxu0
      %2715 = vmatmul.bf16.gmra.mxu0 %v1362
      %v2716 = vpop.f32.mrf.mxu0
      %v2717 = vadd.f32 0.0, %v2716
      %v2718 = vpop.f32.mrf.mxu0
      %v2719 = vadd.f32 0.0, %v2718
      %2720 = vmatmul.bf16.gmra.mxu0 %v1365
      %v2721 = vpop.f32.mrf.mxu0
      %v2722 = vadd.f32 0.0, %v2721
      %v2723 = vpop.f32.mrf.mxu0
      %2724 = vmatmul.bf16.gmra.mxu0 %v1368
      %v2725 = vpop.f32.mrf.mxu0
      %v2726 = vpop.f32.mrf.mxu0
      %2727 = vmatmul.bf16.gmra.mxu0 %v1371
      %v2728 = vpop.f32.mrf.mxu0
      %v2729 = vadd.f32 0.0, %v2728
      %v2730 = vpop.f32.mrf.mxu0
      %v2731 = vadd.f32 0.0, %v2730
      %2732 = vmatmul.bf16.gmra.mxu0 %v1374
      %v2733 = vpop.f32.mrf.mxu0
      %v2734 = vadd.f32 0.0, %v2733
      %v2735 = vpop.f32.mrf.mxu0
      %2736 = vmatmul.bf16.gmra.mxu0 %v1377
      %v2737 = vpop.f32.mrf.mxu0
      %v2738 = vpop.f32.mrf.mxu0
      %2739 = vmatmul.bf16.gmra.mxu0 %v1380
      %v2740 = vpop.f32.mrf.mxu0
      %v2741 = vadd.f32 0.0, %v2740
      %v2742 = vpop.f32.mrf.mxu0
      %v2743 = vadd.f32 0.0, %v2742
      %2744 = vmatmul.bf16.gmra.mxu0 %v1383
      %v2745 = vpop.f32.mrf.mxu0
      %v2746 = vadd.f32 0.0, %v2745
      %v2747 = vpop.f32.mrf.mxu0
      %2748 = vmatmul.bf16.gmra.mxu0 %v1386
      %v2749 = vpop.f32.mrf.mxu0
      %v2750 = vpop.f32.mrf.mxu0
      %2751 = vmatmul.bf16.gmra.mxu0 %v1389
      %v2752 = vpop.f32.mrf.mxu0
      %v2753 = vadd.f32 0.0, %v2752
      %v2754 = vpop.f32.mrf.mxu0
      %v2755 = vadd.f32 0.0, %v2754
      %2756 = vmatmul.bf16.gmra.mxu0 %v1392
      %v2757 = vpop.f32.mrf.mxu0
      %v2758 = vadd.f32 0.0, %v2757
      %v2759 = vpop.f32.mrf.mxu0
      %2760 = vmatmul.bf16.gmra.mxu0 %v1395
      %v2761 = vpop.f32.mrf.mxu0
      %v2762 = vpop.f32.mrf.mxu0
      %2763 = vmatmul.bf16.gmra.mxu0 %v1398
      %v2764 = vpop.f32.mrf.mxu0
      %v2765 = vadd.f32 0.0, %v2764
      %v2766 = vpop.f32.mrf.mxu0
      %v2767 = vadd.f32 0.0, %v2766
      %2768 = vmatmul.bf16.gmra.mxu0 %v1401
      %v2769 = vpop.f32.mrf.mxu0
      %v2770 = vadd.f32 0.0, %v2769
      %v2771 = vpop.f32.mrf.mxu0
      %2772 = vmatmul.bf16.gmra.mxu0 %v1404
      %v2773 = vpop.f32.mrf.mxu0
      %v2774 = vpop.f32.mrf.mxu0
      %2775 = vmatmul.bf16.gmra.mxu0 %v1407
      %v2776 = vpop.f32.mrf.mxu0
      %v2777 = vadd.f32 0.0, %v2776
      %v2778 = vpop.f32.mrf.mxu0
      %v2779 = vadd.f32 0.0, %v2778
      %2780 = vmatmul.bf16.gmra.mxu0 %v1410
      %v2781 = vpop.f32.mrf.mxu0
      %v2782 = vadd.f32 0.0, %v2781
      %v2783 = vpop.f32.mrf.mxu0
      %2784 = vmatmul.bf16.gmra.mxu0 %v1413
      %v2785 = vpop.f32.mrf.mxu0
      %v2786 = vpop.f32.mrf.mxu0
      %2787 = vmatmul.bf16.gmra.mxu0 %v1416
      %v2788 = vpop.f32.mrf.mxu0
      %v2789 = vadd.f32 0.0, %v2788
      %v2790 = vpop.f32.mrf.mxu0
      %v2791 = vadd.f32 0.0, %v2790
      %2792 = vmatmul.bf16.gmra.mxu0 %v1419
      %v2793 = vpop.f32.mrf.mxu0
      %v2794 = vadd.f32 0.0, %v2793
      %v2795 = vpop.f32.mrf.mxu0
      %2796 = vdwg.mxu0
      %v2798 = vsel %vm442, %v938, 0
      %2800 = vmatpush.bf16.msra.mxu0 0
      %2801 = vmatpush.bf16.msra.mxu0 0
      %2802 = vmatpush.bf16.msra.mxu0 0
      %2803 = vmatpush.bf16.msra.mxu0 0
      %2804 = vmatpush.bf16.msra.mxu0 0
      %2805 = vmatpush.bf16.msra.mxu0 0
      %2806 = vmatpush.bf16.msra.mxu0 0
      %2807 = vmatpush.bf16.msra.mxu0 %v2798
      %2808 = vmatmul.bf16.gmra.mxu0 %v1866
      %v2809 = vpop.f32.mrf.mxu0
      %v2810 = vpop.f32.mrf.mxu0
      %2811 = vmatmul.bf16.gmra.mxu0 %v1869
      %v2812 = vpop.f32.mrf.mxu0
      %v2813 = vadd.f32 %v2609, %v2812
      %v2814 = vpop.f32.mrf.mxu0
      %v2815 = vadd.f32 %v2611, %v2814
      %2816 = vmatmul.bf16.gmra.mxu0 %v1872
      %v2817 = vpop.f32.mrf.mxu0
      %v2818 = vadd.f32 %v2614, %v2817
      %v2819 = vpop.f32.mrf.mxu0
      %2820 = vmatmul.bf16.gmra.mxu0 %v1875
      %v2821 = vpop.f32.mrf.mxu0
      %v2822 = vpop.f32.mrf.mxu0
      %2823 = vmatmul.bf16.gmra.mxu0 %v1878
      %v2824 = vpop.f32.mrf.mxu0
      %v2825 = vadd.f32 %v2621, %v2824
      %v2826 = vpop.f32.mrf.mxu0
      %v2827 = vadd.f32 %v2623, %v2826
      %2828 = vmatmul.bf16.gmra.mxu0 %v1881
      %v2829 = vpop.f32.mrf.mxu0
      %v2830 = vadd.f32 %v2626, %v2829
      %v2831 = vpop.f32.mrf.mxu0
      %2832 = vmatmul.bf16.gmra.mxu0 %v1884
      %v2833 = vpop.f32.mrf.mxu0
      %v2834 = vpop.f32.mrf.mxu0
      %2835 = vmatmul.bf16.gmra.mxu0 %v1887
      %v2836 = vpop.f32.mrf.mxu0
      %v2837 = vadd.f32 %v2633, %v2836
      %v2838 = vpop.f32.mrf.mxu0
      %v2839 = vadd.f32 %v2635, %v2838
      %2840 = vmatmul.bf16.gmra.mxu0 %v1890
      %v2841 = vpop.f32.mrf.mxu0
      %v2842 = vadd.f32 %v2638, %v2841
      %v2843 = vpop.f32.mrf.mxu0
      %2844 = vmatmul.bf16.gmra.mxu0 %v1893
      %v2845 = vpop.f32.mrf.mxu0
      %v2846 = vpop.f32.mrf.mxu0
      %2847 = vmatmul.bf16.gmra.mxu0 %v1896
      %v2848 = vpop.f32.mrf.mxu0
      %v2849 = vadd.f32 %v2645, %v2848
      %v2850 = vpop.f32.mrf.mxu0
      %v2851 = vadd.f32 %v2647, %v2850
      %2852 = vmatmul.bf16.gmra.mxu0 %v1899
      %v2853 = vpop.f32.mrf.mxu0
      %v2854 = vadd.f32 %v2650, %v2853
      %v2855 = vpop.f32.mrf.mxu0
      %2856 = vmatmul.bf16.gmra.mxu0 %v1902
      %v2857 = vpop.f32.mrf.mxu0
      %v2858 = vpop.f32.mrf.mxu0
      %2859 = vmatmul.bf16.gmra.mxu0 %v1905
      %v2860 = vpop.f32.mrf.mxu0
      %v2861 = vadd.f32 %v2657, %v2860
      %v2862 = vpop.f32.mrf.mxu0
      %v2863 = vadd.f32 %v2659, %v2862
      %2864 = vmatmul.bf16.gmra.mxu0 %v1908
      %v2865 = vpop.f32.mrf.mxu0
      %v2866 = vadd.f32 %v2662, %v2865
      %v2867 = vpop.f32.mrf.mxu0
      %2868 = vmatmul.bf16.gmra.mxu0 %v1911
      %v2869 = vpop.f32.mrf.mxu0
      %v2870 = vpop.f32.mrf.mxu0
      %2871 = vmatmul.bf16.gmra.mxu0 %v1914
      %v2872 = vpop.f32.mrf.mxu0
      %v2873 = vadd.f32 %v2669, %v2872
      %v2874 = vpop.f32.mrf.mxu0
      %v2875 = vadd.f32 %v2671, %v2874
      %2876 = vmatmul.bf16.gmra.mxu0 %v1917
      %v2877 = vpop.f32.mrf.mxu0
      %v2878 = vadd.f32 %v2674, %v2877
      %v2879 = vpop.f32.mrf.mxu0
      %2880 = vmatmul.bf16.gmra.mxu0 %v1920
      %v2881 = vpop.f32.mrf.mxu0
      %v2882 = vpop.f32.mrf.mxu0
      %2883 = vmatmul.bf16.gmra.mxu0 %v1923
      %v2884 = vpop.f32.mrf.mxu0
      %v2885 = vadd.f32 %v2681, %v2884
      %v2886 = vpop.f32.mrf.mxu0
      %v2887 = vadd.f32 %v2683, %v2886
      %2888 = vmatmul.bf16.gmra.mxu0 %v1926
      %v2889 = vpop.f32.mrf.mxu0
      %v2890 = vadd.f32 %v2686, %v2889
      %v2891 = vpop.f32.mrf.mxu0
      %2892 = vmatmul.bf16.gmra.mxu0 %v1929
      %v2893 = vpop.f32.mrf.mxu0
      %v2894 = vpop.f32.mrf.mxu0
      %2895 = vmatmul.bf16.gmra.mxu0 %v1932
      %v2896 = vpop.f32.mrf.mxu0
      %v2897 = vadd.f32 %v2693, %v2896
      %v2898 = vpop.f32.mrf.mxu0
      %v2899 = vadd.f32 %v2695, %v2898
      %2900 = vmatmul.bf16.gmra.mxu0 %v1935
      %v2901 = vpop.f32.mrf.mxu0
      %v2902 = vadd.f32 %v2698, %v2901
      %v2903 = vpop.f32.mrf.mxu0
      %2904 = vmatmul.bf16.gmra.mxu0 %v1938
      %v2905 = vpop.f32.mrf.mxu0
      %v2906 = vpop.f32.mrf.mxu0
      %2907 = vmatmul.bf16.gmra.mxu0 %v1941
      %v2908 = vpop.f32.mrf.mxu0
      %v2909 = vadd.f32 %v2705, %v2908
      %v2910 = vpop.f32.mrf.mxu0
      %v2911 = vadd.f32 %v2707, %v2910
      %2912 = vmatmul.bf16.gmra.mxu0 %v1944
      %v2913 = vpop.f32.mrf.mxu0
      %v2914 = vadd.f32 %v2710, %v2913
      %v2915 = vpop.f32.mrf.mxu0
      %2916 = vmatmul.bf16.gmra.mxu0 %v1947
      %v2917 = vpop.f32.mrf.mxu0
      %v2918 = vpop.f32.mrf.mxu0
      %2919 = vmatmul.bf16.gmra.mxu0 %v1950
      %v2920 = vpop.f32.mrf.mxu0
      %v2921 = vadd.f32 %v2717, %v2920
      %v2922 = vpop.f32.mrf.mxu0
      %v2923 = vadd.f32 %v2719, %v2922
      %2924 = vmatmul.bf16.gmra.mxu0 %v1953
      %v2925 = vpop.f32.mrf.mxu0
      %v2926 = vadd.f32 %v2722, %v2925
      %v2927 = vpop.f32.mrf.mxu0
      %2928 = vmatmul.bf16.gmra.mxu0 %v1956
      %v2929 = vpop.f32.mrf.mxu0
      %v2930 = vpop.f32.mrf.mxu0
      %2931 = vmatmul.bf16.gmra.mxu0 %v1959
      %v2932 = vpop.f32.mrf.mxu0
      %v2933 = vadd.f32 %v2729, %v2932
      %v2934 = vpop.f32.mrf.mxu0
      %v2935 = vadd.f32 %v2731, %v2934
      %2936 = vmatmul.bf16.gmra.mxu0 %v1962
      %v2937 = vpop.f32.mrf.mxu0
      %v2938 = vadd.f32 %v2734, %v2937
      %v2939 = vpop.f32.mrf.mxu0
      %2940 = vmatmul.bf16.gmra.mxu0 %v1965
      %v2941 = vpop.f32.mrf.mxu0
      %v2942 = vpop.f32.mrf.mxu0
      %2943 = vmatmul.bf16.gmra.mxu0 %v1968
      %v2944 = vpop.f32.mrf.mxu0
      %v2945 = vadd.f32 %v2741, %v2944
      %v2946 = vpop.f32.mrf.mxu0
      %v2947 = vadd.f32 %v2743, %v2946
      %2948 = vmatmul.bf16.gmra.mxu0 %v1971
      %v2949 = vpop.f32.mrf.mxu0
      %v2950 = vadd.f32 %v2746, %v2949
      %v2951 = vpop.f32.mrf.mxu0
      %2952 = vmatmul.bf16.gmra.mxu0 %v1974
      %v2953 = vpop.f32.mrf.mxu0
      %v2954 = vpop.f32.mrf.mxu0
      %2955 = vmatmul.bf16.gmra.mxu0 %v1977
      %v2956 = vpop.f32.mrf.mxu0
      %v2957 = vadd.f32 %v2753, %v2956
      %v2958 = vpop.f32.mrf.mxu0
      %v2959 = vadd.f32 %v2755, %v2958
      %2960 = vmatmul.bf16.gmra.mxu0 %v1980
      %v2961 = vpop.f32.mrf.mxu0
      %v2962 = vadd.f32 %v2758, %v2961
      %v2963 = vpop.f32.mrf.mxu0
      %2964 = vmatmul.bf16.gmra.mxu0 %v1983
      %v2965 = vpop.f32.mrf.mxu0
      %v2966 = vpop.f32.mrf.mxu0
      %2967 = vmatmul.bf16.gmra.mxu0 %v1986
      %v2968 = vpop.f32.mrf.mxu0
      %v2969 = vadd.f32 %v2765, %v2968
      %v2970 = vpop.f32.mrf.mxu0
      %v2971 = vadd.f32 %v2767, %v2970
      %2972 = vmatmul.bf16.gmra.mxu0 %v1989
      %v2973 = vpop.f32.mrf.mxu0
      %v2974 = vadd.f32 %v2770, %v2973
      %v2975 = vpop.f32.mrf.mxu0
      %2976 = vmatmul.bf16.gmra.mxu0 %v1992
      %v2977 = vpop.f32.mrf.mxu0
      %v2978 = vpop.f32.mrf.mxu0
      %2979 = vmatmul.bf16.gmra.mxu0 %v1995
      %v2980 = vpop.f32.mrf.mxu0
      %v2981 = vadd.f32 %v2777, %v2980
      %v2982 = vpop.f32.mrf.mxu0
      %v2983 = vadd.f32 %v2779, %v2982
      %2984 = vmatmul.bf16.gmra.mxu0 %v1998
      %v2985 = vpop.f32.mrf.mxu0
      %v2986 = vadd.f32 %v2782, %v2985
      %v2987 = vpop.f32.mrf.mxu0
      %2988 = vmatmul.bf16.gmra.mxu0 %v2001
      %v2989 = vpop.f32.mrf.mxu0
      %v2990 = vpop.f32.mrf.mxu0
      %2991 = vmatmul.bf16.gmra.mxu0 %v2004
      %v2992 = vpop.f32.mrf.mxu0
      %v2993 = vadd.f32 %v2789, %v2992
      %v2994 = vpop.f32.mrf.mxu0
      %v2995 = vadd.f32 %v2791, %v2994
      %2996 = vmatmul.bf16.gmra.mxu0 %v2007
      %v2997 = vpop.f32.mrf.mxu0
      %v2998 = vadd.f32 %v2794, %v2997
      %v2999 = vpop.f32.mrf.mxu0
      %3000 = vdwg.mxu0
      %s3001 = scalar_lea.vmem [#allocation2], 144
      %v3002 = vld [vmem:[%s3001] sm:$0xf]
      %v3003 = vld [vmem:[%s3001 + $0x4] sm:$0xf]
      %v3004 = vld [vmem:[%s3001 + $0x8] sm:$0xf]
      %v3005 = vld [vmem:[%s3001 + $0xc] sm:$0xf]
      %v3006 = vld [vmem:[%s3001 + $0x10] sm:$0xf]
      %v3007 = vld [vmem:[%s3001 + $0x14] sm:$0xf]
      %v3008 = vld [vmem:[%s3001 + $0x18] sm:$0xf]
      %v3009 = vld [vmem:[%s3001 + $0x1c] sm:$0xf]
      %v3010 = vld [vmem:[%s3001 + $0x20] sm:$0xf]
      %v3011 = vld [vmem:[%s3001 + $0x24] sm:$0xf]
      %v3012 = vld [vmem:[%s3001 + $0x28] sm:$0xf]
      %v3013 = vld [vmem:[%s3001 + $0x2c] sm:$0xf]
      %v3014 = vld [vmem:[%s3001 + $0x30] sm:$0xf]
      %v3015 = vld [vmem:[%s3001 + $0x34] sm:$0xf]
      %v3016 = vld [vmem:[%s3001 + $0x38] sm:$0xf]
      %v3017 = vld [vmem:[%s3001 + $0x3c] sm:$0xf]
      %v3018 = vld [vmem:[%s3001 + $0x40] sm:$0xf]
      %v3019 = vld [vmem:[%s3001 + $0x44] sm:$0xf]
      %v3020 = vld [vmem:[%s3001 + $0x48] sm:$0xf]
      %v3021 = vld [vmem:[%s3001 + $0x4c] sm:$0xf]
      %v3022 = vld [vmem:[%s3001 + $0x50] sm:$0xf]
      %v3023 = vld [vmem:[%s3001 + $0x54] sm:$0xf]
      %v3024 = vld [vmem:[%s3001 + $0x58] sm:$0xf]
      %v3025 = vld [vmem:[%s3001 + $0x5c] sm:$0xf]
      %v3026 = vld [vmem:[%s3001 + $0x60] sm:$0xf]
      %v3027 = vld [vmem:[%s3001 + $0x64] sm:$0xf]
      %v3028 = vld [vmem:[%s3001 + $0x68] sm:$0xf]
      %v3029 = vld [vmem:[%s3001 + $0x6c] sm:$0xf]
      %v3030 = vld [vmem:[%s3001 + $0x70] sm:$0xf]
      %v3031 = vld [vmem:[%s3001 + $0x74] sm:$0xf]
      %v3032 = vld [vmem:[%s3001 + $0x78] sm:$0xf]
      %v3033 = vld [vmem:[%s3001 + $0x7c] sm:$0xf]
      %v3034 = vld [vmem:[%s3001 + $0x80] sm:$0xf]
      %v3035 = vld [vmem:[%s3001 + $0x84] sm:$0xf]
      %v3036 = vld [vmem:[%s3001 + $0x88] sm:$0xf]
      %v3037 = vld [vmem:[%s3001 + $0x8c] sm:$0xf]
      %v3038 = vld [vmem:[%s3001 + $0x90] sm:$0xf]
      %v3039 = vld [vmem:[%s3001 + $0x94] sm:$0xf]
      %v3040 = vld [vmem:[%s3001 + $0x98] sm:$0xf]
      %v3041 = vld [vmem:[%s3001 + $0x9c] sm:$0xf]
      %v3042 = vld [vmem:[%s3001 + $0xa0] sm:$0xf]
      %v3043 = vld [vmem:[%s3001 + $0xa4] sm:$0xf]
      %v3044 = vld [vmem:[%s3001 + $0xa8] sm:$0xf]
      %v3045 = vld [vmem:[%s3001 + $0xac] sm:$0xf]
      %v3046 = vld [vmem:[%s3001 + $0xb0] sm:$0xf]
      %v3047 = vld [vmem:[%s3001 + $0xb4] sm:$0xf]
      %v3048 = vld [vmem:[%s3001 + $0xb8] sm:$0xf]
      %v3049 = vld [vmem:[%s3001 + $0xbc] sm:$0xf]
      %v3050 = vld [vmem:[%s3001 + $0xc0] sm:$0xf]
      %v3051 = vld [vmem:[%s3001 + $0xc4] sm:$0xf]
      %v3052 = vld [vmem:[%s3001 + $0xc8] sm:$0xf]
      %v3053 = vld [vmem:[%s3001 + $0xcc] sm:$0xf]
      %v3054 = vld [vmem:[%s3001 + $0xd0] sm:$0xf]
      %v3055 = vld [vmem:[%s3001 + $0xd4] sm:$0xf]
      %v3056 = vld [vmem:[%s3001 + $0xd8] sm:$0xf]
      %v3057 = vld [vmem:[%s3001 + $0xdc] sm:$0xf]
      %v3058 = vld [vmem:[%s3001 + $0xe0] sm:$0xf]
      %v3059 = vld [vmem:[%s3001 + $0xe4] sm:$0xf]
      %v3060 = vld [vmem:[%s3001 + $0xe8] sm:$0xf]
      %v3061 = vld [vmem:[%s3001 + $0xec] sm:$0xf]
      %v3062 = vld [vmem:[%s3001 + $0xf0] sm:$0xf]
      %v3063 = vld [vmem:[%s3001 + $0xf4] sm:$0xf]
      %v3064 = vld [vmem:[%s3001 + $0xf8] sm:$0xf]
      %v3065 = vld [vmem:[%s3001 + $0xfc] sm:$0xf]
      %v3066 = vld [vmem:[%s3001 + $0x100] sm:$0xf]
      %v3067 = vld [vmem:[%s3001 + $0x104] sm:$0xf]
      %v3068 = vld [vmem:[%s3001 + $0x108] sm:$0xf]
      %v3069 = vld [vmem:[%s3001 + $0x10c] sm:$0xf]
      %v3070 = vld [vmem:[%s3001 + $0x110] sm:$0xf]
      %v3071 = vld [vmem:[%s3001 + $0x114] sm:$0xf]
      %v3072 = vld [vmem:[%s3001 + $0x118] sm:$0xf]
      %v3073 = vld [vmem:[%s3001 + $0x11c] sm:$0xf]
      %v3074 = vld [vmem:[%s3001 + $0x120] sm:$0xf]
      %v3075 = vld [vmem:[%s3001 + $0x124] sm:$0xf]
      %v3076 = vld [vmem:[%s3001 + $0x128] sm:$0xf]
      %v3077 = vld [vmem:[%s3001 + $0x12c] sm:$0xf]
      %v3078 = vld [vmem:[%s3001 + $0x130] sm:$0xf]
      %v3079 = vld [vmem:[%s3001 + $0x134] sm:$0xf]
      %v3080 = vld [vmem:[%s3001 + $0x138] sm:$0xf]
      %v3081 = vld [vmem:[%s3001 + $0x13c] sm:$0xf]
      %v3082 = vld [vmem:[%s3001 + $0x140] sm:$0xf]
      %v3083 = vld [vmem:[%s3001 + $0x144] sm:$0xf]
      %v3084 = vld [vmem:[%s3001 + $0x148] sm:$0xf]
      %v3085 = vld [vmem:[%s3001 + $0x14c] sm:$0xf]
      %v3086 = vld [vmem:[%s3001 + $0x150] sm:$0xf]
      %v3087 = vld [vmem:[%s3001 + $0x154] sm:$0xf]
      %v3088 = vld [vmem:[%s3001 + $0x158] sm:$0xf]
      %v3089 = vld [vmem:[%s3001 + $0x15c] sm:$0xf]
      %v3090 = vld [vmem:[%s3001 + $0x160] sm:$0xf]
      %v3091 = vld [vmem:[%s3001 + $0x164] sm:$0xf]
      %v3092 = vld [vmem:[%s3001 + $0x168] sm:$0xf]
      %v3093 = vld [vmem:[%s3001 + $0x16c] sm:$0xf]
      %v3094 = vld [vmem:[%s3001 + $0x170] sm:$0xf]
      %v3095 = vld [vmem:[%s3001 + $0x174] sm:$0xf]
      %v3096 = vld [vmem:[%s3001 + $0x178] sm:$0xf]
      %v3097 = vld [vmem:[%s3001 + $0x17c] sm:$0xf]
      %s3098 = scalar_lea.vmem %s4, 12
      %v3099 = vld [vmem:[%s3098] sm:$0x3]
      %v3196 = vunpack.c.l.b16 %v3002
      %v3197 = vunpack.c.l.b16 %v3003
      %v3198 = vunpack.c.l.b16 %v3004
      %v3199 = vunpack.c.l.b16 %v3005
      %v3200 = vunpack.c.l.b16 %v3006
      %v3201 = vunpack.c.l.b16 %v3007
      %v3202 = vunpack.c.l.b16 %v3008
      %v3203 = vunpack.c.l.b16 %v3009
      %v3204 = vunpack.c.l.b16 %v3010
      %v3205 = vunpack.c.l.b16 %v3011
      %v3206 = vunpack.c.l.b16 %v3012
      %v3207 = vunpack.c.l.b16 %v3013
      %v3208 = vunpack.c.l.b16 %v3014
      %v3209 = vunpack.c.l.b16 %v3015
      %v3210 = vunpack.c.l.b16 %v3016
      %v3211 = vunpack.c.l.b16 %v3017
      %v3212 = vunpack.c.l.b16 %v3018
      %v3213 = vunpack.c.l.b16 %v3019
      %v3214 = vunpack.c.l.b16 %v3020
      %v3215 = vunpack.c.l.b16 %v3021
      %v3216 = vunpack.c.l.b16 %v3022
      %v3217 = vunpack.c.l.b16 %v3023
      %v3218 = vunpack.c.l.b16 %v3024
      %v3219 = vunpack.c.l.b16 %v3025
      %v3220 = vunpack.c.l.b16 %v3026
      %v3221 = vunpack.c.l.b16 %v3027
      %v3222 = vunpack.c.l.b16 %v3028
      %v3223 = vunpack.c.l.b16 %v3029
      %v3224 = vunpack.c.l.b16 %v3030
      %v3225 = vunpack.c.l.b16 %v3031
      %v3226 = vunpack.c.l.b16 %v3032
      %v3227 = vunpack.c.l.b16 %v3033
      %v3228 = vunpack.c.l.b16 %v3034
      %v3229 = vunpack.c.l.b16 %v3035
      %v3230 = vunpack.c.l.b16 %v3036
      %v3231 = vunpack.c.l.b16 %v3037
      %v3232 = vunpack.c.l.b16 %v3038
      %v3233 = vunpack.c.l.b16 %v3039
      %v3234 = vunpack.c.l.b16 %v3040
      %v3235 = vunpack.c.l.b16 %v3041
      %v3236 = vunpack.c.l.b16 %v3042
      %v3237 = vunpack.c.l.b16 %v3043
      %v3238 = vunpack.c.l.b16 %v3044
      %v3239 = vunpack.c.l.b16 %v3045
      %v3240 = vunpack.c.l.b16 %v3046
      %v3241 = vunpack.c.l.b16 %v3047
      %v3242 = vunpack.c.l.b16 %v3048
      %v3243 = vunpack.c.l.b16 %v3049
      %v3244 = vunpack.c.l.b16 %v3050
      %v3245 = vunpack.c.l.b16 %v3051
      %v3246 = vunpack.c.l.b16 %v3052
      %v3247 = vunpack.c.l.b16 %v3053
      %v3248 = vunpack.c.l.b16 %v3054
      %v3249 = vunpack.c.l.b16 %v3055
      %v3250 = vunpack.c.l.b16 %v3056
      %v3251 = vunpack.c.l.b16 %v3057
      %v3252 = vunpack.c.l.b16 %v3058
      %v3253 = vunpack.c.l.b16 %v3059
      %v3254 = vunpack.c.l.b16 %v3060
      %v3255 = vunpack.c.l.b16 %v3061
      %v3256 = vunpack.c.l.b16 %v3062
      %v3257 = vunpack.c.l.b16 %v3063
      %v3258 = vunpack.c.l.b16 %v3064
      %v3259 = vunpack.c.l.b16 %v3065
      %v3260 = vunpack.c.l.b16 %v3066
      %v3261 = vunpack.c.l.b16 %v3067
      %v3262 = vunpack.c.l.b16 %v3068
      %v3263 = vunpack.c.l.b16 %v3069
      %v3264 = vunpack.c.l.b16 %v3070
      %v3265 = vunpack.c.l.b16 %v3071
      %v3266 = vunpack.c.l.b16 %v3072
      %v3267 = vunpack.c.l.b16 %v3073
      %v3268 = vunpack.c.l.b16 %v3074
      %v3269 = vunpack.c.l.b16 %v3075
      %v3270 = vunpack.c.l.b16 %v3076
      %v3271 = vunpack.c.l.b16 %v3077
      %v3272 = vunpack.c.l.b16 %v3078
      %v3273 = vunpack.c.l.b16 %v3079
      %v3274 = vunpack.c.l.b16 %v3080
      %v3275 = vunpack.c.l.b16 %v3081
      %v3276 = vunpack.c.l.b16 %v3082
      %v3277 = vunpack.c.l.b16 %v3083
      %v3278 = vunpack.c.l.b16 %v3084
      %v3279 = vunpack.c.l.b16 %v3085
      %v3280 = vunpack.c.l.b16 %v3086
      %v3281 = vunpack.c.l.b16 %v3087
      %v3282 = vunpack.c.l.b16 %v3088
      %v3283 = vunpack.c.l.b16 %v3089
      %v3284 = vunpack.c.l.b16 %v3090
      %v3285 = vunpack.c.l.b16 %v3091
      %v3286 = vunpack.c.l.b16 %v3092
      %v3287 = vunpack.c.l.b16 %v3093
      %v3288 = vunpack.c.l.b16 %v3094
      %v3289 = vunpack.c.l.b16 %v3095
      %v3290 = vunpack.c.l.b16 %v3096
      %v3291 = vunpack.c.l.b16 %v3097
      %v3292 = vpack.c.b16 %v3197, %v3196
      %v3293 = vpack.c.b16 %v3199, %v3198
      %v3294 = vpack.c.b16 %v3201, %v3200
      %v3295 = vpack.c.b16 %v3203, %v3202
      %v3296 = vpack.c.b16 %v3205, %v3204
      %v3297 = vpack.c.b16 %v3207, %v3206
      %v3298 = vpack.c.b16 %v3209, %v3208
      %v3299 = vpack.c.b16 %v3211, %v3210
      %v3300 = vpack.c.b16 %v3213, %v3212
      %v3301 = vpack.c.b16 %v3215, %v3214
      %v3302 = vpack.c.b16 %v3217, %v3216
      %v3303 = vpack.c.b16 %v3219, %v3218
      %v3304 = vpack.c.b16 %v3221, %v3220
      %v3305 = vpack.c.b16 %v3223, %v3222
      %v3306 = vpack.c.b16 %v3225, %v3224
      %v3307 = vpack.c.b16 %v3227, %v3226
      %v3308 = vpack.c.b16 %v3229, %v3228
      %v3309 = vpack.c.b16 %v3231, %v3230
      %v3310 = vpack.c.b16 %v3233, %v3232
      %v3311 = vpack.c.b16 %v3235, %v3234
      %v3312 = vpack.c.b16 %v3237, %v3236
      %v3313 = vpack.c.b16 %v3239, %v3238
      %v3314 = vpack.c.b16 %v3241, %v3240
      %v3315 = vpack.c.b16 %v3243, %v3242
      %v3316 = vpack.c.b16 %v3245, %v3244
      %v3317 = vpack.c.b16 %v3247, %v3246
      %v3318 = vpack.c.b16 %v3249, %v3248
      %v3319 = vpack.c.b16 %v3251, %v3250
      %v3320 = vpack.c.b16 %v3253, %v3252
      %v3321 = vpack.c.b16 %v3255, %v3254
      %v3322 = vpack.c.b16 %v3257, %v3256
      %v3323 = vpack.c.b16 %v3259, %v3258
      %v3324 = vpack.c.b16 %v3261, %v3260
      %v3325 = vpack.c.b16 %v3263, %v3262
      %v3326 = vpack.c.b16 %v3265, %v3264
      %v3327 = vpack.c.b16 %v3267, %v3266
      %v3328 = vpack.c.b16 %v3269, %v3268
      %v3329 = vpack.c.b16 %v3271, %v3270
      %v3330 = vpack.c.b16 %v3273, %v3272
      %v3331 = vpack.c.b16 %v3275, %v3274
      %v3332 = vpack.c.b16 %v3277, %v3276
      %v3333 = vpack.c.b16 %v3279, %v3278
      %v3334 = vpack.c.b16 %v3281, %v3280
      %v3335 = vpack.c.b16 %v3283, %v3282
      %v3336 = vpack.c.b16 %v3285, %v3284
      %v3337 = vpack.c.b16 %v3287, %v3286
      %v3338 = vpack.c.b16 %v3289, %v3288
      %v3339 = vpack.c.b16 %v3291, %v3290
      %v3341 = vsel %vm393, %v3292, 0
      %v3344 = vsel %vm393, %v3293, 0
      %v3347 = vsel %vm393, %v3294, 0
      %v3350 = vsel %vm393, %v3295, 0
      %v3353 = vsel %vm393, %v3296, 0
      %v3356 = vsel %vm393, %v3297, 0
      %v3359 = vsel %vm393, %v3298, 0
      %v3362 = vsel %vm393, %v3299, 0
      %v3365 = vsel %vm393, %v3300, 0
      %v3368 = vsel %vm393, %v3301, 0
      %v3371 = vsel %vm393, %v3302, 0
      %v3374 = vsel %vm393, %v3303, 0
      %v3377 = vsel %vm393, %v3304, 0
      %v3380 = vsel %vm393, %v3305, 0
      %v3383 = vsel %vm393, %v3306, 0
      %v3386 = vsel %vm393, %v3307, 0
      %v3389 = vsel %vm393, %v3308, 0
      %v3392 = vsel %vm393, %v3309, 0
      %v3395 = vsel %vm393, %v3310, 0
      %v3398 = vsel %vm393, %v3311, 0
      %v3401 = vsel %vm393, %v3312, 0
      %v3404 = vsel %vm393, %v3313, 0
      %v3407 = vsel %vm393, %v3314, 0
      %v3410 = vsel %vm393, %v3315, 0
      %v3413 = vsel %vm393, %v3316, 0
      %v3416 = vsel %vm393, %v3317, 0
      %v3419 = vsel %vm393, %v3318, 0
      %v3422 = vsel %vm393, %v3319, 0
      %v3425 = vsel %vm393, %v3320, 0
      %v3428 = vsel %vm393, %v3321, 0
      %v3431 = vsel %vm393, %v3322, 0
      %v3434 = vsel %vm393, %v3323, 0
      %v3437 = vsel %vm393, %v3324, 0
      %v3440 = vsel %vm393, %v3325, 0
      %v3443 = vsel %vm393, %v3326, 0
      %v3446 = vsel %vm393, %v3327, 0
      %v3449 = vsel %vm393, %v3328, 0
      %v3452 = vsel %vm393, %v3329, 0
      %v3455 = vsel %vm393, %v3330, 0
      %v3458 = vsel %vm393, %v3331, 0
      %v3461 = vsel %vm393, %v3332, 0
      %v3464 = vsel %vm393, %v3333, 0
      %v3467 = vsel %vm393, %v3334, 0
      %v3470 = vsel %vm393, %v3335, 0
      %v3473 = vsel %vm393, %v3336, 0
      %v3476 = vsel %vm393, %v3337, 0
      %v3479 = vsel %vm393, %v3338, 0
      %v3482 = vsel %vm393, %v3339, 0
      %v3485 = vsel %vm442, %v3099, 0
      %3487 = vmatpush.bf16.msra.mxu0 0
      %3488 = vmatpush.bf16.msra.mxu0 0
      %3489 = vmatpush.bf16.msra.mxu0 0
      %3490 = vmatpush.bf16.msra.mxu0 0
      %3491 = vmatpush.bf16.msra.mxu0 0
      %3492 = vmatpush.bf16.msra.mxu0 0
      %3493 = vmatpush.bf16.msra.mxu0 0
      %3494 = vmatpush.bf16.msra.mxu0 %v3485
      %3495 = vmatmul.bf16.gmra.mxu0 %v3341
      %v3496 = vpop.f32.mrf.mxu0
      %v3497 = vpop.f32.mrf.mxu0
      %v3498 = vadd.f32 0.0, %v3497
      %3499 = vmatmul.bf16.gmra.mxu0 %v3344
      %v3500 = vpop.f32.mrf.mxu0
      %v3501 = vadd.f32 0.0, %v3500
      %v3502 = vpop.f32.mrf.mxu0
      %v3503 = vadd.f32 0.0, %v3502
      %3504 = vmatmul.bf16.gmra.mxu0 %v3347
      %v3505 = vpop.f32.mrf.mxu0
      %v3506 = vpop.f32.mrf.mxu0
      %3507 = vmatmul.bf16.gmra.mxu0 %v3350
      %v3508 = vpop.f32.mrf.mxu0
      %v3509 = vpop.f32.mrf.mxu0
      %v3510 = vadd.f32 0.0, %v3509
      %3511 = vmatmul.bf16.gmra.mxu0 %v3353
      %v3512 = vpop.f32.mrf.mxu0
      %v3513 = vadd.f32 0.0, %v3512
      %v3514 = vpop.f32.mrf.mxu0
      %v3515 = vadd.f32 0.0, %v3514
      %3516 = vmatmul.bf16.gmra.mxu0 %v3356
      %v3517 = vpop.f32.mrf.mxu0
      %v3518 = vpop.f32.mrf.mxu0
      %3519 = vmatmul.bf16.gmra.mxu0 %v3359
      %v3520 = vpop.f32.mrf.mxu0
      %v3521 = vpop.f32.mrf.mxu0
      %v3522 = vadd.f32 0.0, %v3521
      %3523 = vmatmul.bf16.gmra.mxu0 %v3362
      %v3524 = vpop.f32.mrf.mxu0
      %v3525 = vadd.f32 0.0, %v3524
      %v3526 = vpop.f32.mrf.mxu0
      %v3527 = vadd.f32 0.0, %v3526
      %3528 = vmatmul.bf16.gmra.mxu0 %v3365
      %v3529 = vpop.f32.mrf.mxu0
      %v3530 = vpop.f32.mrf.mxu0
      %3531 = vmatmul.bf16.gmra.mxu0 %v3368
      %v3532 = vpop.f32.mrf.mxu0
      %v3533 = vpop.f32.mrf.mxu0
      %v3534 = vadd.f32 0.0, %v3533
      %3535 = vmatmul.bf16.gmra.mxu0 %v3371
      %v3536 = vpop.f32.mrf.mxu0
      %v3537 = vadd.f32 0.0, %v3536
      %v3538 = vpop.f32.mrf.mxu0
      %v3539 = vadd.f32 0.0, %v3538
      %3540 = vmatmul.bf16.gmra.mxu0 %v3374
      %v3541 = vpop.f32.mrf.mxu0
      %v3542 = vpop.f32.mrf.mxu0
      %3543 = vmatmul.bf16.gmra.mxu0 %v3377
      %v3544 = vpop.f32.mrf.mxu0
      %v3545 = vpop.f32.mrf.mxu0
      %v3546 = vadd.f32 0.0, %v3545
      %3547 = vmatmul.bf16.gmra.mxu0 %v3380
      %v3548 = vpop.f32.mrf.mxu0
      %v3549 = vadd.f32 0.0, %v3548
      %v3550 = vpop.f32.mrf.mxu0
      %v3551 = vadd.f32 0.0, %v3550
      %3552 = vmatmul.bf16.gmra.mxu0 %v3383
      %v3553 = vpop.f32.mrf.mxu0
      %v3554 = vpop.f32.mrf.mxu0
      %3555 = vmatmul.bf16.gmra.mxu0 %v3386
      %v3556 = vpop.f32.mrf.mxu0
      %v3557 = vpop.f32.mrf.mxu0
      %v3558 = vadd.f32 0.0, %v3557
      %3559 = vmatmul.bf16.gmra.mxu0 %v3389
      %v3560 = vpop.f32.mrf.mxu0
      %v3561 = vadd.f32 0.0, %v3560
      %v3562 = vpop.f32.mrf.mxu0
      %v3563 = vadd.f32 0.0, %v3562
      %3564 = vmatmul.bf16.gmra.mxu0 %v3392
      %v3565 = vpop.f32.mrf.mxu0
      %v3566 = vpop.f32.mrf.mxu0
      %3567 = vmatmul.bf16.gmra.mxu0 %v3395
      %v3568 = vpop.f32.mrf.mxu0
      %v3569 = vpop.f32.mrf.mxu0
      %v3570 = vadd.f32 0.0, %v3569
      %3571 = vmatmul.bf16.gmra.mxu0 %v3398
      %v3572 = vpop.f32.mrf.mxu0
      %v3573 = vadd.f32 0.0, %v3572
      %v3574 = vpop.f32.mrf.mxu0
      %v3575 = vadd.f32 0.0, %v3574
      %3576 = vmatmul.bf16.gmra.mxu0 %v3401
      %v3577 = vpop.f32.mrf.mxu0
      %v3578 = vpop.f32.mrf.mxu0
      %3579 = vmatmul.bf16.gmra.mxu0 %v3404
      %v3580 = vpop.f32.mrf.mxu0
      %v3581 = vpop.f32.mrf.mxu0
      %v3582 = vadd.f32 0.0, %v3581
      %3583 = vmatmul.bf16.gmra.mxu0 %v3407
      %v3584 = vpop.f32.mrf.mxu0
      %v3585 = vadd.f32 0.0, %v3584
      %v3586 = vpop.f32.mrf.mxu0
      %v3587 = vadd.f32 0.0, %v3586
      %3588 = vmatmul.bf16.gmra.mxu0 %v3410
      %v3589 = vpop.f32.mrf.mxu0
      %v3590 = vpop.f32.mrf.mxu0
      %3591 = vmatmul.bf16.gmra.mxu0 %v3413
      %v3592 = vpop.f32.mrf.mxu0
      %v3593 = vpop.f32.mrf.mxu0
      %v3594 = vadd.f32 0.0, %v3593
      %3595 = vmatmul.bf16.gmra.mxu0 %v3416
      %v3596 = vpop.f32.mrf.mxu0
      %v3597 = vadd.f32 0.0, %v3596
      %v3598 = vpop.f32.mrf.mxu0
      %v3599 = vadd.f32 0.0, %v3598
      %3600 = vmatmul.bf16.gmra.mxu0 %v3419
      %v3601 = vpop.f32.mrf.mxu0
      %v3602 = vpop.f32.mrf.mxu0
      %3603 = vmatmul.bf16.gmra.mxu0 %v3422
      %v3604 = vpop.f32.mrf.mxu0
      %v3605 = vpop.f32.mrf.mxu0
      %v3606 = vadd.f32 0.0, %v3605
      %3607 = vmatmul.bf16.gmra.mxu0 %v3425
      %v3608 = vpop.f32.mrf.mxu0
      %v3609 = vadd.f32 0.0, %v3608
      %v3610 = vpop.f32.mrf.mxu0
      %v3611 = vadd.f32 0.0, %v3610
      %3612 = vmatmul.bf16.gmra.mxu0 %v3428
      %v3613 = vpop.f32.mrf.mxu0
      %v3614 = vpop.f32.mrf.mxu0
      %3615 = vmatmul.bf16.gmra.mxu0 %v3431
      %v3616 = vpop.f32.mrf.mxu0
      %v3617 = vpop.f32.mrf.mxu0
      %v3618 = vadd.f32 0.0, %v3617
      %3619 = vmatmul.bf16.gmra.mxu0 %v3434
      %v3620 = vpop.f32.mrf.mxu0
      %v3621 = vadd.f32 0.0, %v3620
      %v3622 = vpop.f32.mrf.mxu0
      %v3623 = vadd.f32 0.0, %v3622
      %3624 = vmatmul.bf16.gmra.mxu0 %v3437
      %v3625 = vpop.f32.mrf.mxu0
      %v3626 = vpop.f32.mrf.mxu0
      %3627 = vmatmul.bf16.gmra.mxu0 %v3440
      %v3628 = vpop.f32.mrf.mxu0
      %v3629 = vpop.f32.mrf.mxu0
      %v3630 = vadd.f32 0.0, %v3629
      %3631 = vmatmul.bf16.gmra.mxu0 %v3443
      %v3632 = vpop.f32.mrf.mxu0
      %v3633 = vadd.f32 0.0, %v3632
      %v3634 = vpop.f32.mrf.mxu0
      %v3635 = vadd.f32 0.0, %v3634
      %3636 = vmatmul.bf16.gmra.mxu0 %v3446
      %v3637 = vpop.f32.mrf.mxu0
      %v3638 = vpop.f32.mrf.mxu0
      %3639 = vmatmul.bf16.gmra.mxu0 %v3449
      %v3640 = vpop.f32.mrf.mxu0
      %v3641 = vpop.f32.mrf.mxu0
      %v3642 = vadd.f32 0.0, %v3641
      %3643 = vmatmul.bf16.gmra.mxu0 %v3452
      %v3644 = vpop.f32.mrf.mxu0
      %v3645 = vadd.f32 0.0, %v3644
      %v3646 = vpop.f32.mrf.mxu0
      %v3647 = vadd.f32 0.0, %v3646
      %3648 = vmatmul.bf16.gmra.mxu0 %v3455
      %v3649 = vpop.f32.mrf.mxu0
      %v3650 = vpop.f32.mrf.mxu0
      %3651 = vmatmul.bf16.gmra.mxu0 %v3458
      %v3652 = vpop.f32.mrf.mxu0
      %v3653 = vpop.f32.mrf.mxu0
      %v3654 = vadd.f32 0.0, %v3653
      %3655 = vmatmul.bf16.gmra.mxu0 %v3461
      %v3656 = vpop.f32.mrf.mxu0
      %v3657 = vadd.f32 0.0, %v3656
      %v3658 = vpop.f32.mrf.mxu0
      %v3659 = vadd.f32 0.0, %v3658
      %3660 = vmatmul.bf16.gmra.mxu0 %v3464
      %v3661 = vpop.f32.mrf.mxu0
      %v3662 = vpop.f32.mrf.mxu0
      %3663 = vmatmul.bf16.gmra.mxu0 %v3467
      %v3664 = vpop.f32.mrf.mxu0
      %v3665 = vpop.f32.mrf.mxu0
      %v3666 = vadd.f32 0.0, %v3665
      %3667 = vmatmul.bf16.gmra.mxu0 %v3470
      %v3668 = vpop.f32.mrf.mxu0
      %v3669 = vadd.f32 0.0, %v3668
      %v3670 = vpop.f32.mrf.mxu0
      %v3671 = vadd.f32 0.0, %v3670
      %3672 = vmatmul.bf16.gmra.mxu0 %v3473
      %v3673 = vpop.f32.mrf.mxu0
      %v3674 = vpop.f32.mrf.mxu0
      %3675 = vmatmul.bf16.gmra.mxu0 %v3476
      %v3676 = vpop.f32.mrf.mxu0
      %v3677 = vpop.f32.mrf.mxu0
      %v3678 = vadd.f32 0.0, %v3677
      %3679 = vmatmul.bf16.gmra.mxu0 %v3479
      %v3680 = vpop.f32.mrf.mxu0
      %v3681 = vadd.f32 0.0, %v3680
      %v3682 = vpop.f32.mrf.mxu0
      %v3683 = vadd.f32 0.0, %v3682
      %3684 = vmatmul.bf16.gmra.mxu0 %v3482
      %v3685 = vpop.f32.mrf.mxu0
      %v3686 = vpop.f32.mrf.mxu0
      %3687 = vdwg.mxu0
      %v3688 = vadd.f32 %v2023, %v3498
      %v3689 = vadd.f32 %v2026, %v3501
      %v3690 = vadd.f32 %v2028, %v3503
      %v3691 = vadd.f32 %v2035, %v3510
      %v3692 = vadd.f32 %v2038, %v3513
      %v3693 = vadd.f32 %v2040, %v3515
      %v3694 = vadd.f32 %v2047, %v3522
      %v3695 = vadd.f32 %v2050, %v3525
      %v3696 = vadd.f32 %v2052, %v3527
      %v3697 = vadd.f32 %v2059, %v3534
      %v3698 = vadd.f32 %v2062, %v3537
      %v3699 = vadd.f32 %v2064, %v3539
      %v3700 = vadd.f32 %v2071, %v3546
      %v3701 = vadd.f32 %v2074, %v3549
      %v3702 = vadd.f32 %v2076, %v3551
      %v3703 = vadd.f32 %v2083, %v3558
      %v3704 = vadd.f32 %v2086, %v3561
      %v3705 = vadd.f32 %v2088, %v3563
      %v3706 = vadd.f32 %v2095, %v3570
      %v3707 = vadd.f32 %v2098, %v3573
      %v3708 = vadd.f32 %v2100, %v3575
      %v3709 = vadd.f32 %v2107, %v3582
      %v3710 = vadd.f32 %v2110, %v3585
      %v3711 = vadd.f32 %v2112, %v3587
      %v3712 = vadd.f32 %v2119, %v3594
      %v3713 = vadd.f32 %v2122, %v3597
      %v3714 = vadd.f32 %v2124, %v3599
      %v3715 = vadd.f32 %v2131, %v3606
      %v3716 = vadd.f32 %v2134, %v3609
      %v3717 = vadd.f32 %v2136, %v3611
      %v3718 = vadd.f32 %v2143, %v3618
      %v3719 = vadd.f32 %v2146, %v3621
      %v3720 = vadd.f32 %v2148, %v3623
      %v3721 = vadd.f32 %v2155, %v3630
      %v3722 = vadd.f32 %v2158, %v3633
      %v3723 = vadd.f32 %v2160, %v3635
      %v3724 = vadd.f32 %v2167, %v3642
      %v3725 = vadd.f32 %v2170, %v3645
      %v3726 = vadd.f32 %v2172, %v3647
      %v3727 = vadd.f32 %v2179, %v3654
      %v3728 = vadd.f32 %v2182, %v3657
      %v3729 = vadd.f32 %v2184, %v3659
      %v3730 = vadd.f32 %v2191, %v3666
      %v3731 = vadd.f32 %v2194, %v3669
      %v3732 = vadd.f32 %v2196, %v3671
      %v3733 = vadd.f32 %v2203, %v3678
      %v3734 = vadd.f32 %v2206, %v3681
      %v3735 = vadd.f32 %v2208, %v3683
      %s3736 = scalar_lea.vmem %s4, 14
      %v3737 = vld [vmem:[%s3736] sm:$0x3]
      %v3739 = vsel %vm442, %v3737, 0
      %3741 = vmatpush.bf16.msra.mxu0 0
      %3742 = vmatpush.bf16.msra.mxu0 0
      %3743 = vmatpush.bf16.msra.mxu0 0
      %3744 = vmatpush.bf16.msra.mxu0 0
      %3745 = vmatpush.bf16.msra.mxu0 0
      %3746 = vmatpush.bf16.msra.mxu0 0
      %3747 = vmatpush.bf16.msra.mxu0 0
      %3748 = vmatpush.bf16.msra.mxu0 %v3739
      %3749 = vmatmul.bf16.gmra.mxu0 %v3341
      %v3750 = vpop.f32.mrf.mxu0
      %v3751 = vpop.f32.mrf.mxu0
      %3752 = vmatmul.bf16.gmra.mxu0 %v3344
      %v3753 = vpop.f32.mrf.mxu0
      %v3754 = vadd.f32 0.0, %v3753
      %v3755 = vpop.f32.mrf.mxu0
      %v3756 = vadd.f32 0.0, %v3755
      %3757 = vmatmul.bf16.gmra.mxu0 %v3347
      %v3758 = vpop.f32.mrf.mxu0
      %v3759 = vpop.f32.mrf.mxu0
      %3760 = vmatmul.bf16.gmra.mxu0 %v3350
      %v3761 = vpop.f32.mrf.mxu0
      %v3762 = vpop.f32.mrf.mxu0
      %3763 = vmatmul.bf16.gmra.mxu0 %v3353
      %v3764 = vpop.f32.mrf.mxu0
      %v3765 = vadd.f32 0.0, %v3764
      %v3766 = vpop.f32.mrf.mxu0
      %v3767 = vadd.f32 0.0, %v3766
      %3768 = vmatmul.bf16.gmra.mxu0 %v3356
      %v3769 = vpop.f32.mrf.mxu0
      %v3770 = vpop.f32.mrf.mxu0
      %3771 = vmatmul.bf16.gmra.mxu0 %v3359
      %v3772 = vpop.f32.mrf.mxu0
      %v3773 = vpop.f32.mrf.mxu0
      %3774 = vmatmul.bf16.gmra.mxu0 %v3362
      %v3775 = vpop.f32.mrf.mxu0
      %v3776 = vadd.f32 0.0, %v3775
      %v3777 = vpop.f32.mrf.mxu0
      %v3778 = vadd.f32 0.0, %v3777
      %3779 = vmatmul.bf16.gmra.mxu0 %v3365
      %v3780 = vpop.f32.mrf.mxu0
      %v3781 = vpop.f32.mrf.mxu0
      %3782 = vmatmul.bf16.gmra.mxu0 %v3368
      %v3783 = vpop.f32.mrf.mxu0
      %v3784 = vpop.f32.mrf.mxu0
      %3785 = vmatmul.bf16.gmra.mxu0 %v3371
      %v3786 = vpop.f32.mrf.mxu0
      %v3787 = vadd.f32 0.0, %v3786
      %v3788 = vpop.f32.mrf.mxu0
      %v3789 = vadd.f32 0.0, %v3788
      %3790 = vmatmul.bf16.gmra.mxu0 %v3374
      %v3791 = vpop.f32.mrf.mxu0
      %v3792 = vpop.f32.mrf.mxu0
      %3793 = vmatmul.bf16.gmra.mxu0 %v3377
      %v3794 = vpop.f32.mrf.mxu0
      %v3795 = vpop.f32.mrf.mxu0
      %3796 = vmatmul.bf16.gmra.mxu0 %v3380
      %v3797 = vpop.f32.mrf.mxu0
      %v3798 = vadd.f32 0.0, %v3797
      %v3799 = vpop.f32.mrf.mxu0
      %v3800 = vadd.f32 0.0, %v3799
      %3801 = vmatmul.bf16.gmra.mxu0 %v3383
      %v3802 = vpop.f32.mrf.mxu0
      %v3803 = vpop.f32.mrf.mxu0
      %3804 = vmatmul.bf16.gmra.mxu0 %v3386
      %v3805 = vpop.f32.mrf.mxu0
      %v3806 = vpop.f32.mrf.mxu0
      %3807 = vmatmul.bf16.gmra.mxu0 %v3389
      %v3808 = vpop.f32.mrf.mxu0
      %v3809 = vadd.f32 0.0, %v3808
      %v3810 = vpop.f32.mrf.mxu0
      %v3811 = vadd.f32 0.0, %v3810
      %3812 = vmatmul.bf16.gmra.mxu0 %v3392
      %v3813 = vpop.f32.mrf.mxu0
      %v3814 = vpop.f32.mrf.mxu0
      %3815 = vmatmul.bf16.gmra.mxu0 %v3395
      %v3816 = vpop.f32.mrf.mxu0
      %v3817 = vpop.f32.mrf.mxu0
      %3818 = vmatmul.bf16.gmra.mxu0 %v3398
      %v3819 = vpop.f32.mrf.mxu0
      %v3820 = vadd.f32 0.0, %v3819
      %v3821 = vpop.f32.mrf.mxu0
      %v3822 = vadd.f32 0.0, %v3821
      %3823 = vmatmul.bf16.gmra.mxu0 %v3401
      %v3824 = vpop.f32.mrf.mxu0
      %v3825 = vpop.f32.mrf.mxu0
      %3826 = vmatmul.bf16.gmra.mxu0 %v3404
      %v3827 = vpop.f32.mrf.mxu0
      %v3828 = vpop.f32.mrf.mxu0
      %3829 = vmatmul.bf16.gmra.mxu0 %v3407
      %v3830 = vpop.f32.mrf.mxu0
      %v3831 = vadd.f32 0.0, %v3830
      %v3832 = vpop.f32.mrf.mxu0
      %v3833 = vadd.f32 0.0, %v3832
      %3834 = vmatmul.bf16.gmra.mxu0 %v3410
      %v3835 = vpop.f32.mrf.mxu0
      %v3836 = vpop.f32.mrf.mxu0
      %3837 = vmatmul.bf16.gmra.mxu0 %v3413
      %v3838 = vpop.f32.mrf.mxu0
      %v3839 = vpop.f32.mrf.mxu0
      %3840 = vmatmul.bf16.gmra.mxu0 %v3416
      %v3841 = vpop.f32.mrf.mxu0
      %v3842 = vadd.f32 0.0, %v3841
      %v3843 = vpop.f32.mrf.mxu0
      %v3844 = vadd.f32 0.0, %v3843
      %3845 = vmatmul.bf16.gmra.mxu0 %v3419
      %v3846 = vpop.f32.mrf.mxu0
      %v3847 = vpop.f32.mrf.mxu0
      %3848 = vmatmul.bf16.gmra.mxu0 %v3422
      %v3849 = vpop.f32.mrf.mxu0
      %v3850 = vpop.f32.mrf.mxu0
      %3851 = vmatmul.bf16.gmra.mxu0 %v3425
      %v3852 = vpop.f32.mrf.mxu0
      %v3853 = vadd.f32 0.0, %v3852
      %v3854 = vpop.f32.mrf.mxu0
      %v3855 = vadd.f32 0.0, %v3854
      %3856 = vmatmul.bf16.gmra.mxu0 %v3428
      %v3857 = vpop.f32.mrf.mxu0
      %v3858 = vpop.f32.mrf.mxu0
      %3859 = vmatmul.bf16.gmra.mxu0 %v3431
      %v3860 = vpop.f32.mrf.mxu0
      %v3861 = vpop.f32.mrf.mxu0
      %3862 = vmatmul.bf16.gmra.mxu0 %v3434
      %v3863 = vpop.f32.mrf.mxu0
      %v3864 = vadd.f32 0.0, %v3863
      %v3865 = vpop.f32.mrf.mxu0
      %v3866 = vadd.f32 0.0, %v3865
      %3867 = vmatmul.bf16.gmra.mxu0 %v3437
      %v3868 = vpop.f32.mrf.mxu0
      %v3869 = vpop.f32.mrf.mxu0
      %3870 = vmatmul.bf16.gmra.mxu0 %v3440
      %v3871 = vpop.f32.mrf.mxu0
      %v3872 = vpop.f32.mrf.mxu0
      %3873 = vmatmul.bf16.gmra.mxu0 %v3443
      %v3874 = vpop.f32.mrf.mxu0
      %v3875 = vadd.f32 0.0, %v3874
      %v3876 = vpop.f32.mrf.mxu0
      %v3877 = vadd.f32 0.0, %v3876
      %3878 = vmatmul.bf16.gmra.mxu0 %v3446
      %v3879 = vpop.f32.mrf.mxu0
      %v3880 = vpop.f32.mrf.mxu0
      %3881 = vmatmul.bf16.gmra.mxu0 %v3449
      %v3882 = vpop.f32.mrf.mxu0
      %v3883 = vpop.f32.mrf.mxu0
      %3884 = vmatmul.bf16.gmra.mxu0 %v3452
      %v3885 = vpop.f32.mrf.mxu0
      %v3886 = vadd.f32 0.0, %v3885
      %v3887 = vpop.f32.mrf.mxu0
      %v3888 = vadd.f32 0.0, %v3887
      %3889 = vmatmul.bf16.gmra.mxu0 %v3455
      %v3890 = vpop.f32.mrf.mxu0
      %v3891 = vpop.f32.mrf.mxu0
      %3892 = vmatmul.bf16.gmra.mxu0 %v3458
      %v3893 = vpop.f32.mrf.mxu0
      %v3894 = vpop.f32.mrf.mxu0
      %3895 = vmatmul.bf16.gmra.mxu0 %v3461
      %v3896 = vpop.f32.mrf.mxu0
      %v3897 = vadd.f32 0.0, %v3896
      %v3898 = vpop.f32.mrf.mxu0
      %v3899 = vadd.f32 0.0, %v3898
      %3900 = vmatmul.bf16.gmra.mxu0 %v3464
      %v3901 = vpop.f32.mrf.mxu0
      %v3902 = vpop.f32.mrf.mxu0
      %3903 = vmatmul.bf16.gmra.mxu0 %v3467
      %v3904 = vpop.f32.mrf.mxu0
      %v3905 = vpop.f32.mrf.mxu0
      %3906 = vmatmul.bf16.gmra.mxu0 %v3470
      %v3907 = vpop.f32.mrf.mxu0
      %v3908 = vadd.f32 0.0, %v3907
      %v3909 = vpop.f32.mrf.mxu0
      %v3910 = vadd.f32 0.0, %v3909
      %3911 = vmatmul.bf16.gmra.mxu0 %v3473
      %v3912 = vpop.f32.mrf.mxu0
      %v3913 = vpop.f32.mrf.mxu0
      %3914 = vmatmul.bf16.gmra.mxu0 %v3476
      %v3915 = vpop.f32.mrf.mxu0
      %v3916 = vpop.f32.mrf.mxu0
      %3917 = vmatmul.bf16.gmra.mxu0 %v3479
      %v3918 = vpop.f32.mrf.mxu0
      %v3919 = vadd.f32 0.0, %v3918
      %v3920 = vpop.f32.mrf.mxu0
      %v3921 = vadd.f32 0.0, %v3920
      %3922 = vmatmul.bf16.gmra.mxu0 %v3482
      %v3923 = vpop.f32.mrf.mxu0
      %v3924 = vpop.f32.mrf.mxu0
      %3925 = vdwg.mxu0
      %v3926 = vadd.f32 %v2419, %v3754
      %v3927 = vadd.f32 %v2421, %v3756
      %v3928 = vadd.f32 %v2430, %v3765
      %v3929 = vadd.f32 %v2432, %v3767
      %v3930 = vadd.f32 %v2441, %v3776
      %v3931 = vadd.f32 %v2443, %v3778
      %v3932 = vadd.f32 %v2452, %v3787
      %v3933 = vadd.f32 %v2454, %v3789
      %v3934 = vadd.f32 %v2463, %v3798
      %v3935 = vadd.f32 %v2465, %v3800
      %v3936 = vadd.f32 %v2474, %v3809
      %v3937 = vadd.f32 %v2476, %v3811
      %v3938 = vadd.f32 %v2485, %v3820
      %v3939 = vadd.f32 %v2487, %v3822
      %v3940 = vadd.f32 %v2496, %v3831
      %v3941 = vadd.f32 %v2498, %v3833
      %v3942 = vadd.f32 %v2507, %v3842
      %v3943 = vadd.f32 %v2509, %v3844
      %v3944 = vadd.f32 %v2518, %v3853
      %v3945 = vadd.f32 %v2520, %v3855
      %v3946 = vadd.f32 %v2529, %v3864
      %v3947 = vadd.f32 %v2531, %v3866
      %v3948 = vadd.f32 %v2540, %v3875
      %v3949 = vadd.f32 %v2542, %v3877
      %v3950 = vadd.f32 %v2551, %v3886
      %v3951 = vadd.f32 %v2553, %v3888
      %v3952 = vadd.f32 %v2562, %v3897
      %v3953 = vadd.f32 %v2564, %v3899
      %v3954 = vadd.f32 %v2573, %v3908
      %v3955 = vadd.f32 %v2575, %v3910
      %v3956 = vadd.f32 %v2584, %v3919
      %v3957 = vadd.f32 %v2586, %v3921
      %s3958 = scalar_lea.vmem %s4, 16
      %v3959 = vld [vmem:[%s3958] sm:$0x3]
      %v3961 = vsel %vm442, %v3959, 0
      %3963 = vmatpush.bf16.msra.mxu0 0
      %3964 = vmatpush.bf16.msra.mxu0 0
      %3965 = vmatpush.bf16.msra.mxu0 0
      %3966 = vmatpush.bf16.msra.mxu0 0
      %3967 = vmatpush.bf16.msra.mxu0 0
      %3968 = vmatpush.bf16.msra.mxu0 0
      %3969 = vmatpush.bf16.msra.mxu0 0
      %3970 = vmatpush.bf16.msra.mxu0 %v3961
      %3971 = vmatmul.bf16.gmra.mxu0 %v3341
      %v3972 = vpop.f32.mrf.mxu0
      %v3973 = vpop.f32.mrf.mxu0
      %3974 = vmatmul.bf16.gmra.mxu0 %v3344
      %v3975 = vpop.f32.mrf.mxu0
      %v3976 = vadd.f32 0.0, %v3975
      %v3977 = vpop.f32.mrf.mxu0
      %v3978 = vadd.f32 0.0, %v3977
      %3979 = vmatmul.bf16.gmra.mxu0 %v3347
      %v3980 = vpop.f32.mrf.mxu0
      %v3981 = vadd.f32 0.0, %v3980
      %v3982 = vpop.f32.mrf.mxu0
      %3983 = vmatmul.bf16.gmra.mxu0 %v3350
      %v3984 = vpop.f32.mrf.mxu0
      %v3985 = vpop.f32.mrf.mxu0
      %3986 = vmatmul.bf16.gmra.mxu0 %v3353
      %v3987 = vpop.f32.mrf.mxu0
      %v3988 = vadd.f32 0.0, %v3987
      %v3989 = vpop.f32.mrf.mxu0
      %v3990 = vadd.f32 0.0, %v3989
      %3991 = vmatmul.bf16.gmra.mxu0 %v3356
      %v3992 = vpop.f32.mrf.mxu0
      %v3993 = vadd.f32 0.0, %v3992
      %v3994 = vpop.f32.mrf.mxu0
      %3995 = vmatmul.bf16.gmra.mxu0 %v3359
      %v3996 = vpop.f32.mrf.mxu0
      %v3997 = vpop.f32.mrf.mxu0
      %3998 = vmatmul.bf16.gmra.mxu0 %v3362
      %v3999 = vpop.f32.mrf.mxu0
      %v4000 = vadd.f32 0.0, %v3999
      %v4001 = vpop.f32.mrf.mxu0
      %v4002 = vadd.f32 0.0, %v4001
      %4003 = vmatmul.bf16.gmra.mxu0 %v3365
      %v4004 = vpop.f32.mrf.mxu0
      %v4005 = vadd.f32 0.0, %v4004
      %v4006 = vpop.f32.mrf.mxu0
      %4007 = vmatmul.bf16.gmra.mxu0 %v3368
      %v4008 = vpop.f32.mrf.mxu0
      %v4009 = vpop.f32.mrf.mxu0
      %4010 = vmatmul.bf16.gmra.mxu0 %v3371
      %v4011 = vpop.f32.mrf.mxu0
      %v4012 = vadd.f32 0.0, %v4011
      %v4013 = vpop.f32.mrf.mxu0
      %v4014 = vadd.f32 0.0, %v4013
      %4015 = vmatmul.bf16.gmra.mxu0 %v3374
      %v4016 = vpop.f32.mrf.mxu0
      %v4017 = vadd.f32 0.0, %v4016
      %v4018 = vpop.f32.mrf.mxu0
      %4019 = vmatmul.bf16.gmra.mxu0 %v3377
      %v4020 = vpop.f32.mrf.mxu0
      %v4021 = vpop.f32.mrf.mxu0
      %4022 = vmatmul.bf16.gmra.mxu0 %v3380
      %v4023 = vpop.f32.mrf.mxu0
      %v4024 = vadd.f32 0.0, %v4023
      %v4025 = vpop.f32.mrf.mxu0
      %v4026 = vadd.f32 0.0, %v4025
      %4027 = vmatmul.bf16.gmra.mxu0 %v3383
      %v4028 = vpop.f32.mrf.mxu0
      %v4029 = vadd.f32 0.0, %v4028
      %v4030 = vpop.f32.mrf.mxu0
      %4031 = vmatmul.bf16.gmra.mxu0 %v3386
      %v4032 = vpop.f32.mrf.mxu0
      %v4033 = vpop.f32.mrf.mxu0
      %4034 = vmatmul.bf16.gmra.mxu0 %v3389
      %v4035 = vpop.f32.mrf.mxu0
      %v4036 = vadd.f32 0.0, %v4035
      %v4037 = vpop.f32.mrf.mxu0
      %v4038 = vadd.f32 0.0, %v4037
      %4039 = vmatmul.bf16.gmra.mxu0 %v3392
      %v4040 = vpop.f32.mrf.mxu0
      %v4041 = vadd.f32 0.0, %v4040
      %v4042 = vpop.f32.mrf.mxu0
      %4043 = vmatmul.bf16.gmra.mxu0 %v3395
      %v4044 = vpop.f32.mrf.mxu0
      %v4045 = vpop.f32.mrf.mxu0
      %4046 = vmatmul.bf16.gmra.mxu0 %v3398
      %v4047 = vpop.f32.mrf.mxu0
      %v4048 = vadd.f32 0.0, %v4047
      %v4049 = vpop.f32.mrf.mxu0
      %v4050 = vadd.f32 0.0, %v4049
      %4051 = vmatmul.bf16.gmra.mxu0 %v3401
      %v4052 = vpop.f32.mrf.mxu0
      %v4053 = vadd.f32 0.0, %v4052
      %v4054 = vpop.f32.mrf.mxu0
      %4055 = vmatmul.bf16.gmra.mxu0 %v3404
      %v4056 = vpop.f32.mrf.mxu0
      %v4057 = vpop.f32.mrf.mxu0
      %4058 = vmatmul.bf16.gmra.mxu0 %v3407
      %v4059 = vpop.f32.mrf.mxu0
      %v4060 = vadd.f32 0.0, %v4059
      %v4061 = vpop.f32.mrf.mxu0
      %v4062 = vadd.f32 0.0, %v4061
      %4063 = vmatmul.bf16.gmra.mxu0 %v3410
      %v4064 = vpop.f32.mrf.mxu0
      %v4065 = vadd.f32 0.0, %v4064
      %v4066 = vpop.f32.mrf.mxu0
      %4067 = vmatmul.bf16.gmra.mxu0 %v3413
      %v4068 = vpop.f32.mrf.mxu0
      %v4069 = vpop.f32.mrf.mxu0
      %4070 = vmatmul.bf16.gmra.mxu0 %v3416
      %v4071 = vpop.f32.mrf.mxu0
      %v4072 = vadd.f32 0.0, %v4071
      %v4073 = vpop.f32.mrf.mxu0
      %v4074 = vadd.f32 0.0, %v4073
      %4075 = vmatmul.bf16.gmra.mxu0 %v3419
      %v4076 = vpop.f32.mrf.mxu0
      %v4077 = vadd.f32 0.0, %v4076
      %v4078 = vpop.f32.mrf.mxu0
      %4079 = vmatmul.bf16.gmra.mxu0 %v3422
      %v4080 = vpop.f32.mrf.mxu0
      %v4081 = vpop.f32.mrf.mxu0
      %4082 = vmatmul.bf16.gmra.mxu0 %v3425
      %v4083 = vpop.f32.mrf.mxu0
      %v4084 = vadd.f32 0.0, %v4083
      %v4085 = vpop.f32.mrf.mxu0
      %v4086 = vadd.f32 0.0, %v4085
      %4087 = vmatmul.bf16.gmra.mxu0 %v3428
      %v4088 = vpop.f32.mrf.mxu0
      %v4089 = vadd.f32 0.0, %v4088
      %v4090 = vpop.f32.mrf.mxu0
      %4091 = vmatmul.bf16.gmra.mxu0 %v3431
      %v4092 = vpop.f32.mrf.mxu0
      %v4093 = vpop.f32.mrf.mxu0
      %4094 = vmatmul.bf16.gmra.mxu0 %v3434
      %v4095 = vpop.f32.mrf.mxu0
      %v4096 = vadd.f32 0.0, %v4095
      %v4097 = vpop.f32.mrf.mxu0
      %v4098 = vadd.f32 0.0, %v4097
      %4099 = vmatmul.bf16.gmra.mxu0 %v3437
      %v4100 = vpop.f32.mrf.mxu0
      %v4101 = vadd.f32 0.0, %v4100
      %v4102 = vpop.f32.mrf.mxu0
      %4103 = vmatmul.bf16.gmra.mxu0 %v3440
      %v4104 = vpop.f32.mrf.mxu0
      %v4105 = vpop.f32.mrf.mxu0
      %4106 = vmatmul.bf16.gmra.mxu0 %v3443
      %v4107 = vpop.f32.mrf.mxu0
      %v4108 = vadd.f32 0.0, %v4107
      %v4109 = vpop.f32.mrf.mxu0
      %v4110 = vadd.f32 0.0, %v4109
      %4111 = vmatmul.bf16.gmra.mxu0 %v3446
      %v4112 = vpop.f32.mrf.mxu0
      %v4113 = vadd.f32 0.0, %v4112
      %v4114 = vpop.f32.mrf.mxu0
      %4115 = vmatmul.bf16.gmra.mxu0 %v3449
      %v4116 = vpop.f32.mrf.mxu0
      %v4117 = vpop.f32.mrf.mxu0
      %4118 = vmatmul.bf16.gmra.mxu0 %v3452
      %v4119 = vpop.f32.mrf.mxu0
      %v4120 = vadd.f32 0.0, %v4119
      %v4121 = vpop.f32.mrf.mxu0
      %v4122 = vadd.f32 0.0, %v4121
      %4123 = vmatmul.bf16.gmra.mxu0 %v3455
      %v4124 = vpop.f32.mrf.mxu0
      %v4125 = vadd.f32 0.0, %v4124
      %v4126 = vpop.f32.mrf.mxu0
      %4127 = vmatmul.bf16.gmra.mxu0 %v3458
      %v4128 = vpop.f32.mrf.mxu0
      %v4129 = vpop.f32.mrf.mxu0
      %4130 = vmatmul.bf16.gmra.mxu0 %v3461
      %v4131 = vpop.f32.mrf.mxu0
      %v4132 = vadd.f32 0.0, %v4131
      %v4133 = vpop.f32.mrf.mxu0
      %v4134 = vadd.f32 0.0, %v4133
      %4135 = vmatmul.bf16.gmra.mxu0 %v3464
      %v4136 = vpop.f32.mrf.mxu0
      %v4137 = vadd.f32 0.0, %v4136
      %v4138 = vpop.f32.mrf.mxu0
      %4139 = vmatmul.bf16.gmra.mxu0 %v3467
      %v4140 = vpop.f32.mrf.mxu0
      %v4141 = vpop.f32.mrf.mxu0
      %4142 = vmatmul.bf16.gmra.mxu0 %v3470
      %v4143 = vpop.f32.mrf.mxu0
      %v4144 = vadd.f32 0.0, %v4143
      %v4145 = vpop.f32.mrf.mxu0
      %v4146 = vadd.f32 0.0, %v4145
      %4147 = vmatmul.bf16.gmra.mxu0 %v3473
      %v4148 = vpop.f32.mrf.mxu0
      %v4149 = vadd.f32 0.0, %v4148
      %v4150 = vpop.f32.mrf.mxu0
      %4151 = vmatmul.bf16.gmra.mxu0 %v3476
      %v4152 = vpop.f32.mrf.mxu0
      %v4153 = vpop.f32.mrf.mxu0
      %4154 = vmatmul.bf16.gmra.mxu0 %v3479
      %v4155 = vpop.f32.mrf.mxu0
      %v4156 = vadd.f32 0.0, %v4155
      %v4157 = vpop.f32.mrf.mxu0
      %v4158 = vadd.f32 0.0, %v4157
      %4159 = vmatmul.bf16.gmra.mxu0 %v3482
      %v4160 = vpop.f32.mrf.mxu0
      %v4161 = vadd.f32 0.0, %v4160
      %v4162 = vpop.f32.mrf.mxu0
      %4163 = vdwg.mxu0
      %v4164 = vadd.f32 %v2813, %v3976
      %v4165 = vadd.f32 %v2815, %v3978
      %v4166 = vadd.f32 %v2818, %v3981
      %v4167 = vadd.f32 %v2825, %v3988
      %v4168 = vadd.f32 %v2827, %v3990
      %v4169 = vadd.f32 %v2830, %v3993
      %v4170 = vadd.f32 %v2837, %v4000
      %v4171 = vadd.f32 %v2839, %v4002
      %v4172 = vadd.f32 %v2842, %v4005
      %v4173 = vadd.f32 %v2849, %v4012
      %v4174 = vadd.f32 %v2851, %v4014
      %v4175 = vadd.f32 %v2854, %v4017
      %v4176 = vadd.f32 %v2861, %v4024
      %v4177 = vadd.f32 %v2863, %v4026
      %v4178 = vadd.f32 %v2866, %v4029
      %v4179 = vadd.f32 %v2873, %v4036
      %v4180 = vadd.f32 %v2875, %v4038
      %v4181 = vadd.f32 %v2878, %v4041
      %v4182 = vadd.f32 %v2885, %v4048
      %v4183 = vadd.f32 %v2887, %v4050
      %v4184 = vadd.f32 %v2890, %v4053
      %v4185 = vadd.f32 %v2897, %v4060
      %v4186 = vadd.f32 %v2899, %v4062
      %v4187 = vadd.f32 %v2902, %v4065
      %v4188 = vadd.f32 %v2909, %v4072
      %v4189 = vadd.f32 %v2911, %v4074
      %v4190 = vadd.f32 %v2914, %v4077
      %v4191 = vadd.f32 %v2921, %v4084
      %v4192 = vadd.f32 %v2923, %v4086
      %v4193 = vadd.f32 %v2926, %v4089
      %v4194 = vadd.f32 %v2933, %v4096
      %v4195 = vadd.f32 %v2935, %v4098
      %v4196 = vadd.f32 %v2938, %v4101
      %v4197 = vadd.f32 %v2945, %v4108
      %v4198 = vadd.f32 %v2947, %v4110
      %v4199 = vadd.f32 %v2950, %v4113
      %v4200 = vadd.f32 %v2957, %v4120
      %v4201 = vadd.f32 %v2959, %v4122
      %v4202 = vadd.f32 %v2962, %v4125
      %v4203 = vadd.f32 %v2969, %v4132
      %v4204 = vadd.f32 %v2971, %v4134
      %v4205 = vadd.f32 %v2974, %v4137
      %v4206 = vadd.f32 %v2981, %v4144
      %v4207 = vadd.f32 %v2983, %v4146
      %v4208 = vadd.f32 %v2986, %v4149
      %v4209 = vadd.f32 %v2993, %v4156
      %v4210 = vadd.f32 %v2995, %v4158
      %v4211 = vadd.f32 %v2998, %v4161
      %vm4244 = vcmask 1044480
      %v4245 = vrot.slane %v3926, 3
      %v4246 = vrot.slane %v3927, 3
      %v4247 = vsel %vm4244, %v4245, %v4246
      %v4248 = vrot.slane %v3928, 3
      %v4249 = vrot.slane %v3929, 3
      %v4250 = vsel %vm4244, %v4248, %v4249
      %v4251 = vrot.slane %v3930, 3
      %v4252 = vrot.slane %v3931, 3
      %v4253 = vsel %vm4244, %v4251, %v4252
      %v4254 = vrot.slane %v3932, 3
      %v4255 = vrot.slane %v3933, 3
      %v4256 = vsel %vm4244, %v4254, %v4255
      %v4257 = vrot.slane %v3934, 3
      %v4258 = vrot.slane %v3935, 3
      %v4259 = vsel %vm4244, %v4257, %v4258
      %v4260 = vrot.slane %v3936, 3
      %v4261 = vrot.slane %v3937, 3
      %v4262 = vsel %vm4244, %v4260, %v4261
      %v4263 = vrot.slane %v3938, 3
      %v4264 = vrot.slane %v3939, 3
      %v4265 = vsel %vm4244, %v4263, %v4264
      %v4266 = vrot.slane %v3940, 3
      %v4267 = vrot.slane %v3941, 3
      %v4268 = vsel %vm4244, %v4266, %v4267
      %v4269 = vrot.slane %v3942, 3
      %v4270 = vrot.slane %v3943, 3
      %v4271 = vsel %vm4244, %v4269, %v4270
      %v4272 = vrot.slane %v3944, 3
      %v4273 = vrot.slane %v3945, 3
      %v4274 = vsel %vm4244, %v4272, %v4273
      %v4275 = vrot.slane %v3946, 3
      %v4276 = vrot.slane %v3947, 3
      %v4277 = vsel %vm4244, %v4275, %v4276
      %v4278 = vrot.slane %v3948, 3
      %v4279 = vrot.slane %v3949, 3
      %v4280 = vsel %vm4244, %v4278, %v4279
      %v4281 = vrot.slane %v3950, 3
      %v4282 = vrot.slane %v3951, 3
      %v4283 = vsel %vm4244, %v4281, %v4282
      %v4284 = vrot.slane %v3952, 3
      %v4285 = vrot.slane %v3953, 3
      %v4286 = vsel %vm4244, %v4284, %v4285
      %v4287 = vrot.slane %v3954, 3
      %v4288 = vrot.slane %v3955, 3
      %v4289 = vsel %vm4244, %v4287, %v4288
      %v4290 = vrot.slane %v3956, 3
      %v4291 = vrot.slane %v3957, 3
      %v4292 = vsel %vm4244, %v4290, %v4291
      %v4341 = vadd.f32 %v3688, %v4245
      %v4342 = vadd.f32 %v3689, %v4247
      %v4343 = vadd.f32 %v3690, %v4246
      %v4344 = vadd.f32 %v3691, %v4248
      %v4345 = vadd.f32 %v3692, %v4250
      %v4346 = vadd.f32 %v3693, %v4249
      %v4347 = vadd.f32 %v3694, %v4251
      %v4348 = vadd.f32 %v3695, %v4253
      %v4349 = vadd.f32 %v3696, %v4252
      %v4350 = vadd.f32 %v3697, %v4254
      %v4351 = vadd.f32 %v3698, %v4256
      %v4352 = vadd.f32 %v3699, %v4255
      %v4353 = vadd.f32 %v3700, %v4257
      %v4354 = vadd.f32 %v3701, %v4259
      %v4355 = vadd.f32 %v3702, %v4258
      %v4356 = vadd.f32 %v3703, %v4260
      %v4357 = vadd.f32 %v3704, %v4262
      %v4358 = vadd.f32 %v3705, %v4261
      %v4359 = vadd.f32 %v3706, %v4263
      %v4360 = vadd.f32 %v3707, %v4265
      %v4361 = vadd.f32 %v3708, %v4264
      %v4362 = vadd.f32 %v3709, %v4266
      %v4363 = vadd.f32 %v3710, %v4268
      %v4364 = vadd.f32 %v3711, %v4267
      %v4365 = vadd.f32 %v3712, %v4269
      %v4366 = vadd.f32 %v3713, %v4271
      %v4367 = vadd.f32 %v3714, %v4270
      %v4368 = vadd.f32 %v3715, %v4272
      %v4369 = vadd.f32 %v3716, %v4274
      %v4370 = vadd.f32 %v3717, %v4273
      %v4371 = vadd.f32 %v3718, %v4275
      %v4372 = vadd.f32 %v3719, %v4277
      %v4373 = vadd.f32 %v3720, %v4276
      %v4374 = vadd.f32 %v3721, %v4278
      %v4375 = vadd.f32 %v3722, %v4280
      %v4376 = vadd.f32 %v3723, %v4279
      %v4377 = vadd.f32 %v3724, %v4281
      %v4378 = vadd.f32 %v3725, %v4283
      %v4379 = vadd.f32 %v3726, %v4282
      %v4380 = vadd.f32 %v3727, %v4284
      %v4381 = vadd.f32 %v3728, %v4286
      %v4382 = vadd.f32 %v3729, %v4285
      %v4383 = vadd.f32 %v3730, %v4287
      %v4384 = vadd.f32 %v3731, %v4289
      %v4385 = vadd.f32 %v3732, %v4288
      %v4386 = vadd.f32 %v3733, %v4290
      %v4387 = vadd.f32 %v3734, %v4292
      %v4388 = vadd.f32 %v3735, %v4291
      %v4437 = vrot.slane %v4164, 6
      %v4438 = vrot.slane %v4165, 6
      %v4439 = vsel %vm442, %v4437, %v4438
      %v4440 = vrot.slane %v4166, 6
      %v4441 = vsel %vm442, %v4438, %v4440
      %v4442 = vrot.slane %v4167, 6
      %v4443 = vrot.slane %v4168, 6
      %v4444 = vsel %vm442, %v4442, %v4443
      %v4445 = vrot.slane %v4169, 6
      %v4446 = vsel %vm442, %v4443, %v4445
      %v4447 = vrot.slane %v4170, 6
      %v4448 = vrot.slane %v4171, 6
      %v4449 = vsel %vm442, %v4447, %v4448
      %v4450 = vrot.slane %v4172, 6
      %v4451 = vsel %vm442, %v4448, %v4450
      %v4452 = vrot.slane %v4173, 6
      %v4453 = vrot.slane %v4174, 6
      %v4454 = vsel %vm442, %v4452, %v4453
      %v4455 = vrot.slane %v4175, 6
      %v4456 = vsel %vm442, %v4453, %v4455
      %v4457 = vrot.slane %v4176, 6
      %v4458 = vrot.slane %v4177, 6
      %v4459 = vsel %vm442, %v4457, %v4458
      %v4460 = vrot.slane %v4178, 6
      %v4461 = vsel %vm442, %v4458, %v4460
      %v4462 = vrot.slane %v4179, 6
      %v4463 = vrot.slane %v4180, 6
      %v4464 = vsel %vm442, %v4462, %v4463
      %v4465 = vrot.slane %v4181, 6
      %v4466 = vsel %vm442, %v4463, %v4465
      %v4467 = vrot.slane %v4182, 6
      %v4468 = vrot.slane %v4183, 6
      %v4469 = vsel %vm442, %v4467, %v4468
      %v4470 = vrot.slane %v4184, 6
      %v4471 = vsel %vm442, %v4468, %v4470
      %v4472 = vrot.slane %v4185, 6
      %v4473 = vrot.slane %v4186, 6
      %v4474 = vsel %vm442, %v4472, %v4473
      %v4475 = vrot.slane %v4187, 6
      %v4476 = vsel %vm442, %v4473, %v4475
      %v4477 = vrot.slane %v4188, 6
      %v4478 = vrot.slane %v4189, 6
      %v4479 = vsel %vm442, %v4477, %v4478
      %v4480 = vrot.slane %v4190, 6
      %v4481 = vsel %vm442, %v4478, %v4480
      %v4482 = vrot.slane %v4191, 6
      %v4483 = vrot.slane %v4192, 6
      %v4484 = vsel %vm442, %v4482, %v4483
      %v4485 = vrot.slane %v4193, 6
      %v4486 = vsel %vm442, %v4483, %v4485
      %v4487 = vrot.slane %v4194, 6
      %v4488 = vrot.slane %v4195, 6
      %v4489 = vsel %vm442, %v4487, %v4488
      %v4490 = vrot.slane %v4196, 6
      %v4491 = vsel %vm442, %v4488, %v4490
      %v4492 = vrot.slane %v4197, 6
      %v4493 = vrot.slane %v4198, 6
      %v4494 = vsel %vm442, %v4492, %v4493
      %v4495 = vrot.slane %v4199, 6
      %v4496 = vsel %vm442, %v4493, %v4495
      %v4497 = vrot.slane %v4200, 6
      %v4498 = vrot.slane %v4201, 6
      %v4499 = vsel %vm442, %v4497, %v4498
      %v4500 = vrot.slane %v4202, 6
      %v4501 = vsel %vm442, %v4498, %v4500
      %v4502 = vrot.slane %v4203, 6
      %v4503 = vrot.slane %v4204, 6
      %v4504 = vsel %vm442, %v4502, %v4503
      %v4505 = vrot.slane %v4205, 6
      %v4506 = vsel %vm442, %v4503, %v4505
      %v4507 = vrot.slane %v4206, 6
      %v4508 = vrot.slane %v4207, 6
      %v4509 = vsel %vm442, %v4507, %v4508
      %v4510 = vrot.slane %v4208, 6
      %v4511 = vsel %vm442, %v4508, %v4510
      %v4512 = vrot.slane %v4209, 6
      %v4513 = vrot.slane %v4210, 6
      %v4514 = vsel %vm442, %v4512, %v4513
      %v4515 = vrot.slane %v4211, 6
      %v4516 = vsel %vm442, %v4513, %v4515
      %v4565 = vadd.f32 %v4341, %v4437
      %v4566 = vadd.f32 %v4342, %v4439
      %v4567 = vadd.f32 %v4343, %v4441
      %v4568 = vadd.f32 %v4344, %v4442
      %v4569 = vadd.f32 %v4345, %v4444
      %v4570 = vadd.f32 %v4346, %v4446
      %v4571 = vadd.f32 %v4347, %v4447
      %v4572 = vadd.f32 %v4348, %v4449
      %v4573 = vadd.f32 %v4349, %v4451
      %v4574 = vadd.f32 %v4350, %v4452
      %v4575 = vadd.f32 %v4351, %v4454
      %v4576 = vadd.f32 %v4352, %v4456
      %v4577 = vadd.f32 %v4353, %v4457
      %v4578 = vadd.f32 %v4354, %v4459
      %v4579 = vadd.f32 %v4355, %v4461
      %v4580 = vadd.f32 %v4356, %v4462
      %v4581 = vadd.f32 %v4357, %v4464
      %v4582 = vadd.f32 %v4358, %v4466
      %v4583 = vadd.f32 %v4359, %v4467
      %v4584 = vadd.f32 %v4360, %v4469
      %v4585 = vadd.f32 %v4361, %v4471
      %v4586 = vadd.f32 %v4362, %v4472
      %v4587 = vadd.f32 %v4363, %v4474
      %v4588 = vadd.f32 %v4364, %v4476
      %v4589 = vadd.f32 %v4365, %v4477
      %v4590 = vadd.f32 %v4366, %v4479
      %v4591 = vadd.f32 %v4367, %v4481
      %v4592 = vadd.f32 %v4368, %v4482
      %v4593 = vadd.f32 %v4369, %v4484
      %v4594 = vadd.f32 %v4370, %v4486
      %v4595 = vadd.f32 %v4371, %v4487
      %v4596 = vadd.f32 %v4372, %v4489
      %v4597 = vadd.f32 %v4373, %v4491
      %v4598 = vadd.f32 %v4374, %v4492
      %v4599 = vadd.f32 %v4375, %v4494
      %v4600 = vadd.f32 %v4376, %v4496
      %v4601 = vadd.f32 %v4377, %v4497
      %v4602 = vadd.f32 %v4378, %v4499
      %v4603 = vadd.f32 %v4379, %v4501
      %v4604 = vadd.f32 %v4380, %v4502
      %v4605 = vadd.f32 %v4381, %v4504
      %v4606 = vadd.f32 %v4382, %v4506
      %v4607 = vadd.f32 %v4383, %v4507
      %v4608 = vadd.f32 %v4384, %v4509
      %v4609 = vadd.f32 %v4385, %v4511
      %v4610 = vadd.f32 %v4386, %v4512
      %v4611 = vadd.f32 %v4387, %v4514
      %v4612 = vadd.f32 %v4388, %v4516
      %vm4661 = vcmask 1042432
      %v4662 = vrot.slane %v4565, 5
      %v4663 = vrot.slane %v4566, 5
      %v4664 = vsel %vm4661, %v4662, %v4663
      %v4665 = vrot.slane %v4567, 5
      %v4666 = vsel %vm4661, %v4663, %v4665
      %v4667 = vrot.slane %v4568, 5
      %v4668 = vrot.slane %v4569, 5
      %v4669 = vsel %vm4661, %v4667, %v4668
      %v4670 = vrot.slane %v4570, 5
      %v4671 = vsel %vm4661, %v4668, %v4670
      %v4672 = vrot.slane %v4571, 5
      %v4673 = vrot.slane %v4572, 5
      %v4674 = vsel %vm4661, %v4672, %v4673
      %v4675 = vrot.slane %v4573, 5
      %v4676 = vsel %vm4661, %v4673, %v4675
      %v4677 = vrot.slane %v4574, 5
      %v4678 = vrot.slane %v4575, 5
      %v4679 = vsel %vm4661, %v4677, %v4678
      %v4680 = vrot.slane %v4576, 5
      %v4681 = vsel %vm4661, %v4678, %v4680
      %v4682 = vrot.slane %v4577, 5
      %v4683 = vrot.slane %v4578, 5
      %v4684 = vsel %vm4661, %v4682, %v4683
      %v4685 = vrot.slane %v4579, 5
      %v4686 = vsel %vm4661, %v4683, %v4685
      %v4687 = vrot.slane %v4580, 5
      %v4688 = vrot.slane %v4581, 5
      %v4689 = vsel %vm4661, %v4687, %v4688
      %v4690 = vrot.slane %v4582, 5
      %v4691 = vsel %vm4661, %v4688, %v4690
      %v4692 = vrot.slane %v4583, 5
      %v4693 = vrot.slane %v4584, 5
      %v4694 = vsel %vm4661, %v4692, %v4693
      %v4695 = vrot.slane %v4585, 5
      %v4696 = vsel %vm4661, %v4693, %v4695
      %v4697 = vrot.slane %v4586, 5
      %v4698 = vrot.slane %v4587, 5
      %v4699 = vsel %vm4661, %v4697, %v4698
      %v4700 = vrot.slane %v4588, 5
      %v4701 = vsel %vm4661, %v4698, %v4700
      %v4702 = vrot.slane %v4589, 5
      %v4703 = vrot.slane %v4590, 5
      %v4704 = vsel %vm4661, %v4702, %v4703
      %v4705 = vrot.slane %v4591, 5
      %v4706 = vsel %vm4661, %v4703, %v4705
      %v4707 = vrot.slane %v4592, 5
      %v4708 = vrot.slane %v4593, 5
      %v4709 = vsel %vm4661, %v4707, %v4708
      %v4710 = vrot.slane %v4594, 5
      %v4711 = vsel %vm4661, %v4708, %v4710
      %v4712 = vrot.slane %v4595, 5
      %v4713 = vrot.slane %v4596, 5
      %v4714 = vsel %vm4661, %v4712, %v4713
      %v4715 = vrot.slane %v4597, 5
      %v4716 = vsel %vm4661, %v4713, %v4715
      %v4717 = vrot.slane %v4598, 5
      %v4718 = vrot.slane %v4599, 5
      %v4719 = vsel %vm4661, %v4717, %v4718
      %v4720 = vrot.slane %v4600, 5
      %v4721 = vsel %vm4661, %v4718, %v4720
      %v4722 = vrot.slane %v4601, 5
      %v4723 = vrot.slane %v4602, 5
      %v4724 = vsel %vm4661, %v4722, %v4723
      %v4725 = vrot.slane %v4603, 5
      %v4726 = vsel %vm4661, %v4723, %v4725
      %v4727 = vrot.slane %v4604, 5
      %v4728 = vrot.slane %v4605, 5
      %v4729 = vsel %vm4661, %v4727, %v4728
      %v4730 = vrot.slane %v4606, 5
      %v4731 = vsel %vm4661, %v4728, %v4730
      %v4732 = vrot.slane %v4607, 5
      %v4733 = vrot.slane %v4608, 5
      %v4734 = vsel %vm4661, %v4732, %v4733
      %v4735 = vrot.slane %v4609, 5
      %v4736 = vsel %vm4661, %v4733, %v4735
      %v4737 = vrot.slane %v4610, 5
      %v4738 = vrot.slane %v4611, 5
      %v4739 = vsel %vm4661, %v4737, %v4738
      %v4740 = vrot.slane %v4612, 5
      %v4741 = vsel %vm4661, %v4738, %v4740
      %v4774 = vld [vmem:[%s5] sm:$0x1]
      %v4776 = vperm.slane %v4774, 0
      %v4778 = vmul.f32 %v4664, %v4776
      %v4779 = vmul.f32 %v4666, %v4776
      %v4780 = vmul.f32 %v4669, %v4776
      %v4781 = vmul.f32 %v4671, %v4776
      %v4782 = vmul.f32 %v4674, %v4776
      %v4783 = vmul.f32 %v4676, %v4776
      %v4784 = vmul.f32 %v4679, %v4776
      %v4785 = vmul.f32 %v4681, %v4776
      %v4786 = vmul.f32 %v4684, %v4776
      %v4787 = vmul.f32 %v4686, %v4776
      %v4788 = vmul.f32 %v4689, %v4776
      %v4789 = vmul.f32 %v4691, %v4776
      %v4790 = vmul.f32 %v4694, %v4776
      %v4791 = vmul.f32 %v4696, %v4776
      %v4792 = vmul.f32 %v4699, %v4776
      %v4793 = vmul.f32 %v4701, %v4776
      %v4794 = vmul.f32 %v4704, %v4776
      %v4795 = vmul.f32 %v4706, %v4776
      %v4796 = vmul.f32 %v4709, %v4776
      %v4797 = vmul.f32 %v4711, %v4776
      %v4798 = vmul.f32 %v4714, %v4776
      %v4799 = vmul.f32 %v4716, %v4776
      %v4800 = vmul.f32 %v4719, %v4776
      %v4801 = vmul.f32 %v4721, %v4776
      %v4802 = vmul.f32 %v4724, %v4776
      %v4803 = vmul.f32 %v4726, %v4776
      %v4804 = vmul.f32 %v4729, %v4776
      %v4805 = vmul.f32 %v4731, %v4776
      %v4806 = vmul.f32 %v4734, %v4776
      %v4807 = vmul.f32 %v4736, %v4776
      %v4808 = vmul.f32 %v4739, %v4776
      %v4809 = vmul.f32 %v4741, %v4776
      %v4810 = vld [vmem:[%s6] sm:$0x1]
      %v4812 = vperm.slane %v4810, 0
      %v4814 = vadd.f32 %v4778, %v4812
      %v4815 = vadd.f32 %v4779, %v4812
      %v4816 = vadd.f32 %v4780, %v4812
      %v4817 = vadd.f32 %v4781, %v4812
      %v4818 = vadd.f32 %v4782, %v4812
      %v4819 = vadd.f32 %v4783, %v4812
      %v4820 = vadd.f32 %v4784, %v4812
      %v4821 = vadd.f32 %v4785, %v4812
      %v4822 = vadd.f32 %v4786, %v4812
      %v4823 = vadd.f32 %v4787, %v4812
      %v4824 = vadd.f32 %v4788, %v4812
      %v4825 = vadd.f32 %v4789, %v4812
      %v4826 = vadd.f32 %v4790, %v4812
      %v4827 = vadd.f32 %v4791, %v4812
      %v4828 = vadd.f32 %v4792, %v4812
      %v4829 = vadd.f32 %v4793, %v4812
      %v4830 = vadd.f32 %v4794, %v4812
      %v4831 = vadd.f32 %v4795, %v4812
      %v4832 = vadd.f32 %v4796, %v4812
      %v4833 = vadd.f32 %v4797, %v4812
      %v4834 = vadd.f32 %v4798, %v4812
      %v4835 = vadd.f32 %v4799, %v4812
      %v4836 = vadd.f32 %v4800, %v4812
      %v4837 = vadd.f32 %v4801, %v4812
      %v4838 = vadd.f32 %v4802, %v4812
      %v4839 = vadd.f32 %v4803, %v4812
      %v4840 = vadd.f32 %v4804, %v4812
      %v4841 = vadd.f32 %v4805, %v4812
      %v4842 = vadd.f32 %v4806, %v4812
      %v4843 = vadd.f32 %v4807, %v4812
      %v4844 = vadd.f32 %v4808, %v4812
      %v4845 = vadd.f32 %v4809, %v4812
      %v4846 = vmax.f32 %v4814, 0.0
      %v4847 = vmax.f32 %v4815, 0.0
      %v4848 = vmax.f32 %v4816, 0.0
      %v4849 = vmax.f32 %v4817, 0.0
      %v4850 = vmax.f32 %v4818, 0.0
      %v4851 = vmax.f32 %v4819, 0.0
      %v4852 = vmax.f32 %v4820, 0.0
      %v4853 = vmax.f32 %v4821, 0.0
      %v4854 = vmax.f32 %v4822, 0.0
      %v4855 = vmax.f32 %v4823, 0.0
      %v4856 = vmax.f32 %v4824, 0.0
      %v4857 = vmax.f32 %v4825, 0.0
      %v4858 = vmax.f32 %v4826, 0.0
      %v4859 = vmax.f32 %v4827, 0.0
      %v4860 = vmax.f32 %v4828, 0.0
      %v4861 = vmax.f32 %v4829, 0.0
      %v4862 = vmax.f32 %v4830, 0.0
      %v4863 = vmax.f32 %v4831, 0.0
      %v4864 = vmax.f32 %v4832, 0.0
      %v4865 = vmax.f32 %v4833, 0.0
      %v4866 = vmax.f32 %v4834, 0.0
      %v4867 = vmax.f32 %v4835, 0.0
      %v4868 = vmax.f32 %v4836, 0.0
      %v4869 = vmax.f32 %v4837, 0.0
      %v4870 = vmax.f32 %v4838, 0.0
      %v4871 = vmax.f32 %v4839, 0.0
      %v4872 = vmax.f32 %v4840, 0.0
      %v4873 = vmax.f32 %v4841, 0.0
      %v4874 = vmax.f32 %v4842, 0.0
      %v4875 = vmax.f32 %v4843, 0.0
      %v4876 = vmax.f32 %v4844, 0.0
      %v4877 = vmax.f32 %v4845, 0.0
      %v4878 = vpack.c.bf16 %v4846, %v4846
      %v4879 = vpack.c.bf16 %v4847, %v4847
      %v4880 = vpack.c.bf16 %v4848, %v4848
      %v4881 = vpack.c.bf16 %v4849, %v4849
      %v4882 = vpack.c.bf16 %v4850, %v4850
      %v4883 = vpack.c.bf16 %v4851, %v4851
      %v4884 = vpack.c.bf16 %v4852, %v4852
      %v4885 = vpack.c.bf16 %v4853, %v4853
      %v4886 = vpack.c.bf16 %v4854, %v4854
      %v4887 = vpack.c.bf16 %v4855, %v4855
      %v4888 = vpack.c.bf16 %v4856, %v4856
      %v4889 = vpack.c.bf16 %v4857, %v4857
      %v4890 = vpack.c.bf16 %v4858, %v4858
      %v4891 = vpack.c.bf16 %v4859, %v4859
      %v4892 = vpack.c.bf16 %v4860, %v4860
      %v4893 = vpack.c.bf16 %v4861, %v4861
      %v4894 = vpack.c.bf16 %v4862, %v4862
      %v4895 = vpack.c.bf16 %v4863, %v4863
      %v4896 = vpack.c.bf16 %v4864, %v4864
      %v4897 = vpack.c.bf16 %v4865, %v4865
      %v4898 = vpack.c.bf16 %v4866, %v4866
      %v4899 = vpack.c.bf16 %v4867, %v4867
      %v4900 = vpack.c.bf16 %v4868, %v4868
      %v4901 = vpack.c.bf16 %v4869, %v4869
      %v4902 = vpack.c.bf16 %v4870, %v4870
      %v4903 = vpack.c.bf16 %v4871, %v4871
      %v4904 = vpack.c.bf16 %v4872, %v4872
      %v4905 = vpack.c.bf16 %v4873, %v4873
      %v4906 = vpack.c.bf16 %v4874, %v4874
      %v4907 = vpack.c.bf16 %v4875, %v4875
      %v4908 = vpack.c.bf16 %v4876, %v4876
      %v4909 = vpack.c.bf16 %v4877, %v4877
      %4942 = vrot.lane.b32.xlu0 %v4878, 4
      %v4943 = vpop.permute.xlu0 %4942
      %4944 = vrot.lane.b32.xlu0 %v4879, 4
      %v4945 = vpop.permute.xlu0 %4944
      %4946 = vrot.lane.b32.xlu0 %v4880, 4
      %v4947 = vpop.permute.xlu0 %4946
      %4948 = vrot.lane.b32.xlu0 %v4881, 4
      %v4949 = vpop.permute.xlu0 %4948
      %4950 = vrot.lane.b32.xlu0 %v4882, 4
      %v4951 = vpop.permute.xlu0 %4950
      %4952 = vrot.lane.b32.xlu0 %v4883, 4
      %v4953 = vpop.permute.xlu0 %4952
      %4954 = vrot.lane.b32.xlu0 %v4884, 4
      %v4955 = vpop.permute.xlu0 %4954
      %4956 = vrot.lane.b32.xlu0 %v4885, 4
      %v4957 = vpop.permute.xlu0 %4956
      %4958 = vrot.lane.b32.xlu0 %v4886, 4
      %v4959 = vpop.permute.xlu0 %4958
      %4960 = vrot.lane.b32.xlu0 %v4887, 4
      %v4961 = vpop.permute.xlu0 %4960
      %4962 = vrot.lane.b32.xlu0 %v4888, 4
      %v4963 = vpop.permute.xlu0 %4962
      %4964 = vrot.lane.b32.xlu0 %v4889, 4
      %v4965 = vpop.permute.xlu0 %4964
      %4966 = vrot.lane.b32.xlu0 %v4890, 4
      %v4967 = vpop.permute.xlu0 %4966
      %4968 = vrot.lane.b32.xlu0 %v4891, 4
      %v4969 = vpop.permute.xlu0 %4968
      %4970 = vrot.lane.b32.xlu0 %v4892, 4
      %v4971 = vpop.permute.xlu0 %4970
      %4972 = vrot.lane.b32.xlu0 %v4893, 4
      %v4973 = vpop.permute.xlu0 %4972
      %4974 = vrot.lane.b32.xlu0 %v4894, 4
      %v4975 = vpop.permute.xlu0 %4974
      %4976 = vrot.lane.b32.xlu0 %v4895, 4
      %v4977 = vpop.permute.xlu0 %4976
      %4978 = vrot.lane.b32.xlu0 %v4896, 4
      %v4979 = vpop.permute.xlu0 %4978
      %4980 = vrot.lane.b32.xlu0 %v4897, 4
      %v4981 = vpop.permute.xlu0 %4980
      %4982 = vrot.lane.b32.xlu0 %v4898, 4
      %v4983 = vpop.permute.xlu0 %4982
      %4984 = vrot.lane.b32.xlu0 %v4899, 4
      %v4985 = vpop.permute.xlu0 %4984
      %4986 = vrot.lane.b32.xlu0 %v4900, 4
      %v4987 = vpop.permute.xlu0 %4986
      %4988 = vrot.lane.b32.xlu0 %v4901, 4
      %v4989 = vpop.permute.xlu0 %4988
      %4990 = vrot.lane.b32.xlu0 %v4902, 4
      %v4991 = vpop.permute.xlu0 %4990
      %4992 = vrot.lane.b32.xlu0 %v4903, 4
      %v4993 = vpop.permute.xlu0 %4992
      %4994 = vrot.lane.b32.xlu0 %v4904, 4
      %v4995 = vpop.permute.xlu0 %4994
      %4996 = vrot.lane.b32.xlu0 %v4905, 4
      %v4997 = vpop.permute.xlu0 %4996
      %4998 = vrot.lane.b32.xlu0 %v4906, 4
      %v4999 = vpop.permute.xlu0 %4998
      %5000 = vrot.lane.b32.xlu0 %v4907, 4
      %v5001 = vpop.permute.xlu0 %5000
      %5002 = vrot.lane.b32.xlu0 %v4908, 4
      %v5003 = vpop.permute.xlu0 %5002
      %5004 = vrot.lane.b32.xlu0 %v4909, 4
      %v5005 = vpop.permute.xlu0 %5004
      %vm5038 = vcmask 60448
      %5039 = vst.msk [vmem:[%s278] sm:$0xf] %vm5038, %v4943
      %5040 = vst.msk [vmem:[%s278 + $0x4] sm:$0xf] %vm5038, %v4945
      %5041 = vst.msk [vmem:[%s278 + $0x8] sm:$0xf] %vm5038, %v4947
      %5042 = vst.msk [vmem:[%s278 + $0xc] sm:$0xf] %vm5038, %v4949
      %5043 = vst.msk [vmem:[%s278 + $0x10] sm:$0xf] %vm5038, %v4951
      %5044 = vst.msk [vmem:[%s278 + $0x14] sm:$0xf] %vm5038, %v4953
      %5045 = vst.msk [vmem:[%s278 + $0x18] sm:$0xf] %vm5038, %v4955
      %5046 = vst.msk [vmem:[%s278 + $0x1c] sm:$0xf] %vm5038, %v4957
      %5047 = vst.msk [vmem:[%s278 + $0x20] sm:$0xf] %vm5038, %v4959
      %5048 = vst.msk [vmem:[%s278 + $0x24] sm:$0xf] %vm5038, %v4961
      %5049 = vst.msk [vmem:[%s278 + $0x28] sm:$0xf] %vm5038, %v4963
      %5050 = vst.msk [vmem:[%s278 + $0x2c] sm:$0xf] %vm5038, %v4965
      %5051 = vst.msk [vmem:[%s278 + $0x30] sm:$0xf] %vm5038, %v4967
      %5052 = vst.msk [vmem:[%s278 + $0x34] sm:$0xf] %vm5038, %v4969
      %5053 = vst.msk [vmem:[%s278 + $0x38] sm:$0xf] %vm5038, %v4971
      %5054 = vst.msk [vmem:[%s278 + $0x3c] sm:$0xf] %vm5038, %v4973
      %5055 = vst.msk [vmem:[%s278 + $0x40] sm:$0xf] %vm5038, %v4975
      %5056 = vst.msk [vmem:[%s278 + $0x44] sm:$0xf] %vm5038, %v4977
      %5057 = vst.msk [vmem:[%s278 + $0x48] sm:$0xf] %vm5038, %v4979
      %5058 = vst.msk [vmem:[%s278 + $0x4c] sm:$0xf] %vm5038, %v4981
      %5059 = vst.msk [vmem:[%s278 + $0x50] sm:$0xf] %vm5038, %v4983
      %5060 = vst.msk [vmem:[%s278 + $0x54] sm:$0xf] %vm5038, %v4985
      %5061 = vst.msk [vmem:[%s278 + $0x58] sm:$0xf] %vm5038, %v4987
      %5062 = vst.msk [vmem:[%s278 + $0x5c] sm:$0xf] %vm5038, %v4989
      %5063 = vst.msk [vmem:[%s278 + $0x60] sm:$0xf] %vm5038, %v4991
      %5064 = vst.msk [vmem:[%s278 + $0x64] sm:$0xf] %vm5038, %v4993
      %5065 = vst.msk [vmem:[%s278 + $0x68] sm:$0xf] %vm5038, %v4995
      %5066 = vst.msk [vmem:[%s278 + $0x6c] sm:$0xf] %vm5038, %v4997
      %5067 = vst.msk [vmem:[%s278 + $0x70] sm:$0xf] %vm5038, %v4999
      %5068 = vst.msk [vmem:[%s278 + $0x74] sm:$0xf] %vm5038, %v5001
      %5069 = vst.msk [vmem:[%s278 + $0x78] sm:$0xf] %vm5038, %v5003
      %5070 = vst.msk [vmem:[%s278 + $0x7c] sm:$0xf] %vm5038, %v5005
      %p5071 = scmp.lt.s32.totalorder %s18, 1
      %s5072 = scalar_select %p5071, %s18, 1
      %s5073 = smul.addr %s5072, 32
      %s5074 = smul.addr %s5073, 4
      %s5075 = scalar_lea.vmem %s7, %s5074
      // Predicated region
      $region49: #{msdconv_forward.1} parent=47 // pred_check
        %p5076 = pneg %p188
      $region50: #{msdconv_forward.1} parent=47 // pred_check_branch
        %5078 = sbr.rel (%p5076) target = $region52
      $region51: #{msdconv_forward.1} parent=47 // pred_region
        _
      $region52: #{msdconv_forward.1} parent=47 // pred_fallthru
        _
    $region48: #{msdconv_forward.1} parent=5 // pred_fallthru
      _
    %p5079 = scmp.le.s32.totalorder 2, %s13
    // Predicated region
    $region53: #{msdconv_forward.1} parent=5 // pred_check
      %p5080 = pneg %p5079
    $region54: #{msdconv_forward.1} parent=5 // pred_check_branch
      %5082 = sbr.rel (%p5080) target = $region56
    $region55: #{msdconv_forward.1} parent=5 // pred_region
      %s5083 = ssub.s32 %s13, 2
      // Predicated region
      $region57: #{msdconv_forward.1} parent=55 // pred_check
        %p5084 = pneg %p194
      $region58: #{msdconv_forward.1} parent=55 // pred_check_branch
        %5086 = sbr.rel (%p5084) target = $region60
      $region59: #{msdconv_forward.1} parent=55 // pred_region
        %p5087 = scmp.lt.s32.totalorder %s19, 1
        %s5088 = scalar_select %p5087, %s19, 1
        %s5089 = smul.addr %s5088, 32
        %s5090 = smul.addr %s5089, 4
        %s5091 = scalar_lea.vmem %s7, %s5090
      $region60: #{msdconv_forward.1} parent=55 // pred_fallthru
        _
    $region56: #{msdconv_forward.1} parent=5 // pred_fallthru
      _
  $region6: #{msdconv_forward.1} parent=0 // loop_footer
    %s17 = sadd.s32 1, %s13
  $region7: #{msdconv_forward.1} parent=0 // loop_footer_branch
    %12 = sbr.rel target = $region3
  $region8: #{msdconv_forward.1} parent=0 // loop_exit
    _

</llo_original>
